<compile_context>
chip_gen: v7x
topology: tpu7x:2x2x1
jax: 0.10.0
libtpu: 0.0.40
codegen_flags: <defaults>
</compile_context>

<pallas_src>
import jax
import jax.numpy as jnp
from jax.experimental import pallas as pl
from jax.experimental.pallas import tpu as pltpu

# Small, self-consistent shapes (stand-in for BGE-large: H=1024, S=512, NH=16).
B, S, H = 2, 8, 128         # batch, seq, hidden (H=128 keeps every store lane-dense)
NH = 4                      # attention heads
DH = H // NH                # head dim
FFN = 4 * H                 # feed-forward hidden
VOCAB = 64                  # vocab size
LN_EPS = 1e-12              # BERT layernorm epsilon
NORM_EPS = 1e-12            # torch.nn.functional.normalize eps
SCALE = 1.0 / (DH ** 0.5)   # folded into the Q columns of w_qkv at init

# Row indices inside the packed (8, H) small-vector array.
_BO, _LN1_G, _LN1_B, _B2, _LN2_G, _LN2_B = 0, 1, 2, 3, 4, 5


# ----------------------------- Pallas kernel ---------------------------------

def _layer_norm(v, gamma, beta):
    mu = jnp.mean(v, axis=-1, keepdims=True)
    var = jnp.mean((v - mu) * (v - mu), axis=-1, keepdims=True)
    return (v - mu) * jax.lax.rsqrt(var + LN_EPS) * gamma + beta


def encoder_cls_kernel(x_ref, mask_ref, wqkv_ref, bqkv_ref, wo_ref,
                       w1_ref, b1_ref, w2_ref, vec_ref, cls_ref):
    """BERT-style encoder layer + fused CLS pooling / L2-normalize epilogue.

    Whole (tiny) problem in one grid step. Batch is flattened to (B*S, H) for the
    projection matmuls; attention runs as ONE batched block over all B*NH heads
    (single-batch-dim einsums); the output projection is a single H-wide matmul.
    """
    bf16 = jnp.bfloat16
    f32 = jnp.float32

    x2d = x_ref[...].reshape(B * S, H)                           # (B*S, H) f32

    # Additive key mask, broadcast once across heads: (B*NH, 1, S).
    neg_bias = (1.0 - mask_ref[...]) * (-1e9)                    # (B, 1, S)
    neg_bias = jnp.broadcast_to(neg_bias, (B, NH, S)).reshape(B * NH, 1, S)

    # Fused QKV projection: one MXU matmul, bf16 inputs, f32 accumulation.
    # (Q columns of wqkv are pre-scaled by 1/sqrt(DH) at init.)
    qkv = jnp.dot(x2d.astype(bf16), wqkv_ref[...],
                  preferred_element_type=f32) + bqkv_ref[...]    # (B*S, 3H) f32

    def split_heads(sl):
        # (B*S, DH*NH) f32 -> (B*NH, S, DH); transpose done in f32 (avoids packed
        # bf16 sublane relayout), single bf16 cast afterwards per tensor.
        return (sl.reshape(B, S, NH, DH)
                  .transpose(0, 2, 1, 3)
                  .reshape(B * NH, S, DH))

    q = split_heads(qkv[:, 0:H]).astype(bf16)                    # 128-aligned lane slices
    k = split_heads(qkv[:, H:2 * H]).astype(bf16)
    v = split_heads(qkv[:, 2 * H:3 * H]).astype(bf16)

    # One batched attention block over all B*NH heads (no per-head loop).
    s = jnp.einsum('bqd,bkd->bqk', q, k,
                   preferred_element_type=f32) + neg_bias        # (B*NH, S, S)
    p = jax.nn.softmax(s, axis=-1)                               # f32 statistics
    ctx = jnp.einsum('bqk,bkd->bqd', p.astype(bf16), v,
                     preferred_element_type=f32)                 # (B*NH, S, DH)

    # Merge heads back onto lanes, then ONE H-wide (K=128) output projection.
    ctx2d = (ctx.reshape(B, NH, S, DH)
                .transpose(0, 2, 1, 3)
                .reshape(B * S, H))                              # (B*S, H) f32
    attn = jnp.dot(ctx2d.astype(bf16), wo_ref[...],
                   preferred_element_type=f32) + vec_ref[_BO:_BO + 1, :]

    # Residual + LayerNorm 1 (f32 statistics).
    y = _layer_norm(x2d + attn,
                    vec_ref[_LN1_G:_LN1_G + 1, :], vec_ref[_LN1_B:_LN1_B + 1, :])

    # Feed-forward (bf16 matmuls, f32 accumulation).
    # TODO(synk): HF BERT/BGE uses exact erf GELU; tanh approximation kept here.
    hdn = jnp.dot(y.astype(bf16), w1_ref[...], preferred_element_type=f32) + b1_ref[...]
    hdn = jax.nn.gelu(hdn, approximate=True)
    z = jnp.dot(hdn.astype(bf16), w2_ref[...], preferred_element_type=f32)
    z = z + vec_ref[_B2:_B2 + 1, :]

    # Residual + LayerNorm 2 (f32 statistics).
    z = _layer_norm(y + z,
                    vec_ref[_LN2_G:_LN2_G + 1, :], vec_ref[_LN2_B:_LN2_B + 1, :])

    # Fused epilogue: sentence_embeddings = hidden[:, 0]; F.normalize(., p=2, dim=1).
    cls = z.reshape(B, S, H)[:, 0, :]                            # (B, H)
    norm = jnp.sqrt(jnp.sum(cls * cls, axis=-1, keepdims=True))
    cls_ref[...] = cls / jnp.maximum(norm, NORM_EPS)


# ------------------------------ Host wrappers ---------------------------------

def run_encoder_cls(x, mask3, p):
    """x: (B,S,H) f32, mask3: (B,1,S) f32 -> cls embeddings (B, H) f32."""
    return pl.pallas_call(
        encoder_cls_kernel,
        out_shape=jax.ShapeDtypeStruct((B, H), jnp.float32),
        # Actual working set is <1 MiB; keep the scoped-VMEM request small so it is
        # safe on v7x (64 MiB physical per TC) as well as v5e/v6e.
        compiler_params=pltpu.CompilerParams(vmem_limit_bytes=8 * 1024 * 1024),
    )(x, mask3,
      p["w_qkv"], p["b_qkv"], p["wo"], p["w1"], p["b1"], p["w2"], p["vec_pack"])


def init_params(key):
    ks = jax.random.split(key, 8)
    std = 0.02

    def rnd(k, shape):
        return jax.random.normal(k, shape, jnp.float32) * std

    wq, wk, wv = rnd(ks[2], (H, H)), rnd(ks[3], (H, H)), rnd(ks[4], (H, H))
    wo = rnd(ks[5], (H, H))
    zeros_h = jnp.zeros((H,), jnp.float32)
    ones_h = jnp.ones((H,), jnp.float32)
    vec_pack = jnp.stack([
        zeros_h,            # bo
        ones_h,             # ln1 gamma
        zeros_h,            # ln1 beta
        zeros_h,            # b2
        ones_h,             # ln2 gamma
        zeros_h,            # ln2 beta
        zeros_h, zeros_h,   # pad to 8 sublanes
    ], axis=0)                                                              # (8, H) f32
    return {
        "word_emb": rnd(ks[0], (VOCAB, H)),
        "pos_emb": rnd(ks[1], (S, H)),
        # 1/sqrt(DH) folded into the Q columns — no score multiply in the kernel.
        "w_qkv": jnp.concatenate([wq * SCALE, wk, wv], axis=1).astype(jnp.bfloat16),
        "b_qkv": jnp.zeros((1, 3 * H), jnp.float32),
        "wo": wo.astype(jnp.bfloat16),                                      # (H, H)
        "w1": rnd(ks[6], (H, FFN)).astype(jnp.bfloat16),
        "b1": jnp.zeros((1, FFN), jnp.float32),
        "w2": rnd(ks[7], (FFN, H)).astype(jnp.bfloat16),
        "vec_pack": vec_pack,
    }


def text_rep_extractor_forward(input_ids, attention_mask, params):
    """Mirrors TextRepExtractor.forward(**encoded_input)."""
    # Embedding lookup + layernorm (glue, plain JAX — gather has no matmul hot path).
    emb = jnp.take(params["word_emb"], input_ids, axis=0) + params["pos_emb"][None]
    mu = jnp.mean(emb, axis=-1, keepdims=True)
    var = jnp.mean((emb - mu) ** 2, axis=-1, keepdims=True)
    x = (emb - mu) * jax.lax.rsqrt(var + LN_EPS)

    mask3 = attention_mask.astype(jnp.float32).reshape(B, 1, S)
    out = run_encoder_cls(x.astype(jnp.float32), mask3, params)  # Pallas kernel
    return out


if __name__ == "__main__":
    key = jax.random.PRNGKey(0)
    k_ids, k_params = jax.random.split(key)

    input_ids = jax.random.randint(k_ids, (B, S), 0, VOCAB, dtype=jnp.int32)
    # Simple deterministic padding pattern: sample 0 full length, sample 1 has 2 pads.
    attention_mask = jnp.array([[1] * S, [1] * (S - 2) + [0] * 2], dtype=jnp.int32)

    params = init_params(k_params)

    out = text_rep_extractor_forward(input_ids, attention_mask, params)
    out = jax.block_until_ready(out)

    assert out.shape == (B, H), out.shape
    # Sanity: rows must be unit-norm after F.normalize(p=2, dim=1).
    norms = jnp.linalg.norm(out, axis=1)
    assert bool(jnp.all(jnp.abs(norms - 1.0) < 1e-4)), norms
    print("KERNEL_OK")
</pallas_src>

<mosaic_0001>
module attributes {stable_mosaic.version = 11 : i64} {
  func.func @encoder_cls_kernel(%arg0: memref<2x8x128xf32, #tpu.memory_space<vmem>>, %arg1: memref<2x1x8xf32, #tpu.memory_space<vmem>>, %arg2: memref<128x384xbf16, #tpu.memory_space<vmem>>, %arg3: memref<1x384xf32, #tpu.memory_space<vmem>>, %arg4: memref<128x128xbf16, #tpu.memory_space<vmem>>, %arg5: memref<128x512xbf16, #tpu.memory_space<vmem>>, %arg6: memref<1x512xf32, #tpu.memory_space<vmem>>, %arg7: memref<512x128xbf16, #tpu.memory_space<vmem>>, %arg8: memref<8x128xf32, #tpu.memory_space<vmem>>, %arg9: memref<2x128xf32, #tpu.memory_space<vmem>>) attributes {dimension_semantics = [], scalar_prefetch = 0 : i64, scratch_operands = 0 : i64, tpu.core_type = #tpu.core_type<tc>} {
    %c0 = arith.constant 0 : index
    %c0_0 = arith.constant 0 : index
    %c0_1 = arith.constant 0 : index
    %0 = vector.load %arg0[%c0, %c0_0, %c0_1] : memref<2x8x128xf32, #tpu.memory_space<vmem>>, vector<2x8x128xf32>
    %1 = vector.shape_cast %0 : vector<2x8x128xf32> to vector<16x128xf32>
    %c0_2 = arith.constant 0 : index
    %c0_3 = arith.constant 0 : index
    %c0_4 = arith.constant 0 : index
    %2 = vector.load %arg1[%c0_2, %c0_3, %c0_4] : memref<2x1x8xf32, #tpu.memory_space<vmem>>, vector<2x1x8xf32>
    %cst = arith.constant 1.000000e+00 : f32
    %3 = vector.broadcast %cst : f32 to vector<2x1x8xf32>
    %4 = arith.subf %3, %2 : vector<2x1x8xf32>
    %cst_5 = arith.constant -1.000000e+09 : f32
    %5 = vector.broadcast %cst_5 : f32 to vector<2x1x8xf32>
    %6 = arith.mulf %4, %5 : vector<2x1x8xf32>
    %7 = vector.shape_cast %6 : vector<2x1x8xf32> to vector<2x1x8xf32>
    %8 = vector.broadcast %7 : vector<2x1x8xf32> to vector<2x4x8xf32>
    %9 = vector.shape_cast %8 : vector<2x4x8xf32> to vector<8x1x8xf32>
    %10 = arith.truncf %1 : vector<16x128xf32> to vector<16x128xbf16>
    %c0_6 = arith.constant 0 : index
    %c0_7 = arith.constant 0 : index
    %11 = vector.load %arg2[%c0_6, %c0_7] : memref<128x384xbf16, #tpu.memory_space<vmem>>, vector<128x384xbf16>
    %cst_8 = arith.constant dense<0.000000e+00> : vector<16x384xf32>
    %12 = tpu.matmul %10, %11, %cst_8 {dimension_numbers = #tpu.dot_dimension_numbers<[1], [0], [0], [1], [0, 0, 1, 1], [], []>} : vector<16x128xbf16>, vector<128x384xbf16>, vector<16x384xf32> -> vector<16x384xf32>
    %c0_9 = arith.constant 0 : index
    %c0_10 = arith.constant 0 : index
    %13 = vector.load %arg3[%c0_9, %c0_10] : memref<1x384xf32, #tpu.memory_space<vmem>>, vector<1x384xf32>
    %14 = vector.broadcast %13 : vector<1x384xf32> to vector<16x384xf32>
    %15 = arith.addf %12, %14 : vector<16x384xf32>
    %16 = vector.extract_strided_slice %15 {offsets = [0, 0], sizes = [16, 128], strides = [1, 1]} : vector<16x384xf32> to vector<16x128xf32>
    %17 = vector.shape_cast %16 : vector<16x128xf32> to vector<2x8x4x32xf32>
    %18 = tpu.transpose %17, [0, 2, 1, 3] : vector<2x8x4x32xf32> -> vector<2x4x8x32xf32>
    %19 = vector.shape_cast %18 : vector<2x4x8x32xf32> to vector<8x8x32xf32>
    %20 = arith.truncf %19 : vector<8x8x32xf32> to vector<8x8x32xbf16>
    %21 = vector.extract_strided_slice %15 {offsets = [0, 128], sizes = [16, 128], strides = [1, 1]} : vector<16x384xf32> to vector<16x128xf32>
    %22 = vector.shape_cast %21 : vector<16x128xf32> to vector<2x8x4x32xf32>
    %23 = tpu.transpose %22, [0, 2, 1, 3] : vector<2x8x4x32xf32> -> vector<2x4x8x32xf32>
    %24 = vector.shape_cast %23 : vector<2x4x8x32xf32> to vector<8x8x32xf32>
    %25 = arith.truncf %24 : vector<8x8x32xf32> to vector<8x8x32xbf16>
    %26 = vector.extract_strided_slice %15 {offsets = [0, 256], sizes = [16, 128], strides = [1, 1]} : vector<16x384xf32> to vector<16x128xf32>
    %27 = vector.shape_cast %26 : vector<16x128xf32> to vector<2x8x4x32xf32>
    %28 = tpu.transpose %27, [0, 2, 1, 3] : vector<2x8x4x32xf32> -> vector<2x4x8x32xf32>
    %29 = vector.shape_cast %28 : vector<2x4x8x32xf32> to vector<8x8x32xf32>
    %30 = arith.truncf %29 : vector<8x8x32xf32> to vector<8x8x32xbf16>
    "tpu.trace_start"() <{level = 10 : i32, message = "bqd,bkd->bqk"}> : () -> ()
    %cst_11 = arith.constant dense<0.000000e+00> : vector<8x8x8xf32>
    %31 = tpu.matmul %20, %25, %cst_11 {dimension_numbers = #tpu.dot_dimension_numbers<[2], [2], [1], [1], [0, 0, 0, 1, 1, 1], [0], [0]>} : vector<8x8x32xbf16>, vector<8x8x32xbf16>, vector<8x8x8xf32> -> vector<8x8x8xf32>
    "tpu.trace_stop"() : () -> ()
    %32 = vector.broadcast %9 : vector<8x1x8xf32> to vector<8x8x8xf32>
    %33 = arith.addf %31, %32 : vector<8x8x8xf32>
    %cst_12 = arith.constant dense<0xFF800000> : vector<8x8xf32>
    %34 = vector.multi_reduction <maximumf>, %33, %cst_12 [2] : vector<8x8x8xf32> to vector<8x8xf32>
    %cst_13 = arith.constant 0xFF800000 : f32
    %35 = vector.broadcast %cst_13 : f32 to vector<8x8xf32>
    %36 = arith.maximumf %35, %34 : vector<8x8xf32>
    %37 = vector.shape_cast %36 : vector<8x8xf32> to vector<8x8x1xf32>
    %38 = vector.broadcast %37 : vector<8x8x1xf32> to vector<8x8x8xf32>
    %39 = arith.subf %33, %38 : vector<8x8x8xf32>
    %40 = math.exp %39 : vector<8x8x8xf32>
    %cst_14 = arith.constant dense<0.000000e+00> : vector<8x8xf32>
    %41 = vector.multi_reduction <add>, %40, %cst_14 [2] : vector<8x8x8xf32> to vector<8x8xf32>
    %42 = vector.shape_cast %41 : vector<8x8xf32> to vector<8x8x1xf32>
    %43 = vector.broadcast %42 : vector<8x8x1xf32> to vector<8x8x8xf32>
    %44 = arith.divf %40, %43 : vector<8x8x8xf32>
    %45 = arith.truncf %44 : vector<8x8x8xf32> to vector<8x8x8xbf16>
    "tpu.trace_start"() <{level = 10 : i32, message = "bqk,bkd->bqd"}> : () -> ()
    %cst_15 = arith.constant dense<0.000000e+00> : vector<8x8x32xf32>
    %46 = tpu.matmul %45, %30, %cst_15 {dimension_numbers = #tpu.dot_dimension_numbers<[2], [1], [1], [2], [0, 0, 0, 1, 1, 2], [0], [0]>} : vector<8x8x8xbf16>, vector<8x8x32xbf16>, vector<8x8x32xf32> -> vector<8x8x32xf32>
    "tpu.trace_stop"() : () -> ()
    %47 = vector.shape_cast %46 : vector<8x8x32xf32> to vector<2x4x8x32xf32>
    %48 = tpu.transpose %47, [0, 2, 1, 3] : vector<2x4x8x32xf32> -> vector<2x8x4x32xf32>
    %49 = vector.shape_cast %48 : vector<2x8x4x32xf32> to vector<16x128xf32>
    %50 = arith.truncf %49 : vector<16x128xf32> to vector<16x128xbf16>
    %c0_16 = arith.constant 0 : index
    %c0_17 = arith.constant 0 : index
    %51 = vector.load %arg4[%c0_16, %c0_17] : memref<128x128xbf16, #tpu.memory_space<vmem>>, vector<128x128xbf16>
    %cst_18 = arith.constant dense<0.000000e+00> : vector<16x128xf32>
    %52 = tpu.matmul %50, %51, %cst_18 {dimension_numbers = #tpu.dot_dimension_numbers<[1], [0], [0], [1], [0, 0, 1, 1], [], []>} : vector<16x128xbf16>, vector<128x128xbf16>, vector<16x128xf32> -> vector<16x128xf32>
    %c0_19 = arith.constant 0 : index
    %c0_20 = arith.constant 0 : index
    %53 = vector.load %arg8[%c0_19, %c0_20] : memref<8x128xf32, #tpu.memory_space<vmem>>, vector<1x128xf32>
    %54 = vector.broadcast %53 : vector<1x128xf32> to vector<16x128xf32>
    %55 = arith.addf %52, %54 : vector<16x128xf32>
    %56 = arith.addf %1, %55 : vector<16x128xf32>
    %c1 = arith.constant 1 : index
    %c0_21 = arith.constant 0 : index
    %57 = vector.load %arg8[%c1, %c0_21] : memref<8x128xf32, #tpu.memory_space<vmem>>, vector<1x128xf32>
    %c2 = arith.constant 2 : index
    %c0_22 = arith.constant 0 : index
    %58 = vector.load %arg8[%c2, %c0_22] : memref<8x128xf32, #tpu.memory_space<vmem>>, vector<1x128xf32>
    %cst_23 = arith.constant dense<0.000000e+00> : vector<16xf32>
    %59 = vector.multi_reduction <add>, %56, %cst_23 [1] : vector<16x128xf32> to vector<16xf32>
    %60 = vector.shape_cast %59 : vector<16xf32> to vector<16x1xf32>
    %cst_24 = arith.constant 1.280000e+02 : f32
    %61 = vector.broadcast %cst_24 : f32 to vector<16x1xf32>
    %62 = arith.divf %60, %61 : vector<16x1xf32>
    %63 = vector.broadcast %62 : vector<16x1xf32> to vector<16x128xf32>
    %64 = arith.subf %56, %63 : vector<16x128xf32>
    %65 = vector.broadcast %62 : vector<16x1xf32> to vector<16x128xf32>
    %66 = arith.subf %56, %65 : vector<16x128xf32>
    %67 = arith.mulf %64, %66 : vector<16x128xf32>
    %cst_25 = arith.constant dense<0.000000e+00> : vector<16xf32>
    %68 = vector.multi_reduction <add>, %67, %cst_25 [1] : vector<16x128xf32> to vector<16xf32>
    %69 = vector.shape_cast %68 : vector<16xf32> to vector<16x1xf32>
    %cst_26 = arith.constant 1.280000e+02 : f32
    %70 = vector.broadcast %cst_26 : f32 to vector<16x1xf32>
    %71 = arith.divf %69, %70 : vector<16x1xf32>
    %72 = vector.broadcast %62 : vector<16x1xf32> to vector<16x128xf32>
    %73 = arith.subf %56, %72 : vector<16x128xf32>
    %cst_27 = arith.constant 9.99999996E-13 : f32
    %74 = vector.broadcast %cst_27 : f32 to vector<16x1xf32>
    %75 = arith.addf %71, %74 : vector<16x1xf32>
    %76 = math.rsqrt %75 : vector<16x1xf32>
    %77 = vector.broadcast %76 : vector<16x1xf32> to vector<16x128xf32>
    %78 = arith.mulf %73, %77 : vector<16x128xf32>
    %79 = vector.broadcast %57 : vector<1x128xf32> to vector<16x128xf32>
    %80 = arith.mulf %78, %79 : vector<16x128xf32>
    %81 = vector.broadcast %58 : vector<1x128xf32> to vector<16x128xf32>
    %82 = arith.addf %80, %81 : vector<16x128xf32>
    %83 = arith.truncf %82 : vector<16x128xf32> to vector<16x128xbf16>
    %c0_28 = arith.constant 0 : index
    %c0_29 = arith.constant 0 : index
    %84 = vector.load %arg5[%c0_28, %c0_29] : memref<128x512xbf16, #tpu.memory_space<vmem>>, vector<128x512xbf16>
    %cst_30 = arith.constant dense<0.000000e+00> : vector<16x512xf32>
    %85 = tpu.matmul %83, %84, %cst_30 {dimension_numbers = #tpu.dot_dimension_numbers<[1], [0], [0], [1], [0, 0, 1, 1], [], []>} : vector<16x128xbf16>, vector<128x512xbf16>, vector<16x512xf32> -> vector<16x512xf32>
    %c0_31 = arith.constant 0 : index
    %c0_32 = arith.constant 0 : index
    %86 = vector.load %arg6[%c0_31, %c0_32] : memref<1x512xf32, #tpu.memory_space<vmem>>, vector<1x512xf32>
    %87 = vector.broadcast %86 : vector<1x512xf32> to vector<16x512xf32>
    %88 = arith.addf %85, %87 : vector<16x512xf32>
    %89 = arith.mulf %88, %88 : vector<16x512xf32>
    %90 = arith.mulf %88, %89 : vector<16x512xf32>
    %cst_33 = arith.constant 4.471500e-02 : f32
    %91 = vector.broadcast %cst_33 : f32 to vector<16x512xf32>
    %92 = arith.mulf %91, %90 : vector<16x512xf32>
    %93 = arith.addf %88, %92 : vector<16x512xf32>
    %cst_34 = arith.constant 0.797884583 : f32
    %94 = vector.broadcast %cst_34 : f32 to vector<16x512xf32>
    %95 = arith.mulf %94, %93 : vector<16x512xf32>
    %96 = math.tanh %95 : vector<16x512xf32>
    %cst_35 = arith.constant 1.000000e+00 : f32
    %97 = vector.broadcast %cst_35 : f32 to vector<16x512xf32>
    %98 = arith.addf %97, %96 : vector<16x512xf32>
    %cst_36 = arith.constant 5.000000e-01 : f32
    %99 = vector.broadcast %cst_36 : f32 to vector<16x512xf32>
    %100 = arith.mulf %99, %98 : vector<16x512xf32>
    %101 = arith.mulf %88, %100 : vector<16x512xf32>
    %102 = arith.truncf %101 : vector<16x512xf32> to vector<16x512xbf16>
    %c0_37 = arith.constant 0 : index
    %c0_38 = arith.constant 0 : index
    %103 = vector.load %arg7[%c0_37, %c0_38] : memref<512x128xbf16, #tpu.memory_space<vmem>>, vector<512x128xbf16>
    %cst_39 = arith.constant dense<0.000000e+00> : vector<16x128xf32>
    %104 = tpu.matmul %102, %103, %cst_39 {dimension_numbers = #tpu.dot_dimension_numbers<[1], [0], [0], [1], [0, 0, 1, 1], [], []>} : vector<16x512xbf16>, vector<512x128xbf16>, vector<16x128xf32> -> vector<16x128xf32>
    %c3 = arith.constant 3 : index
    %c0_40 = arith.constant 0 : index
    %105 = vector.load %arg8[%c3, %c0_40] : memref<8x128xf32, #tpu.memory_space<vmem>>, vector<1x128xf32>
    %106 = vector.broadcast %105 : vector<1x128xf32> to vector<16x128xf32>
    %107 = arith.addf %104, %106 : vector<16x128xf32>
    %108 = arith.addf %82, %107 : vector<16x128xf32>
    %c4 = arith.constant 4 : index
    %c0_41 = arith.constant 0 : index
    %109 = vector.load %arg8[%c4, %c0_41] : memref<8x128xf32, #tpu.memory_space<vmem>>, vector<1x128xf32>
    %c5 = arith.constant 5 : index
    %c0_42 = arith.constant 0 : index
    %110 = vector.load %arg8[%c5, %c0_42] : memref<8x128xf32, #tpu.memory_space<vmem>>, vector<1x128xf32>
    %cst_43 = arith.constant dense<0.000000e+00> : vector<16xf32>
    %111 = vector.multi_reduction <add>, %108, %cst_43 [1] : vector<16x128xf32> to vector<16xf32>
    %112 = vector.shape_cast %111 : vector<16xf32> to vector<16x1xf32>
    %cst_44 = arith.constant 1.280000e+02 : f32
    %113 = vector.broadcast %cst_44 : f32 to vector<16x1xf32>
    %114 = arith.divf %112, %113 : vector<16x1xf32>
    %115 = vector.broadcast %114 : vector<16x1xf32> to vector<16x128xf32>
    %116 = arith.subf %108, %115 : vector<16x128xf32>
    %117 = vector.broadcast %114 : vector<16x1xf32> to vector<16x128xf32>
    %118 = arith.subf %108, %117 : vector<16x128xf32>
    %119 = arith.mulf %116, %118 : vector<16x128xf32>
    %cst_45 = arith.constant dense<0.000000e+00> : vector<16xf32>
    %120 = vector.multi_reduction <add>, %119, %cst_45 [1] : vector<16x128xf32> to vector<16xf32>
    %121 = vector.shape_cast %120 : vector<16xf32> to vector<16x1xf32>
    %cst_46 = arith.constant 1.280000e+02 : f32
    %122 = vector.broadcast %cst_46 : f32 to vector<16x1xf32>
    %123 = arith.divf %121, %122 : vector<16x1xf32>
    %124 = vector.broadcast %114 : vector<16x1xf32> to vector<16x128xf32>
    %125 = arith.subf %108, %124 : vector<16x128xf32>
    %cst_47 = arith.constant 9.99999996E-13 : f32
    %126 = vector.broadcast %cst_47 : f32 to vector<16x1xf32>
    %127 = arith.addf %123, %126 : vector<16x1xf32>
    %128 = math.rsqrt %127 : vector<16x1xf32>
    %129 = vector.broadcast %128 : vector<16x1xf32> to vector<16x128xf32>
    %130 = arith.mulf %125, %129 : vector<16x128xf32>
    %131 = vector.broadcast %109 : vector<1x128xf32> to vector<16x128xf32>
    %132 = arith.mulf %130, %131 : vector<16x128xf32>
    %133 = vector.broadcast %110 : vector<1x128xf32> to vector<16x128xf32>
    %134 = arith.addf %132, %133 : vector<16x128xf32>
    %135 = vector.shape_cast %134 : vector<16x128xf32> to vector<2x8x128xf32>
    %136 = vector.extract_strided_slice %135 {offsets = [0, 0, 0], sizes = [2, 1, 128], strides = [1, 1, 1]} : vector<2x8x128xf32> to vector<2x1x128xf32>
    %137 = vector.shape_cast %136 : vector<2x1x128xf32> to vector<2x128xf32>
    %138 = arith.mulf %137, %137 : vector<2x128xf32>
    %cst_48 = arith.constant dense<0.000000e+00> : vector<2xf32>
    %139 = vector.multi_reduction <add>, %138, %cst_48 [1] : vector<2x128xf32> to vector<2xf32>
    %140 = vector.shape_cast %139 : vector<2xf32> to vector<2x1xf32>
    %141 = math.sqrt %140 : vector<2x1xf32>
    %cst_49 = arith.constant 9.99999996E-13 : f32
    %142 = vector.broadcast %cst_49 : f32 to vector<2x1xf32>
    %143 = arith.maximumf %141, %142 : vector<2x1xf32>
    %144 = vector.broadcast %143 : vector<2x1xf32> to vector<2x128xf32>
    %145 = arith.divf %137, %144 : vector<2x128xf32>
    %c0_50 = arith.constant 0 : index
    %c0_51 = arith.constant 0 : index
    %146 = vector.load %arg9[%c0_50, %c0_51] : memref<2x128xf32, #tpu.memory_space<vmem>>, vector<2x128xf32>
    tpu.vector_store %arg9[%c0_50, %c0_51], %145 {strides = array<i32>} : memref<2x128xf32, #tpu.memory_space<vmem>>, vector<2x128xf32>,
    return
  }
}

</mosaic_0001>

<llo_original>
// kernel: tpu_custom_call.1
$region0: #{tpu_custom_call.1}
  #allocation0 [shape = 'u32[]', space=smem, size = 0x4, offset = 0x4, fixed_abs, tag = 'smem constant byte address 0x4 - core index']
  #allocation1 [shape = 'u32[144,128]{1,0:T(1,128)}', space=vmem, size = 0x12000, scoped, tag = 'internal scratch']
  %s0 = inlined_call_operand.hbm [shape: f32[2,8,128], index: 0, kind: input, shape index: {}]
  %s1 = inlined_call_operand.hbm [shape: f32[2,1,8], index: 1, kind: input, shape index: {}]
  %s2 = inlined_call_operand.hbm [shape: bf16[128,384], index: 2, kind: input, shape index: {}]
  %s3 = inlined_call_operand.vmem [shape: f32[1,384], index: 3, kind: input, shape index: {}]
  %s4 = inlined_call_operand.hbm [shape: bf16[128,128], index: 4, kind: input, shape index: {}]
  %s5 = inlined_call_operand.hbm [shape: bf16[128,512], index: 5, kind: input, shape index: {}]
  %s6 = inlined_call_operand.vmem [shape: f32[1,512], index: 6, kind: input, shape index: {}]
  %s7 = inlined_call_operand.hbm [shape: bf16[512,128], index: 7, kind: input, shape index: {}]
  %s8 = inlined_call_operand.vmem [shape: f32[8,128], index: 8, kind: input, shape index: {}]
  %s9 = inlined_call_operand.hbm [shape: f32[2,128], index: 9, kind: output, shape index: {}]
  %s10 = sld [smem:[#allocation0]]
  $region70: #{tpu_custom_call.1} parent=0
    _
  %s12 = ssub.s32 1, %s10
  %s13 = scalar_select 0, %s12, %s10
  $region1: #{tpu_custom_call.1} parent=0
    #allocation2 [shape = 'u8[8192]{0}', space=vmem, size = 0x2000, scoped, tag = 'input window, operand 0, single buffered']
    #allocation3 [shape = 's32[1]{0}', space=sflag, size = 0x4, scoped, tag = 'scoped memory for tpu_custom_call.1']
    #allocation4 [shape = 's32[1]{0}', space=sflag, size = 0x4, scoped, tag = 'scoped memory for tpu_custom_call.1']
    #allocation5 [shape = 'u8[1024]{0}', space=vmem, size = 0x400, scoped, tag = 'input window, operand 1, single buffered']
    #allocation6 [shape = 's32[1]{0}', space=sflag, size = 0x4, scoped, tag = 'scoped memory for tpu_custom_call.1']
    #allocation7 [shape = 'u8[98304]{0}', space=vmem, size = 0x18000, scoped, tag = 'input window, operand 2, single buffered']
    #allocation8 [shape = 'u8[32768]{0}', space=vmem, size = 0x8000, scoped, tag = 'input window, operand 4, single buffered']
    #allocation9 [shape = 's32[1]{0}', space=sflag, size = 0x4, scoped, tag = 'scoped memory for tpu_custom_call.1']
    #allocation10 [shape = 'u8[131072]{0}', space=vmem, size = 0x20000, scoped, tag = 'input window, operand 5, single buffered']
    #allocation11 [shape = 'u8[131072]{0}', space=vmem, size = 0x20000, scoped, tag = 'input window, operand 7, single buffered']
    #allocation12 [shape = 's32[1]{0}', space=sflag, size = 0x4, scoped, tag = 'scoped memory for tpu_custom_call.1']
    #allocation13 [shape = 'u8[1024]{0}', space=vmem, size = 0x400, scoped, tag = 'output window, operand 0, single buffered']
    %14 = vsyncpa [#allocation3], 0
    %15 = vsyncpa [#allocation6], 0
    %16 = vsyncpa [#allocation9], 0
    %17 = vsyncpa [#allocation12], 0
    %18 = vsyncpa [#allocation4], 0
    // Predicated region
    $region2: #{tpu_custom_call.1} parent=1 // pred_check
      _
    $region3: #{tpu_custom_call.1} parent=1 // pred_check_branch
      %20 = sbr.rel (0) target = $region5
    $region4: #{tpu_custom_call.1} parent=1 // pred_region
      %s22 = ssub.s32 256, 256
      %23 = vsyncadd [#allocation3], %s22
      %s24 = sshll.u32 [#allocation2], 4
      %s25 = int_to_ptr.vmem [resolvable:$true] %s24
      %30 = dma.hbm_to_vmem [thread:$0]  %s0, 256, %s25, [#allocation3], 128, 128, 8
    $region5: #{tpu_custom_call.1} parent=1 // pred_fallthru
      _
    // Predicated region
    $region6: #{tpu_custom_call.1} parent=1 // pred_check
      _
    $region7: #{tpu_custom_call.1} parent=1 // pred_check_branch
      %32 = sbr.rel (0) target = $region9
    $region8: #{tpu_custom_call.1} parent=1 // pred_region
      %s34 = ssub.s32 32, 32
      %35 = vsyncadd [#allocation6], %s34
      %s36 = sshll.u32 [#allocation5], 4
      %s37 = int_to_ptr.vmem [resolvable:$true] %s36
      %42 = dma.hbm_to_vmem [thread:$0]  %s1, 32, %s37, [#allocation6], 16, 16, 1
    $region9: #{tpu_custom_call.1} parent=1 // pred_fallthru
      _
    // Predicated region
    $region10: #{tpu_custom_call.1} parent=1 // pred_check
      _
    $region11: #{tpu_custom_call.1} parent=1 // pred_check_branch
      %44 = sbr.rel (0) target = $region13
    $region12: #{tpu_custom_call.1} parent=1 // pred_region
      %s46 = ssub.s32 3072, 3072
      %47 = vsyncadd [#allocation6], %s46
      %s48 = sshll.u32 [#allocation7], 4
      %s49 = int_to_ptr.vmem [resolvable:$true] %s48
      %54 = dma.hbm_to_vmem [thread:$0]  %s2, 3072, %s49, [#allocation6], 192, 192, 12
    $region13: #{tpu_custom_call.1} parent=1 // pred_fallthru
      _
    // Predicated region
    $region14: #{tpu_custom_call.1} parent=1 // pred_check
      _
    $region15: #{tpu_custom_call.1} parent=1 // pred_check_branch
      %56 = sbr.rel (0) target = $region17
    $region16: #{tpu_custom_call.1} parent=1 // pred_region
      _
    $region17: #{tpu_custom_call.1} parent=1 // pred_fallthru
      _
    // Predicated region
    $region18: #{tpu_custom_call.1} parent=1 // pred_check
      _
    $region19: #{tpu_custom_call.1} parent=1 // pred_check_branch
      %58 = sbr.rel (0) target = $region21
    $region20: #{tpu_custom_call.1} parent=1 // pred_region
      %s60 = ssub.s32 1024, 1024
      %61 = vsyncadd [#allocation9], %s60
      %s62 = sshll.u32 [#allocation8], 4
      %s63 = int_to_ptr.vmem [resolvable:$true] %s62
      %68 = dma.hbm_to_vmem [thread:$0]  %s4, 1024, %s63, [#allocation9], 64, 64, 4
    $region21: #{tpu_custom_call.1} parent=1 // pred_fallthru
      _
    // Predicated region
    $region22: #{tpu_custom_call.1} parent=1 // pred_check
      _
    $region23: #{tpu_custom_call.1} parent=1 // pred_check_branch
      %70 = sbr.rel (0) target = $region25
    $region24: #{tpu_custom_call.1} parent=1 // pred_region
      %s72 = ssub.s32 4096, 4096
      %73 = vsyncadd [#allocation9], %s72
      %s74 = sshll.u32 [#allocation10], 4
      %s75 = int_to_ptr.vmem [resolvable:$true] %s74
      %80 = dma.hbm_to_vmem [thread:$0]  %s5, 4096, %s75, [#allocation9], 256, 256, 16
    $region25: #{tpu_custom_call.1} parent=1 // pred_fallthru
      _
    // Predicated region
    $region26: #{tpu_custom_call.1} parent=1 // pred_check
      _
    $region27: #{tpu_custom_call.1} parent=1 // pred_check_branch
      %82 = sbr.rel (0) target = $region29
    $region28: #{tpu_custom_call.1} parent=1 // pred_region
      _
    $region29: #{tpu_custom_call.1} parent=1 // pred_fallthru
      _
    // Predicated region
    $region30: #{tpu_custom_call.1} parent=1 // pred_check
      _
    $region31: #{tpu_custom_call.1} parent=1 // pred_check_branch
      %84 = sbr.rel (0) target = $region33
    $region32: #{tpu_custom_call.1} parent=1 // pred_region
      %s86 = ssub.s32 4096, 4096
      %87 = vsyncadd [#allocation12], %s86
      %s88 = sshll.u32 [#allocation11], 4
      %s89 = int_to_ptr.vmem [resolvable:$true] %s88
      %94 = dma.hbm_to_vmem [thread:$0]  %s7, 4096, %s89, [#allocation12], 64, 64, 4
    $region33: #{tpu_custom_call.1} parent=1 // pred_fallthru
      _
    // Predicated region
    $region34: #{tpu_custom_call.1} parent=1 // pred_check
      _
    $region35: #{tpu_custom_call.1} parent=1 // pred_check_branch
      %96 = sbr.rel (0) target = $region37
    $region36: #{tpu_custom_call.1} parent=1 // pred_region
      _
    $region37: #{tpu_custom_call.1} parent=1 // pred_fallthru
      _
    // Predicated region
    $region38: #{tpu_custom_call.1} parent=1 // pred_check
      _
    $region39: #{tpu_custom_call.1} parent=1 // pred_check_branch
      %98 = sbr.rel (0) target = $region41
    $region40: #{tpu_custom_call.1} parent=1 // pred_region
      %99 = dma.done [#allocation3], 256
    $region41: #{tpu_custom_call.1} parent=1 // pred_fallthru
      _
    // Predicated region
    $region42: #{tpu_custom_call.1} parent=1 // pred_check
      _
    $region43: #{tpu_custom_call.1} parent=1 // pred_check_branch
      %101 = sbr.rel (0) target = $region45
    $region44: #{tpu_custom_call.1} parent=1 // pred_region
      %102 = dma.done [#allocation6], 32
    $region45: #{tpu_custom_call.1} parent=1 // pred_fallthru
      _
    // Predicated region
    $region46: #{tpu_custom_call.1} parent=1 // pred_check
      _
    $region47: #{tpu_custom_call.1} parent=1 // pred_check_branch
      %104 = sbr.rel (0) target = $region49
    $region48: #{tpu_custom_call.1} parent=1 // pred_region
      %105 = dma.done [#allocation6], 3072
    $region49: #{tpu_custom_call.1} parent=1 // pred_fallthru
      _
    // Predicated region
    $region50: #{tpu_custom_call.1} parent=1 // pred_check
      _
    $region51: #{tpu_custom_call.1} parent=1 // pred_check_branch
      %107 = sbr.rel (0) target = $region53
    $region52: #{tpu_custom_call.1} parent=1 // pred_region
      %108 = dma.done [#allocation9], 1024
    $region53: #{tpu_custom_call.1} parent=1 // pred_fallthru
      _
    // Predicated region
    $region54: #{tpu_custom_call.1} parent=1 // pred_check
      _
    $region55: #{tpu_custom_call.1} parent=1 // pred_check_branch
      %110 = sbr.rel (0) target = $region57
    $region56: #{tpu_custom_call.1} parent=1 // pred_region
      %111 = dma.done [#allocation9], 4096
    $region57: #{tpu_custom_call.1} parent=1 // pred_fallthru
      _
    // Predicated region
    $region58: #{tpu_custom_call.1} parent=1 // pred_check
      _
    $region59: #{tpu_custom_call.1} parent=1 // pred_check_branch
      %113 = sbr.rel (0) target = $region61
    $region60: #{tpu_custom_call.1} parent=1 // pred_region
      %114 = dma.done [#allocation12], 4096
    $region61: #{tpu_custom_call.1} parent=1 // pred_fallthru
      _
    %v116 = vld [vmem:[#allocation2] sm:$0xff]
    %v117 = vld [vmem:[#allocation2 + $0x8] sm:$0xff]
    %v118 = vld [vmem:[#allocation5] sm:$0x1]
    %v119 = vld [vmem:[#allocation5 + $0x1] sm:$0x1]
    %v120 = vsub.f32 1.0, %v118
    %v121 = vsub.f32 1.0, %v119
    %v122 = vmul.f32 %v120, -1e+09
    %v123 = vmul.f32 %v121, -1e+09
    %v126 = vlaneseq
    %v127 = vshrl.u32 %v126, 7
    %v128 = vsub.s32 0, %v127
    %v129 = vrot.slane %v122, %v128
    %v130 = vlaneseq
    %v131 = vshrl.u32 %v130, 7
    %v132 = vsub.s32 0, %v131
    %v133 = vrot.slane %v123, %v132
    %v135 = vunpack.c.l.s4 1966171168
    %v136 = vunpack.c.0.s8 %v135
    %v137 = vlaneseq
    %v138 = vshrl.u32 %v137, 7
    %v139 = vsub.s32 %v136, %v138
    %v140 = vrot.slane %v129, %v139
    %v141 = vcombine.high %v140, %v140
    %v143 = vunpack.c.l.s4 1966171168
    %v144 = vunpack.c.0.s8 %v143
    %v145 = vlaneseq
    %v146 = vshrl.u32 %v145, 7
    %v147 = vsub.s32 %v144, %v146
    %v148 = vrot.slane %v140, %v147
    %v150 = vunpack.c.l.s4 1966171168
    %v151 = vunpack.c.0.s8 %v150
    %v152 = vlaneseq
    %v153 = vshrl.u32 %v152, 7
    %v154 = vsub.s32 %v151, %v153
    %v155 = vrot.slane %v141, %v154
    %v156 = vcombine.high %v148, %v148
    %v157 = vcombine.high %v155, %v155
    %v159 = vunpack.c.l.s4 1966171168
    %v160 = vunpack.c.0.s8 %v159
    %v161 = vlaneseq
    %v162 = vshrl.u32 %v161, 7
    %v163 = vsub.s32 %v160, %v162
    %v164 = vrot.slane %v133, %v163
    %v165 = vcombine.high %v164, %v164
    %v167 = vunpack.c.l.s4 1966171168
    %v168 = vunpack.c.0.s8 %v167
    %v169 = vlaneseq
    %v170 = vshrl.u32 %v169, 7
    %v171 = vsub.s32 %v168, %v170
    %v172 = vrot.slane %v164, %v171
    %v174 = vunpack.c.l.s4 1966171168
    %v175 = vunpack.c.0.s8 %v174
    %v176 = vlaneseq
    %v177 = vshrl.u32 %v176, 7
    %v178 = vsub.s32 %v175, %v177
    %v179 = vrot.slane %v165, %v178
    %v180 = vcombine.high %v172, %v172
    %v181 = vcombine.high %v179, %v179
    %v182 = vpack.c.bf16 %v117, %v116
    %v183 = vld [vmem:[#allocation7] sm:$0xff]
    %v184 = vld [vmem:[#allocation7 + $0x8] sm:$0xf]
    %v185 = vld [vmem:[#allocation7 + $0xc] sm:$0xff]
    %v186 = vld [vmem:[#allocation7 + $0x14] sm:$0xf]
    %v187 = vld [vmem:[#allocation7 + $0x18] sm:$0xff]
    %v188 = vld [vmem:[#allocation7 + $0x20] sm:$0xf]
    %v189 = vld [vmem:[#allocation7 + $0x24] sm:$0xff]
    %v190 = vld [vmem:[#allocation7 + $0x2c] sm:$0xf]
    %v191 = vld [vmem:[#allocation7 + $0x30] sm:$0xff]
    %v192 = vld [vmem:[#allocation7 + $0x38] sm:$0xf]
    %v193 = vld [vmem:[#allocation7 + $0x3c] sm:$0xff]
    %v194 = vld [vmem:[#allocation7 + $0x44] sm:$0xf]
    %v195 = vld [vmem:[#allocation7 + $0x48] sm:$0xff]
    %v196 = vld [vmem:[#allocation7 + $0x50] sm:$0xf]
    %v197 = vld [vmem:[#allocation7 + $0x54] sm:$0xff]
    %v198 = vld [vmem:[#allocation7 + $0x5c] sm:$0xf]
    %v199 = vld [vmem:[#allocation7 + $0x60] sm:$0xff]
    %v200 = vld [vmem:[#allocation7 + $0x68] sm:$0xf]
    %v201 = vld [vmem:[#allocation7 + $0x6c] sm:$0xff]
    %v202 = vld [vmem:[#allocation7 + $0x74] sm:$0xf]
    %v203 = vld [vmem:[#allocation7 + $0x78] sm:$0xff]
    %v204 = vld [vmem:[#allocation7 + $0x80] sm:$0xf]
    %v205 = vld [vmem:[#allocation7 + $0x84] sm:$0xff]
    %v206 = vld [vmem:[#allocation7 + $0x8c] sm:$0xf]
    %v207 = vld [vmem:[#allocation7 + $0x90] sm:$0xff]
    %v208 = vld [vmem:[#allocation7 + $0x98] sm:$0xf]
    %v209 = vld [vmem:[#allocation7 + $0x9c] sm:$0xff]
    %v210 = vld [vmem:[#allocation7 + $0xa4] sm:$0xf]
    %v211 = vld [vmem:[#allocation7 + $0xa8] sm:$0xff]
    %v212 = vld [vmem:[#allocation7 + $0xb0] sm:$0xf]
    %v213 = vld [vmem:[#allocation7 + $0xb4] sm:$0xff]
    %v214 = vld [vmem:[#allocation7 + $0xbc] sm:$0xf]
    %v215 = vld [vmem:[%s3] sm:$0x7]
    %v217 = vlaneseq
    %v218 = vshrl.u32 %v217, 7
    %v219 = vsub.s32 0, %v218
    %v220 = vrot.slane %v215, %v219
    %v221 = vlaneseq
    %v222 = vshrl.u32 %v221, 7
    %v223 = vsub.s32 1, %v222
    %v224 = vrot.slane %v215, %v223
    %v225 = vlaneseq
    %v226 = vshrl.u32 %v225, 7
    %v227 = vsub.s32 2, %v226
    %v228 = vrot.slane %v215, %v227
    %v264 = vunpack.c.l.b16 %v183
    %v265 = vunpack.c.h.b16 %v183
    %v266 = vunpack.c.l.b16 %v184
    %v267 = vunpack.c.l.b16 %v185
    %v268 = vunpack.c.h.b16 %v185
    %v269 = vunpack.c.l.b16 %v186
    %v270 = vunpack.c.l.b16 %v187
    %v271 = vunpack.c.h.b16 %v187
    %v272 = vunpack.c.l.b16 %v188
    %v273 = vunpack.c.l.b16 %v189
    %v274 = vunpack.c.h.b16 %v189
    %v275 = vunpack.c.l.b16 %v190
    %v276 = vunpack.c.l.b16 %v191
    %v277 = vunpack.c.h.b16 %v191
    %v278 = vunpack.c.l.b16 %v192
    %v279 = vunpack.c.l.b16 %v193
    %v280 = vunpack.c.h.b16 %v193
    %v281 = vunpack.c.l.b16 %v194
    %v282 = vunpack.c.l.b16 %v195
    %v283 = vunpack.c.h.b16 %v195
    %v284 = vunpack.c.l.b16 %v196
    %v285 = vunpack.c.l.b16 %v197
    %v286 = vunpack.c.h.b16 %v197
    %v287 = vunpack.c.l.b16 %v198
    %v288 = vunpack.c.l.b16 %v199
    %v289 = vunpack.c.h.b16 %v199
    %v290 = vunpack.c.l.b16 %v200
    %v291 = vunpack.c.l.b16 %v201
    %v292 = vunpack.c.h.b16 %v201
    %v293 = vunpack.c.l.b16 %v202
    %v294 = vunpack.c.l.b16 %v203
    %v295 = vunpack.c.h.b16 %v203
    %v296 = vunpack.c.l.b16 %v204
    %v297 = vunpack.c.l.b16 %v205
    %v298 = vunpack.c.h.b16 %v205
    %v299 = vunpack.c.l.b16 %v206
    %v300 = vunpack.c.l.b16 %v207
    %v301 = vunpack.c.h.b16 %v207
    %v302 = vunpack.c.l.b16 %v208
    %v303 = vunpack.c.l.b16 %v209
    %v304 = vunpack.c.h.b16 %v209
    %v305 = vunpack.c.l.b16 %v210
    %v306 = vunpack.c.l.b16 %v211
    %v307 = vunpack.c.h.b16 %v211
    %v308 = vunpack.c.l.b16 %v212
    %v309 = vunpack.c.l.b16 %v213
    %v310 = vunpack.c.h.b16 %v213
    %v311 = vunpack.c.l.b16 %v214
    %v312 = vpack.c.b16 %v267, %v264
    %v313 = vpack.c.b16 %v268, %v265
    %v314 = vpack.c.b16 %v269, %v266
    %v315 = vpack.c.b16 %v273, %v270
    %v316 = vpack.c.b16 %v274, %v271
    %v317 = vpack.c.b16 %v275, %v272
    %v318 = vpack.c.b16 %v279, %v276
    %v319 = vpack.c.b16 %v280, %v277
    %v320 = vpack.c.b16 %v281, %v278
    %v321 = vpack.c.b16 %v285, %v282
    %v322 = vpack.c.b16 %v286, %v283
    %v323 = vpack.c.b16 %v287, %v284
    %v324 = vpack.c.b16 %v291, %v288
    %v325 = vpack.c.b16 %v292, %v289
    %v326 = vpack.c.b16 %v293, %v290
    %v327 = vpack.c.b16 %v297, %v294
    %v328 = vpack.c.b16 %v298, %v295
    %v329 = vpack.c.b16 %v299, %v296
    %v330 = vpack.c.b16 %v303, %v300
    %v331 = vpack.c.b16 %v304, %v301
    %v332 = vpack.c.b16 %v305, %v302
    %v333 = vpack.c.b16 %v309, %v306
    %v334 = vpack.c.b16 %v310, %v307
    %v335 = vpack.c.b16 %v311, %v308
    %360 = vmatprep.subr.bf16.mxu0 %v313
    %361 = vmatpush1.bf16.msra.mxu0 %v312
    %362 = vmatprep.subr.bf16.mxu0 %v316
    %363 = vmatpush1.bf16.msra.mxu0 %v315
    %364 = vmatprep.subr.bf16.mxu0 %v319
    %365 = vmatpush1.bf16.msra.mxu0 %v318
    %366 = vmatprep.subr.bf16.mxu0 %v322
    %367 = vmatpush1.bf16.msra.mxu0 %v321
    %368 = vmatprep.subr.bf16.mxu0 %v325
    %369 = vmatpush1.bf16.msra.mxu0 %v324
    %370 = vmatprep.subr.bf16.mxu0 %v328
    %371 = vmatpush1.bf16.msra.mxu0 %v327
    %372 = vmatprep.subr.bf16.mxu0 %v331
    %373 = vmatpush1.bf16.msra.mxu0 %v330
    %374 = vmatprep.subr.bf16.mxu0 %v334
    %375 = vmatpush1.bf16.msra.mxu0 %v333
    %376 = vmatprep.subr.bf16.mxu0 0
    %377 = vmatpush1.bf16.msra.mxu0 0
    %378 = vmatprep.subr.bf16.mxu0 0
    %379 = vmatpush1.bf16.msra.mxu0 0
    %380 = vmatprep.subr.bf16.mxu0 0
    %381 = vmatpush1.bf16.msra.mxu0 0
    %382 = vmatprep.subr.bf16.mxu0 0
    %383 = vmatpush1.bf16.msra.mxu0 0
    %384 = vmatprep.subr.bf16.mxu0 0
    %385 = vmatpush1.bf16.msra.mxu0 0
    %386 = vmatprep.subr.bf16.mxu0 0
    %387 = vmatpush1.bf16.msra.mxu0 0
    %388 = vmatprep.subr.bf16.mxu0 0
    %389 = vmatpush1.bf16.msra.mxu0 0
    %390 = vmatprep.subr.bf16.mxu0 0
    %391 = vmatpush1.bf16.msra.mxu0 0
    %392 = vmatprep.mubr.bf16.mxu0 0
    %393 = vmatmul.mubr.bf16.gmra.mrb[0].mxu0 %v182
    %v394 = vpop.f32.mrb[0].mxu0
    %v395 = vadd.f32 %v220, %v394
    %v396 = vpop.f32.mrb[0].mxu0
    %v397 = vadd.f32 %v224, %v396
    %v398 = vpop.f32.mrb[0].mxu0
    %v399 = vadd.f32 %v220, %v398
    %v400 = vpop.f32.mrb[0].mxu0
    %v401 = vadd.f32 %v224, %v400
    %402 = vdwg.mxu0
    %403 = vmatprep.subr.bf16.mxu0 0
    %404 = vmatpush1.bf16.msra.mxu0 %v314
    %405 = vmatprep.subr.bf16.mxu0 0
    %406 = vmatpush1.bf16.msra.mxu0 %v317
    %407 = vmatprep.subr.bf16.mxu0 0
    %408 = vmatpush1.bf16.msra.mxu0 %v320
    %409 = vmatprep.subr.bf16.mxu0 0
    %410 = vmatpush1.bf16.msra.mxu0 %v323
    %411 = vmatprep.subr.bf16.mxu0 0
    %412 = vmatpush1.bf16.msra.mxu0 %v326
    %413 = vmatprep.subr.bf16.mxu0 0
    %414 = vmatpush1.bf16.msra.mxu0 %v329
    %415 = vmatprep.subr.bf16.mxu0 0
    %416 = vmatpush1.bf16.msra.mxu0 %v332
    %417 = vmatprep.subr.bf16.mxu0 0
    %418 = vmatpush1.bf16.msra.mxu0 %v335
    %419 = vmatprep.subr.bf16.mxu0 0
    %420 = vmatpush1.bf16.msra.mxu0 0
    %421 = vmatprep.subr.bf16.mxu0 0
    %422 = vmatpush1.bf16.msra.mxu0 0
    %423 = vmatprep.subr.bf16.mxu0 0
    %424 = vmatpush1.bf16.msra.mxu0 0
    %425 = vmatprep.subr.bf16.mxu0 0
    %426 = vmatpush1.bf16.msra.mxu0 0
    %427 = vmatprep.subr.bf16.mxu0 0
    %428 = vmatpush1.bf16.msra.mxu0 0
    %429 = vmatprep.subr.bf16.mxu0 0
    %430 = vmatpush1.bf16.msra.mxu0 0
    %431 = vmatprep.subr.bf16.mxu0 0
    %432 = vmatpush1.bf16.msra.mxu0 0
    %433 = vmatprep.subr.bf16.mxu0 0
    %434 = vmatpush1.bf16.msra.mxu0 0
    %435 = vmatprep.mubr.bf16.mxu0 0
    %436 = vmatmul.mubr.bf16.gmra.mrb[0].mxu0 %v182
    %v437 = vpop.f32.mrb[0].mxu0
    %v438 = vadd.f32 %v228, %v437
    %v439 = vpop.f32.mrb[0].mxu0
    %v440 = vpop.f32.mrb[0].mxu0
    %v441 = vadd.f32 %v228, %v440
    %v442 = vpop.f32.mrb[0].mxu0
    %443 = vdwg.mxu0
    %446 = vrot.lane.b32.xlu0 %v395, 96
    %v447 = vpop.permute.xlu0 %446
    %448 = vrot.lane.b32.xlu0 %v399, 96
    %v449 = vpop.permute.xlu0 %448
    %452 = vrot.lane.b32.xlu0 %v395, 64
    %v453 = vpop.permute.xlu0 %452
    %454 = vrot.lane.b32.xlu0 %v399, 64
    %v455 = vpop.permute.xlu0 %454
    %458 = vrot.lane.b32.xlu0 %v395, 32
    %v459 = vpop.permute.xlu0 %458
    %460 = vrot.lane.b32.xlu0 %v399, 32
    %v461 = vpop.permute.xlu0 %460
    %v464 = vcombine.low %v395, %v453
    %v465 = vcombine.high %v395, %v453
    %v467 = vunpack.c.l.s4 1983009808
    %v468 = vunpack.c.0.s8 %v467
    %v469 = vlaneseq
    %v470 = vshrl.u32 %v469, 7
    %v471 = vsub.s32 %v468, %v470
    %v472 = vrot.slane %v464, %v471
    %v474 = vunpack.c.l.s4 1983009808
    %v475 = vunpack.c.0.s8 %v474
    %v476 = vlaneseq
    %v477 = vshrl.u32 %v476, 7
    %v478 = vsub.s32 %v475, %v477
    %v479 = vrot.slane %v465, %v478
    %v480 = vcombine.low %v447, %v459
    %v481 = vcombine.high %v447, %v459
    %v483 = vunpack.c.l.s4 1983009808
    %v484 = vunpack.c.0.s8 %v483
    %v485 = vlaneseq
    %v486 = vshrl.u32 %v485, 7
    %v487 = vsub.s32 %v484, %v486
    %v488 = vrot.slane %v480, %v487
    %v490 = vunpack.c.l.s4 1983009808
    %v491 = vunpack.c.0.s8 %v490
    %v492 = vlaneseq
    %v493 = vshrl.u32 %v492, 7
    %v494 = vsub.s32 %v491, %v493
    %v495 = vrot.slane %v481, %v494
    %v496 = vcombine.low %v472, %v488
    %v497 = vcombine.high %v472, %v488
    %v499 = vunpack.c.l.s4 1934713408
    %v500 = vunpack.c.0.s8 %v499
    %v501 = vlaneseq
    %v502 = vshrl.u32 %v501, 7
    %v503 = vsub.s32 %v500, %v502
    %v504 = vrot.slane %v496, %v503
    %v506 = vunpack.c.l.s4 1934713408
    %v507 = vunpack.c.0.s8 %v506
    %v508 = vlaneseq
    %v509 = vshrl.u32 %v508, 7
    %v510 = vsub.s32 %v507, %v509
    %v511 = vrot.slane %v497, %v510
    %v512 = vcombine.low %v479, %v495
    %v513 = vcombine.high %v479, %v495
    %v515 = vunpack.c.l.s4 1934713408
    %v516 = vunpack.c.0.s8 %v515
    %v517 = vlaneseq
    %v518 = vshrl.u32 %v517, 7
    %v519 = vsub.s32 %v516, %v518
    %v520 = vrot.slane %v512, %v519
    %v522 = vunpack.c.l.s4 1934713408
    %v523 = vunpack.c.0.s8 %v522
    %v524 = vlaneseq
    %v525 = vshrl.u32 %v524, 7
    %v526 = vsub.s32 %v523, %v525
    %v527 = vrot.slane %v513, %v526
    %v528 = vcombine.high %v504, 0.0
    %v529 = vcombine.high %v511, 0.0
    %v530 = vcombine.high %v520, 0.0
    %v531 = vcombine.high %v527, 0.0
    %v532 = vcombine.low %v399, %v455
    %v533 = vcombine.high %v399, %v455
    %v535 = vunpack.c.l.s4 1983009808
    %v536 = vunpack.c.0.s8 %v535
    %v537 = vlaneseq
    %v538 = vshrl.u32 %v537, 7
    %v539 = vsub.s32 %v536, %v538
    %v540 = vrot.slane %v532, %v539
    %v542 = vunpack.c.l.s4 1983009808
    %v543 = vunpack.c.0.s8 %v542
    %v544 = vlaneseq
    %v545 = vshrl.u32 %v544, 7
    %v546 = vsub.s32 %v543, %v545
    %v547 = vrot.slane %v533, %v546
    %v548 = vcombine.low %v449, %v461
    %v549 = vcombine.high %v449, %v461
    %v551 = vunpack.c.l.s4 1983009808
    %v552 = vunpack.c.0.s8 %v551
    %v553 = vlaneseq
    %v554 = vshrl.u32 %v553, 7
    %v555 = vsub.s32 %v552, %v554
    %v556 = vrot.slane %v548, %v555
    %v558 = vunpack.c.l.s4 1983009808
    %v559 = vunpack.c.0.s8 %v558
    %v560 = vlaneseq
    %v561 = vshrl.u32 %v560, 7
    %v562 = vsub.s32 %v559, %v561
    %v563 = vrot.slane %v549, %v562
    %v564 = vcombine.low %v540, %v556
    %v565 = vcombine.high %v540, %v556
    %v567 = vunpack.c.l.s4 1934713408
    %v568 = vunpack.c.0.s8 %v567
    %v569 = vlaneseq
    %v570 = vshrl.u32 %v569, 7
    %v571 = vsub.s32 %v568, %v570
    %v572 = vrot.slane %v564, %v571
    %v574 = vunpack.c.l.s4 1934713408
    %v575 = vunpack.c.0.s8 %v574
    %v576 = vlaneseq
    %v577 = vshrl.u32 %v576, 7
    %v578 = vsub.s32 %v575, %v577
    %v579 = vrot.slane %v565, %v578
    %v580 = vcombine.low %v547, %v563
    %v581 = vcombine.high %v547, %v563
    %v583 = vunpack.c.l.s4 1934713408
    %v584 = vunpack.c.0.s8 %v583
    %v585 = vlaneseq
    %v586 = vshrl.u32 %v585, 7
    %v587 = vsub.s32 %v584, %v586
    %v588 = vrot.slane %v580, %v587
    %v590 = vunpack.c.l.s4 1934713408
    %v591 = vunpack.c.0.s8 %v590
    %v592 = vlaneseq
    %v593 = vshrl.u32 %v592, 7
    %v594 = vsub.s32 %v591, %v593
    %v595 = vrot.slane %v581, %v594
    %v596 = vcombine.high %v572, 0.0
    %v597 = vcombine.high %v579, 0.0
    %v598 = vcombine.high %v588, 0.0
    %v599 = vcombine.high %v595, 0.0
    %v600 = vcombine.low %v504, %v511
    %v602 = vunpack.c.l.s4 1983009808
    %v603 = vunpack.c.0.s8 %v602
    %v604 = vlaneseq
    %v605 = vshrl.u32 %v604, 7
    %v606 = vsub.s32 %v603, %v605
    %v607 = vrot.slane %v600, %v606
    %v608 = vcombine.low %v528, %v529
    %v610 = vunpack.c.l.s4 1983009808
    %v611 = vunpack.c.0.s8 %v610
    %v612 = vlaneseq
    %v613 = vshrl.u32 %v612, 7
    %v614 = vsub.s32 %v611, %v613
    %v615 = vrot.slane %v608, %v614
    %v616 = vcombine.low %v520, %v527
    %v618 = vunpack.c.l.s4 1983009808
    %v619 = vunpack.c.0.s8 %v618
    %v620 = vlaneseq
    %v621 = vshrl.u32 %v620, 7
    %v622 = vsub.s32 %v619, %v621
    %v623 = vrot.slane %v616, %v622
    %v624 = vcombine.low %v530, %v531
    %v626 = vunpack.c.l.s4 1983009808
    %v627 = vunpack.c.0.s8 %v626
    %v628 = vlaneseq
    %v629 = vshrl.u32 %v628, 7
    %v630 = vsub.s32 %v627, %v629
    %v631 = vrot.slane %v624, %v630
    %v632 = vcombine.low %v607, %v615
    %v633 = vcombine.high %v607, %v615
    %v635 = vunpack.c.l.s4 1934713408
    %v636 = vunpack.c.0.s8 %v635
    %v637 = vlaneseq
    %v638 = vshrl.u32 %v637, 7
    %v639 = vsub.s32 %v636, %v638
    %v640 = vrot.slane %v632, %v639
    %v642 = vunpack.c.l.s4 1934713408
    %v643 = vunpack.c.0.s8 %v642
    %v644 = vlaneseq
    %v645 = vshrl.u32 %v644, 7
    %v646 = vsub.s32 %v643, %v645
    %v647 = vrot.slane %v633, %v646
    %v648 = vcombine.low %v623, %v631
    %v649 = vcombine.high %v623, %v631
    %v651 = vunpack.c.l.s4 1934713408
    %v652 = vunpack.c.0.s8 %v651
    %v653 = vlaneseq
    %v654 = vshrl.u32 %v653, 7
    %v655 = vsub.s32 %v652, %v654
    %v656 = vrot.slane %v648, %v655
    %v658 = vunpack.c.l.s4 1934713408
    %v659 = vunpack.c.0.s8 %v658
    %v660 = vlaneseq
    %v661 = vshrl.u32 %v660, 7
    %v662 = vsub.s32 %v659, %v661
    %v663 = vrot.slane %v649, %v662
    %v664 = vcombine.low %v640, %v656
    %v665 = vcombine.high %v640, %v656
    %v666 = vcombine.low %v647, %v663
    %v667 = vcombine.high %v647, %v663
    %v668 = vcombine.low %v572, %v579
    %v670 = vunpack.c.l.s4 1983009808
    %v671 = vunpack.c.0.s8 %v670
    %v672 = vlaneseq
    %v673 = vshrl.u32 %v672, 7
    %v674 = vsub.s32 %v671, %v673
    %v675 = vrot.slane %v668, %v674
    %v676 = vcombine.low %v596, %v597
    %v678 = vunpack.c.l.s4 1983009808
    %v679 = vunpack.c.0.s8 %v678
    %v680 = vlaneseq
    %v681 = vshrl.u32 %v680, 7
    %v682 = vsub.s32 %v679, %v681
    %v683 = vrot.slane %v676, %v682
    %v684 = vcombine.low %v588, %v595
    %v686 = vunpack.c.l.s4 1983009808
    %v687 = vunpack.c.0.s8 %v686
    %v688 = vlaneseq
    %v689 = vshrl.u32 %v688, 7
    %v690 = vsub.s32 %v687, %v689
    %v691 = vrot.slane %v684, %v690
    %v692 = vcombine.low %v598, %v599
    %v694 = vunpack.c.l.s4 1983009808
    %v695 = vunpack.c.0.s8 %v694
    %v696 = vlaneseq
    %v697 = vshrl.u32 %v696, 7
    %v698 = vsub.s32 %v695, %v697
    %v699 = vrot.slane %v692, %v698
    %v700 = vcombine.low %v675, %v683
    %v701 = vcombine.high %v675, %v683
    %v703 = vunpack.c.l.s4 1934713408
    %v704 = vunpack.c.0.s8 %v703
    %v705 = vlaneseq
    %v706 = vshrl.u32 %v705, 7
    %v707 = vsub.s32 %v704, %v706
    %v708 = vrot.slane %v700, %v707
    %v710 = vunpack.c.l.s4 1934713408
    %v711 = vunpack.c.0.s8 %v710
    %v712 = vlaneseq
    %v713 = vshrl.u32 %v712, 7
    %v714 = vsub.s32 %v711, %v713
    %v715 = vrot.slane %v701, %v714
    %v716 = vcombine.low %v691, %v699
    %v717 = vcombine.high %v691, %v699
    %v719 = vunpack.c.l.s4 1934713408
    %v720 = vunpack.c.0.s8 %v719
    %v721 = vlaneseq
    %v722 = vshrl.u32 %v721, 7
    %v723 = vsub.s32 %v720, %v722
    %v724 = vrot.slane %v716, %v723
    %v726 = vunpack.c.l.s4 1934713408
    %v727 = vunpack.c.0.s8 %v726
    %v728 = vlaneseq
    %v729 = vshrl.u32 %v728, 7
    %v730 = vsub.s32 %v727, %v729
    %v731 = vrot.slane %v717, %v730
    %v732 = vcombine.low %v708, %v724
    %v733 = vcombine.high %v708, %v724
    %v734 = vcombine.low %v715, %v731
    %v735 = vcombine.high %v715, %v731
    %v736 = vpack.c.bf16 %v664, %v664
    %v737 = vpack.c.bf16 %v665, %v665
    %v738 = vpack.c.bf16 %v666, %v666
    %v739 = vpack.c.bf16 %v667, %v667
    %v740 = vpack.c.bf16 %v732, %v732
    %v741 = vpack.c.bf16 %v733, %v733
    %v742 = vpack.c.bf16 %v734, %v734
    %v743 = vpack.c.bf16 %v735, %v735
    %746 = vrot.lane.b32.xlu0 %v397, 96
    %v747 = vpop.permute.xlu0 %746
    %748 = vrot.lane.b32.xlu0 %v401, 96
    %v749 = vpop.permute.xlu0 %748
    %752 = vrot.lane.b32.xlu0 %v397, 64
    %v753 = vpop.permute.xlu0 %752
    %754 = vrot.lane.b32.xlu0 %v401, 64
    %v755 = vpop.permute.xlu0 %754
    %758 = vrot.lane.b32.xlu0 %v397, 32
    %v759 = vpop.permute.xlu0 %758
    %760 = vrot.lane.b32.xlu0 %v401, 32
    %v761 = vpop.permute.xlu0 %760
    %v764 = vcombine.low %v397, %v753
    %v765 = vcombine.high %v397, %v753
    %v767 = vunpack.c.l.s4 1983009808
    %v768 = vunpack.c.0.s8 %v767
    %v769 = vlaneseq
    %v770 = vshrl.u32 %v769, 7
    %v771 = vsub.s32 %v768, %v770
    %v772 = vrot.slane %v764, %v771
    %v774 = vunpack.c.l.s4 1983009808
    %v775 = vunpack.c.0.s8 %v774
    %v776 = vlaneseq
    %v777 = vshrl.u32 %v776, 7
    %v778 = vsub.s32 %v775, %v777
    %v779 = vrot.slane %v765, %v778
    %v780 = vcombine.low %v747, %v759
    %v781 = vcombine.high %v747, %v759
    %v783 = vunpack.c.l.s4 1983009808
    %v784 = vunpack.c.0.s8 %v783
    %v785 = vlaneseq
    %v786 = vshrl.u32 %v785, 7
    %v787 = vsub.s32 %v784, %v786
    %v788 = vrot.slane %v780, %v787
    %v790 = vunpack.c.l.s4 1983009808
    %v791 = vunpack.c.0.s8 %v790
    %v792 = vlaneseq
    %v793 = vshrl.u32 %v792, 7
    %v794 = vsub.s32 %v791, %v793
    %v795 = vrot.slane %v781, %v794
    %v796 = vcombine.low %v772, %v788
    %v797 = vcombine.high %v772, %v788
    %v799 = vunpack.c.l.s4 1934713408
    %v800 = vunpack.c.0.s8 %v799
    %v801 = vlaneseq
    %v802 = vshrl.u32 %v801, 7
    %v803 = vsub.s32 %v800, %v802
    %v804 = vrot.slane %v796, %v803
    %v806 = vunpack.c.l.s4 1934713408
    %v807 = vunpack.c.0.s8 %v806
    %v808 = vlaneseq
    %v809 = vshrl.u32 %v808, 7
    %v810 = vsub.s32 %v807, %v809
    %v811 = vrot.slane %v797, %v810
    %v812 = vcombine.low %v779, %v795
    %v813 = vcombine.high %v779, %v795
    %v815 = vunpack.c.l.s4 1934713408
    %v816 = vunpack.c.0.s8 %v815
    %v817 = vlaneseq
    %v818 = vshrl.u32 %v817, 7
    %v819 = vsub.s32 %v816, %v818
    %v820 = vrot.slane %v812, %v819
    %v822 = vunpack.c.l.s4 1934713408
    %v823 = vunpack.c.0.s8 %v822
    %v824 = vlaneseq
    %v825 = vshrl.u32 %v824, 7
    %v826 = vsub.s32 %v823, %v825
    %v827 = vrot.slane %v813, %v826
    %v828 = vcombine.high %v804, 0.0
    %v829 = vcombine.high %v811, 0.0
    %v830 = vcombine.high %v820, 0.0
    %v831 = vcombine.high %v827, 0.0
    %v832 = vcombine.low %v401, %v755
    %v833 = vcombine.high %v401, %v755
    %v835 = vunpack.c.l.s4 1983009808
    %v836 = vunpack.c.0.s8 %v835
    %v837 = vlaneseq
    %v838 = vshrl.u32 %v837, 7
    %v839 = vsub.s32 %v836, %v838
    %v840 = vrot.slane %v832, %v839
    %v842 = vunpack.c.l.s4 1983009808
    %v843 = vunpack.c.0.s8 %v842
    %v844 = vlaneseq
    %v845 = vshrl.u32 %v844, 7
    %v846 = vsub.s32 %v843, %v845
    %v847 = vrot.slane %v833, %v846
    %v848 = vcombine.low %v749, %v761
    %v849 = vcombine.high %v749, %v761
    %v851 = vunpack.c.l.s4 1983009808
    %v852 = vunpack.c.0.s8 %v851
    %v853 = vlaneseq
    %v854 = vshrl.u32 %v853, 7
    %v855 = vsub.s32 %v852, %v854
    %v856 = vrot.slane %v848, %v855
    %v858 = vunpack.c.l.s4 1983009808
    %v859 = vunpack.c.0.s8 %v858
    %v860 = vlaneseq
    %v861 = vshrl.u32 %v860, 7
    %v862 = vsub.s32 %v859, %v861
    %v863 = vrot.slane %v849, %v862
    %v864 = vcombine.low %v840, %v856
    %v865 = vcombine.high %v840, %v856
    %v867 = vunpack.c.l.s4 1934713408
    %v868 = vunpack.c.0.s8 %v867
    %v869 = vlaneseq
    %v870 = vshrl.u32 %v869, 7
    %v871 = vsub.s32 %v868, %v870
    %v872 = vrot.slane %v864, %v871
    %v874 = vunpack.c.l.s4 1934713408
    %v875 = vunpack.c.0.s8 %v874
    %v876 = vlaneseq
    %v877 = vshrl.u32 %v876, 7
    %v878 = vsub.s32 %v875, %v877
    %v879 = vrot.slane %v865, %v878
    %v880 = vcombine.low %v847, %v863
    %v881 = vcombine.high %v847, %v863
    %v883 = vunpack.c.l.s4 1934713408
    %v884 = vunpack.c.0.s8 %v883
    %v885 = vlaneseq
    %v886 = vshrl.u32 %v885, 7
    %v887 = vsub.s32 %v884, %v886
    %v888 = vrot.slane %v880, %v887
    %v890 = vunpack.c.l.s4 1934713408
    %v891 = vunpack.c.0.s8 %v890
    %v892 = vlaneseq
    %v893 = vshrl.u32 %v892, 7
    %v894 = vsub.s32 %v891, %v893
    %v895 = vrot.slane %v881, %v894
    %v896 = vcombine.high %v872, 0.0
    %v897 = vcombine.high %v879, 0.0
    %v898 = vcombine.high %v888, 0.0
    %v899 = vcombine.high %v895, 0.0
    %v900 = vcombine.low %v804, %v811
    %v902 = vunpack.c.l.s4 1983009808
    %v903 = vunpack.c.0.s8 %v902
    %v904 = vlaneseq
    %v905 = vshrl.u32 %v904, 7
    %v906 = vsub.s32 %v903, %v905
    %v907 = vrot.slane %v900, %v906
    %v908 = vcombine.low %v828, %v829
    %v910 = vunpack.c.l.s4 1983009808
    %v911 = vunpack.c.0.s8 %v910
    %v912 = vlaneseq
    %v913 = vshrl.u32 %v912, 7
    %v914 = vsub.s32 %v911, %v913
    %v915 = vrot.slane %v908, %v914
    %v916 = vcombine.low %v820, %v827
    %v918 = vunpack.c.l.s4 1983009808
    %v919 = vunpack.c.0.s8 %v918
    %v920 = vlaneseq
    %v921 = vshrl.u32 %v920, 7
    %v922 = vsub.s32 %v919, %v921
    %v923 = vrot.slane %v916, %v922
    %v924 = vcombine.low %v830, %v831
    %v926 = vunpack.c.l.s4 1983009808
    %v927 = vunpack.c.0.s8 %v926
    %v928 = vlaneseq
    %v929 = vshrl.u32 %v928, 7
    %v930 = vsub.s32 %v927, %v929
    %v931 = vrot.slane %v924, %v930
    %v932 = vcombine.low %v907, %v915
    %v933 = vcombine.high %v907, %v915
    %v935 = vunpack.c.l.s4 1934713408
    %v936 = vunpack.c.0.s8 %v935
    %v937 = vlaneseq
    %v938 = vshrl.u32 %v937, 7
    %v939 = vsub.s32 %v936, %v938
    %v940 = vrot.slane %v932, %v939
    %v942 = vunpack.c.l.s4 1934713408
    %v943 = vunpack.c.0.s8 %v942
    %v944 = vlaneseq
    %v945 = vshrl.u32 %v944, 7
    %v946 = vsub.s32 %v943, %v945
    %v947 = vrot.slane %v933, %v946
    %v948 = vcombine.low %v923, %v931
    %v949 = vcombine.high %v923, %v931
    %v951 = vunpack.c.l.s4 1934713408
    %v952 = vunpack.c.0.s8 %v951
    %v953 = vlaneseq
    %v954 = vshrl.u32 %v953, 7
    %v955 = vsub.s32 %v952, %v954
    %v956 = vrot.slane %v948, %v955
    %v958 = vunpack.c.l.s4 1934713408
    %v959 = vunpack.c.0.s8 %v958
    %v960 = vlaneseq
    %v961 = vshrl.u32 %v960, 7
    %v962 = vsub.s32 %v959, %v961
    %v963 = vrot.slane %v949, %v962
    %v964 = vcombine.low %v940, %v956
    %v965 = vcombine.high %v940, %v956
    %v966 = vcombine.low %v947, %v963
    %v967 = vcombine.high %v947, %v963
    %v968 = vcombine.low %v872, %v879
    %v970 = vunpack.c.l.s4 1983009808
    %v971 = vunpack.c.0.s8 %v970
    %v972 = vlaneseq
    %v973 = vshrl.u32 %v972, 7
    %v974 = vsub.s32 %v971, %v973
    %v975 = vrot.slane %v968, %v974
    %v976 = vcombine.low %v896, %v897
    %v978 = vunpack.c.l.s4 1983009808
    %v979 = vunpack.c.0.s8 %v978
    %v980 = vlaneseq
    %v981 = vshrl.u32 %v980, 7
    %v982 = vsub.s32 %v979, %v981
    %v983 = vrot.slane %v976, %v982
    %v984 = vcombine.low %v888, %v895
    %v986 = vunpack.c.l.s4 1983009808
    %v987 = vunpack.c.0.s8 %v986
    %v988 = vlaneseq
    %v989 = vshrl.u32 %v988, 7
    %v990 = vsub.s32 %v987, %v989
    %v991 = vrot.slane %v984, %v990
    %v992 = vcombine.low %v898, %v899
    %v994 = vunpack.c.l.s4 1983009808
    %v995 = vunpack.c.0.s8 %v994
    %v996 = vlaneseq
    %v997 = vshrl.u32 %v996, 7
    %v998 = vsub.s32 %v995, %v997
    %v999 = vrot.slane %v992, %v998
    %v1000 = vcombine.low %v975, %v983
    %v1001 = vcombine.high %v975, %v983
    %v1003 = vunpack.c.l.s4 1934713408
    %v1004 = vunpack.c.0.s8 %v1003
    %v1005 = vlaneseq
    %v1006 = vshrl.u32 %v1005, 7
    %v1007 = vsub.s32 %v1004, %v1006
    %v1008 = vrot.slane %v1000, %v1007
    %v1010 = vunpack.c.l.s4 1934713408
    %v1011 = vunpack.c.0.s8 %v1010
    %v1012 = vlaneseq
    %v1013 = vshrl.u32 %v1012, 7
    %v1014 = vsub.s32 %v1011, %v1013
    %v1015 = vrot.slane %v1001, %v1014
    %v1016 = vcombine.low %v991, %v999
    %v1017 = vcombine.high %v991, %v999
    %v1019 = vunpack.c.l.s4 1934713408
    %v1020 = vunpack.c.0.s8 %v1019
    %v1021 = vlaneseq
    %v1022 = vshrl.u32 %v1021, 7
    %v1023 = vsub.s32 %v1020, %v1022
    %v1024 = vrot.slane %v1016, %v1023
    %v1026 = vunpack.c.l.s4 1934713408
    %v1027 = vunpack.c.0.s8 %v1026
    %v1028 = vlaneseq
    %v1029 = vshrl.u32 %v1028, 7
    %v1030 = vsub.s32 %v1027, %v1029
    %v1031 = vrot.slane %v1017, %v1030
    %v1032 = vcombine.low %v1008, %v1024
    %v1033 = vcombine.high %v1008, %v1024
    %v1034 = vcombine.low %v1015, %v1031
    %v1035 = vcombine.high %v1015, %v1031
    %v1036 = vpack.c.bf16 %v964, %v964
    %v1037 = vpack.c.bf16 %v965, %v965
    %v1038 = vpack.c.bf16 %v966, %v966
    %v1039 = vpack.c.bf16 %v967, %v967
    %v1040 = vpack.c.bf16 %v1032, %v1032
    %v1041 = vpack.c.bf16 %v1033, %v1033
    %v1042 = vpack.c.bf16 %v1034, %v1034
    %v1043 = vpack.c.bf16 %v1035, %v1035
    %1046 = vrot.lane.b32.xlu0 %v438, 96
    %v1047 = vpop.permute.xlu0 %1046
    %1048 = vrot.lane.b32.xlu0 %v441, 96
    %v1049 = vpop.permute.xlu0 %1048
    %1052 = vrot.lane.b32.xlu0 %v438, 64
    %v1053 = vpop.permute.xlu0 %1052
    %1054 = vrot.lane.b32.xlu0 %v441, 64
    %v1055 = vpop.permute.xlu0 %1054
    %1058 = vrot.lane.b32.xlu0 %v438, 32
    %v1059 = vpop.permute.xlu0 %1058
    %1060 = vrot.lane.b32.xlu0 %v441, 32
    %v1061 = vpop.permute.xlu0 %1060
    %v1064 = vcombine.low %v438, %v1053
    %v1065 = vcombine.high %v438, %v1053
    %v1067 = vunpack.c.l.s4 1983009808
    %v1068 = vunpack.c.0.s8 %v1067
    %v1069 = vlaneseq
    %v1070 = vshrl.u32 %v1069, 7
    %v1071 = vsub.s32 %v1068, %v1070
    %v1072 = vrot.slane %v1064, %v1071
    %v1074 = vunpack.c.l.s4 1983009808
    %v1075 = vunpack.c.0.s8 %v1074
    %v1076 = vlaneseq
    %v1077 = vshrl.u32 %v1076, 7
    %v1078 = vsub.s32 %v1075, %v1077
    %v1079 = vrot.slane %v1065, %v1078
    %v1080 = vcombine.low %v1047, %v1059
    %v1081 = vcombine.high %v1047, %v1059
    %v1083 = vunpack.c.l.s4 1983009808
    %v1084 = vunpack.c.0.s8 %v1083
    %v1085 = vlaneseq
    %v1086 = vshrl.u32 %v1085, 7
    %v1087 = vsub.s32 %v1084, %v1086
    %v1088 = vrot.slane %v1080, %v1087
    %v1090 = vunpack.c.l.s4 1983009808
    %v1091 = vunpack.c.0.s8 %v1090
    %v1092 = vlaneseq
    %v1093 = vshrl.u32 %v1092, 7
    %v1094 = vsub.s32 %v1091, %v1093
    %v1095 = vrot.slane %v1081, %v1094
    %v1096 = vcombine.low %v1072, %v1088
    %v1097 = vcombine.high %v1072, %v1088
    %v1099 = vunpack.c.l.s4 1934713408
    %v1100 = vunpack.c.0.s8 %v1099
    %v1101 = vlaneseq
    %v1102 = vshrl.u32 %v1101, 7
    %v1103 = vsub.s32 %v1100, %v1102
    %v1104 = vrot.slane %v1096, %v1103
    %v1106 = vunpack.c.l.s4 1934713408
    %v1107 = vunpack.c.0.s8 %v1106
    %v1108 = vlaneseq
    %v1109 = vshrl.u32 %v1108, 7
    %v1110 = vsub.s32 %v1107, %v1109
    %v1111 = vrot.slane %v1097, %v1110
    %v1112 = vcombine.low %v1079, %v1095
    %v1113 = vcombine.high %v1079, %v1095
    %v1115 = vunpack.c.l.s4 1934713408
    %v1116 = vunpack.c.0.s8 %v1115
    %v1117 = vlaneseq
    %v1118 = vshrl.u32 %v1117, 7
    %v1119 = vsub.s32 %v1116, %v1118
    %v1120 = vrot.slane %v1112, %v1119
    %v1122 = vunpack.c.l.s4 1934713408
    %v1123 = vunpack.c.0.s8 %v1122
    %v1124 = vlaneseq
    %v1125 = vshrl.u32 %v1124, 7
    %v1126 = vsub.s32 %v1123, %v1125
    %v1127 = vrot.slane %v1113, %v1126
    %v1128 = vcombine.high %v1104, 0.0
    %v1129 = vcombine.high %v1111, 0.0
    %v1130 = vcombine.high %v1120, 0.0
    %v1131 = vcombine.high %v1127, 0.0
    %v1132 = vcombine.low %v441, %v1055
    %v1133 = vcombine.high %v441, %v1055
    %v1135 = vunpack.c.l.s4 1983009808
    %v1136 = vunpack.c.0.s8 %v1135
    %v1137 = vlaneseq
    %v1138 = vshrl.u32 %v1137, 7
    %v1139 = vsub.s32 %v1136, %v1138
    %v1140 = vrot.slane %v1132, %v1139
    %v1142 = vunpack.c.l.s4 1983009808
    %v1143 = vunpack.c.0.s8 %v1142
    %v1144 = vlaneseq
    %v1145 = vshrl.u32 %v1144, 7
    %v1146 = vsub.s32 %v1143, %v1145
    %v1147 = vrot.slane %v1133, %v1146
    %v1148 = vcombine.low %v1049, %v1061
    %v1149 = vcombine.high %v1049, %v1061
    %v1151 = vunpack.c.l.s4 1983009808
    %v1152 = vunpack.c.0.s8 %v1151
    %v1153 = vlaneseq
    %v1154 = vshrl.u32 %v1153, 7
    %v1155 = vsub.s32 %v1152, %v1154
    %v1156 = vrot.slane %v1148, %v1155
    %v1158 = vunpack.c.l.s4 1983009808
    %v1159 = vunpack.c.0.s8 %v1158
    %v1160 = vlaneseq
    %v1161 = vshrl.u32 %v1160, 7
    %v1162 = vsub.s32 %v1159, %v1161
    %v1163 = vrot.slane %v1149, %v1162
    %v1164 = vcombine.low %v1140, %v1156
    %v1165 = vcombine.high %v1140, %v1156
    %v1167 = vunpack.c.l.s4 1934713408
    %v1168 = vunpack.c.0.s8 %v1167
    %v1169 = vlaneseq
    %v1170 = vshrl.u32 %v1169, 7
    %v1171 = vsub.s32 %v1168, %v1170
    %v1172 = vrot.slane %v1164, %v1171
    %v1174 = vunpack.c.l.s4 1934713408
    %v1175 = vunpack.c.0.s8 %v1174
    %v1176 = vlaneseq
    %v1177 = vshrl.u32 %v1176, 7
    %v1178 = vsub.s32 %v1175, %v1177
    %v1179 = vrot.slane %v1165, %v1178
    %v1180 = vcombine.low %v1147, %v1163
    %v1181 = vcombine.high %v1147, %v1163
    %v1183 = vunpack.c.l.s4 1934713408
    %v1184 = vunpack.c.0.s8 %v1183
    %v1185 = vlaneseq
    %v1186 = vshrl.u32 %v1185, 7
    %v1187 = vsub.s32 %v1184, %v1186
    %v1188 = vrot.slane %v1180, %v1187
    %v1190 = vunpack.c.l.s4 1934713408
    %v1191 = vunpack.c.0.s8 %v1190
    %v1192 = vlaneseq
    %v1193 = vshrl.u32 %v1192, 7
    %v1194 = vsub.s32 %v1191, %v1193
    %v1195 = vrot.slane %v1181, %v1194
    %v1196 = vcombine.high %v1172, 0.0
    %v1197 = vcombine.high %v1179, 0.0
    %v1198 = vcombine.high %v1188, 0.0
    %v1199 = vcombine.high %v1195, 0.0
    %v1200 = vcombine.low %v1104, %v1111
    %v1202 = vunpack.c.l.s4 1983009808
    %v1203 = vunpack.c.0.s8 %v1202
    %v1204 = vlaneseq
    %v1205 = vshrl.u32 %v1204, 7
    %v1206 = vsub.s32 %v1203, %v1205
    %v1207 = vrot.slane %v1200, %v1206
    %v1208 = vcombine.low %v1128, %v1129
    %v1210 = vunpack.c.l.s4 1983009808
    %v1211 = vunpack.c.0.s8 %v1210
    %v1212 = vlaneseq
    %v1213 = vshrl.u32 %v1212, 7
    %v1214 = vsub.s32 %v1211, %v1213
    %v1215 = vrot.slane %v1208, %v1214
    %v1216 = vcombine.low %v1120, %v1127
    %v1218 = vunpack.c.l.s4 1983009808
    %v1219 = vunpack.c.0.s8 %v1218
    %v1220 = vlaneseq
    %v1221 = vshrl.u32 %v1220, 7
    %v1222 = vsub.s32 %v1219, %v1221
    %v1223 = vrot.slane %v1216, %v1222
    %v1224 = vcombine.low %v1130, %v1131
    %v1226 = vunpack.c.l.s4 1983009808
    %v1227 = vunpack.c.0.s8 %v1226
    %v1228 = vlaneseq
    %v1229 = vshrl.u32 %v1228, 7
    %v1230 = vsub.s32 %v1227, %v1229
    %v1231 = vrot.slane %v1224, %v1230
    %v1232 = vcombine.low %v1207, %v1215
    %v1233 = vcombine.high %v1207, %v1215
    %v1235 = vunpack.c.l.s4 1934713408
    %v1236 = vunpack.c.0.s8 %v1235
    %v1237 = vlaneseq
    %v1238 = vshrl.u32 %v1237, 7
    %v1239 = vsub.s32 %v1236, %v1238
    %v1240 = vrot.slane %v1232, %v1239
    %v1242 = vunpack.c.l.s4 1934713408
    %v1243 = vunpack.c.0.s8 %v1242
    %v1244 = vlaneseq
    %v1245 = vshrl.u32 %v1244, 7
    %v1246 = vsub.s32 %v1243, %v1245
    %v1247 = vrot.slane %v1233, %v1246
    %v1248 = vcombine.low %v1223, %v1231
    %v1249 = vcombine.high %v1223, %v1231
    %v1251 = vunpack.c.l.s4 1934713408
    %v1252 = vunpack.c.0.s8 %v1251
    %v1253 = vlaneseq
    %v1254 = vshrl.u32 %v1253, 7
    %v1255 = vsub.s32 %v1252, %v1254
    %v1256 = vrot.slane %v1248, %v1255
    %v1258 = vunpack.c.l.s4 1934713408
    %v1259 = vunpack.c.0.s8 %v1258
    %v1260 = vlaneseq
    %v1261 = vshrl.u32 %v1260, 7
    %v1262 = vsub.s32 %v1259, %v1261
    %v1263 = vrot.slane %v1249, %v1262
    %v1264 = vcombine.low %v1240, %v1256
    %v1265 = vcombine.high %v1240, %v1256
    %v1266 = vcombine.low %v1247, %v1263
    %v1267 = vcombine.high %v1247, %v1263
    %v1268 = vcombine.low %v1172, %v1179
    %v1270 = vunpack.c.l.s4 1983009808
    %v1271 = vunpack.c.0.s8 %v1270
    %v1272 = vlaneseq
    %v1273 = vshrl.u32 %v1272, 7
    %v1274 = vsub.s32 %v1271, %v1273
    %v1275 = vrot.slane %v1268, %v1274
    %v1276 = vcombine.low %v1196, %v1197
    %v1278 = vunpack.c.l.s4 1983009808
    %v1279 = vunpack.c.0.s8 %v1278
    %v1280 = vlaneseq
    %v1281 = vshrl.u32 %v1280, 7
    %v1282 = vsub.s32 %v1279, %v1281
    %v1283 = vrot.slane %v1276, %v1282
    %v1284 = vcombine.low %v1188, %v1195
    %v1286 = vunpack.c.l.s4 1983009808
    %v1287 = vunpack.c.0.s8 %v1286
    %v1288 = vlaneseq
    %v1289 = vshrl.u32 %v1288, 7
    %v1290 = vsub.s32 %v1287, %v1289
    %v1291 = vrot.slane %v1284, %v1290
    %v1292 = vcombine.low %v1198, %v1199
    %v1294 = vunpack.c.l.s4 1983009808
    %v1295 = vunpack.c.0.s8 %v1294
    %v1296 = vlaneseq
    %v1297 = vshrl.u32 %v1296, 7
    %v1298 = vsub.s32 %v1295, %v1297
    %v1299 = vrot.slane %v1292, %v1298
    %v1300 = vcombine.low %v1275, %v1283
    %v1301 = vcombine.high %v1275, %v1283
    %v1303 = vunpack.c.l.s4 1934713408
    %v1304 = vunpack.c.0.s8 %v1303
    %v1305 = vlaneseq
    %v1306 = vshrl.u32 %v1305, 7
    %v1307 = vsub.s32 %v1304, %v1306
    %v1308 = vrot.slane %v1300, %v1307
    %v1310 = vunpack.c.l.s4 1934713408
    %v1311 = vunpack.c.0.s8 %v1310
    %v1312 = vlaneseq
    %v1313 = vshrl.u32 %v1312, 7
    %v1314 = vsub.s32 %v1311, %v1313
    %v1315 = vrot.slane %v1301, %v1314
    %v1316 = vcombine.low %v1291, %v1299
    %v1317 = vcombine.high %v1291, %v1299
    %v1319 = vunpack.c.l.s4 1934713408
    %v1320 = vunpack.c.0.s8 %v1319
    %v1321 = vlaneseq
    %v1322 = vshrl.u32 %v1321, 7
    %v1323 = vsub.s32 %v1320, %v1322
    %v1324 = vrot.slane %v1316, %v1323
    %v1326 = vunpack.c.l.s4 1934713408
    %v1327 = vunpack.c.0.s8 %v1326
    %v1328 = vlaneseq
    %v1329 = vshrl.u32 %v1328, 7
    %v1330 = vsub.s32 %v1327, %v1329
    %v1331 = vrot.slane %v1317, %v1330
    %v1332 = vcombine.low %v1308, %v1324
    %v1333 = vcombine.high %v1308, %v1324
    %v1334 = vcombine.low %v1315, %v1331
    %v1335 = vcombine.high %v1315, %v1331
    %v1336 = vpack.c.bf16 %v1264, %v1264
    %v1337 = vpack.c.bf16 %v1265, %v1265
    %v1338 = vpack.c.bf16 %v1266, %v1266
    %v1339 = vpack.c.bf16 %v1267, %v1267
    %v1340 = vpack.c.bf16 %v1332, %v1332
    %v1341 = vpack.c.bf16 %v1333, %v1333
    %v1342 = vpack.c.bf16 %v1334, %v1334
    %v1343 = vpack.c.bf16 %v1335, %v1335
    %v1344 = vlaneseq
    %v1345 = vshrl.u32 %v1344, 7
    %v1346 = vsub.s32 0, %v1345
    %v1347 = vrot.slane %v148, %v1346
    %v1348 = vlaneseq
    %v1349 = vshrl.u32 %v1348, 7
    %v1350 = vsub.s32 0, %v1349
    %v1351 = vrot.slane %v155, %v1350
    %v1352 = vlaneseq
    %v1353 = vshrl.u32 %v1352, 7
    %v1354 = vsub.s32 0, %v1353
    %v1355 = vrot.slane %v156, %v1354
    %v1356 = vlaneseq
    %v1357 = vshrl.u32 %v1356, 7
    %v1358 = vsub.s32 0, %v1357
    %v1359 = vrot.slane %v157, %v1358
    %v1360 = vlaneseq
    %v1361 = vshrl.u32 %v1360, 7
    %v1362 = vsub.s32 0, %v1361
    %v1363 = vrot.slane %v172, %v1362
    %v1364 = vlaneseq
    %v1365 = vshrl.u32 %v1364, 7
    %v1366 = vsub.s32 0, %v1365
    %v1367 = vrot.slane %v179, %v1366
    %v1368 = vlaneseq
    %v1369 = vshrl.u32 %v1368, 7
    %v1370 = vsub.s32 0, %v1369
    %v1371 = vrot.slane %v180, %v1370
    %v1372 = vlaneseq
    %v1373 = vshrl.u32 %v1372, 7
    %v1374 = vsub.s32 0, %v1373
    %v1375 = vrot.slane %v181, %v1374
    %vm1384 = vcmask 261120
    %v1386 = vsel %vm1384, %v736, 0
    %v1389 = vsel %vm1384, %v1036, 0
    %1391 = vmatprep.subr.bf16.mxu0 0
    %1392 = vmatpush1.bf16.xpose.msra.mxu0 %v1389
    %1393 = vmatprep.subr.bf16.mxu0 0
    %1394 = vmatpush1.bf16.xpose.msra.mxu0 0
    %1395 = vmatprep.subr.bf16.mxu0 0
    %1396 = vmatpush1.bf16.xpose.msra.mxu0 0
    %1397 = vmatprep.subr.bf16.mxu0 0
    %1398 = vmatpush1.bf16.xpose.msra.mxu0 0
    %1399 = vmatprep.subr.bf16.mxu0 0
    %1400 = vmatpush1.bf16.xpose.msra.mxu0 0
    %1401 = vmatprep.subr.bf16.mxu0 0
    %1402 = vmatpush1.bf16.xpose.msra.mxu0 0
    %1403 = vmatprep.subr.bf16.mxu0 0
    %1404 = vmatpush1.bf16.xpose.msra.mxu0 0
    %1405 = vmatprep.subr.bf16.mxu0 0
    %1406 = vmatpush1.bf16.xpose.msra.mxu0 0
    %1407 = vmatprep.subr.bf16.mxu0 0
    %1408 = vmatpush1.bf16.xpose.msra.mxu0 0
    %1409 = vmatprep.subr.bf16.mxu0 0
    %1410 = vmatpush1.bf16.xpose.msra.mxu0 0
    %1411 = vmatprep.subr.bf16.mxu0 0
    %1412 = vmatpush1.bf16.xpose.msra.mxu0 0
    %1413 = vmatprep.subr.bf16.mxu0 0
    %1414 = vmatpush1.bf16.xpose.msra.mxu0 0
    %1415 = vmatprep.subr.bf16.mxu0 0
    %1416 = vmatpush1.bf16.xpose.msra.mxu0 0
    %1417 = vmatprep.subr.bf16.mxu0 0
    %1418 = vmatpush1.bf16.xpose.msra.mxu0 0
    %1419 = vmatprep.subr.bf16.mxu0 0
    %1420 = vmatpush1.bf16.xpose.msra.mxu0 0
    %1421 = vmatprep.subr.bf16.mxu0 0
    %1422 = vmatpush1.bf16.xpose.msra.mxu0 0
    %1423 = vmatprep.mubr.bf16.mxu0 0
    %1424 = vmatmul.mubr.bf16.gmra.mrb[0].mxu0 %v1386
    %v1425 = vpop.f32.mrb[0].mxu0
    %v1426 = vadd.f32 %v1347, %v1425
    %v1427 = vpop.f32.mrb[0].mxu0
    %v1428 = vpop.f32.mrb[0].mxu0
    %v1429 = vpop.f32.mrb[0].mxu0
    %1430 = vdwg.mxu0
    %v1432 = vsel %vm1384, %v737, 0
    %v1435 = vsel %vm1384, %v1037, 0
    %1437 = vmatprep.subr.bf16.mxu0 0
    %1438 = vmatpush1.bf16.xpose.msra.mxu0 %v1435
    %1439 = vmatprep.subr.bf16.mxu0 0
    %1440 = vmatpush1.bf16.xpose.msra.mxu0 0
    %1441 = vmatprep.subr.bf16.mxu0 0
    %1442 = vmatpush1.bf16.xpose.msra.mxu0 0
    %1443 = vmatprep.subr.bf16.mxu0 0
    %1444 = vmatpush1.bf16.xpose.msra.mxu0 0
    %1445 = vmatprep.subr.bf16.mxu0 0
    %1446 = vmatpush1.bf16.xpose.msra.mxu0 0
    %1447 = vmatprep.subr.bf16.mxu0 0
    %1448 = vmatpush1.bf16.xpose.msra.mxu0 0
    %1449 = vmatprep.subr.bf16.mxu0 0
    %1450 = vmatpush1.bf16.xpose.msra.mxu0 0
    %1451 = vmatprep.subr.bf16.mxu0 0
    %1452 = vmatpush1.bf16.xpose.msra.mxu0 0
    %1453 = vmatprep.subr.bf16.mxu0 0
    %1454 = vmatpush1.bf16.xpose.msra.mxu0 0
    %1455 = vmatprep.subr.bf16.mxu0 0
    %1456 = vmatpush1.bf16.xpose.msra.mxu0 0
    %1457 = vmatprep.subr.bf16.mxu0 0
    %1458 = vmatpush1.bf16.xpose.msra.mxu0 0
    %1459 = vmatprep.subr.bf16.mxu0 0
    %1460 = vmatpush1.bf16.xpose.msra.mxu0 0
    %1461 = vmatprep.subr.bf16.mxu0 0
    %1462 = vmatpush1.bf16.xpose.msra.mxu0 0
    %1463 = vmatprep.subr.bf16.mxu0 0
    %1464 = vmatpush1.bf16.xpose.msra.mxu0 0
    %1465 = vmatprep.subr.bf16.mxu0 0
    %1466 = vmatpush1.bf16.xpose.msra.mxu0 0
    %1467 = vmatprep.subr.bf16.mxu0 0
    %1468 = vmatpush1.bf16.xpose.msra.mxu0 0
    %1469 = vmatprep.mubr.bf16.mxu0 0
    %1470 = vmatmul.mubr.bf16.gmra.mrb[0].mxu0 %v1432
    %v1471 = vpop.f32.mrb[0].mxu0
    %v1472 = vadd.f32 %v1351, %v1471
    %v1473 = vpop.f32.mrb[0].mxu0
    %v1474 = vpop.f32.mrb[0].mxu0
    %v1475 = vpop.f32.mrb[0].mxu0
    %1476 = vdwg.mxu0
    %v1478 = vsel %vm1384, %v738, 0
    %v1481 = vsel %vm1384, %v1038, 0
    %1483 = vmatprep.subr.bf16.mxu0 0
    %1484 = vmatpush1.bf16.xpose.msra.mxu0 %v1481
    %1485 = vmatprep.subr.bf16.mxu0 0
    %1486 = vmatpush1.bf16.xpose.msra.mxu0 0
    %1487 = vmatprep.subr.bf16.mxu0 0
    %1488 = vmatpush1.bf16.xpose.msra.mxu0 0
    %1489 = vmatprep.subr.bf16.mxu0 0
    %1490 = vmatpush1.bf16.xpose.msra.mxu0 0
    %1491 = vmatprep.subr.bf16.mxu0 0
    %1492 = vmatpush1.bf16.xpose.msra.mxu0 0
    %1493 = vmatprep.subr.bf16.mxu0 0
    %1494 = vmatpush1.bf16.xpose.msra.mxu0 0
    %1495 = vmatprep.subr.bf16.mxu0 0
    %1496 = vmatpush1.bf16.xpose.msra.mxu0 0
    %1497 = vmatprep.subr.bf16.mxu0 0
    %1498 = vmatpush1.bf16.xpose.msra.mxu0 0
    %1499 = vmatprep.subr.bf16.mxu0 0
    %1500 = vmatpush1.bf16.xpose.msra.mxu0 0
    %1501 = vmatprep.subr.bf16.mxu0 0
    %1502 = vmatpush1.bf16.xpose.msra.mxu0 0
    %1503 = vmatprep.subr.bf16.mxu0 0
    %1504 = vmatpush1.bf16.xpose.msra.mxu0 0
    %1505 = vmatprep.subr.bf16.mxu0 0
    %1506 = vmatpush1.bf16.xpose.msra.mxu0 0
    %1507 = vmatprep.subr.bf16.mxu0 0
    %1508 = vmatpush1.bf16.xpose.msra.mxu0 0
    %1509 = vmatprep.subr.bf16.mxu0 0
    %1510 = vmatpush1.bf16.xpose.msra.mxu0 0
    %1511 = vmatprep.subr.bf16.mxu0 0
    %1512 = vmatpush1.bf16.xpose.msra.mxu0 0
    %1513 = vmatprep.subr.bf16.mxu0 0
    %1514 = vmatpush1.bf16.xpose.msra.mxu0 0
    %1515 = vmatprep.mubr.bf16.mxu0 0
    %1516 = vmatmul.mubr.bf16.gmra.mrb[0].mxu0 %v1478
    %v1517 = vpop.f32.mrb[0].mxu0
    %v1518 = vadd.f32 %v1355, %v1517
    %v1519 = vpop.f32.mrb[0].mxu0
    %v1520 = vpop.f32.mrb[0].mxu0
    %v1521 = vpop.f32.mrb[0].mxu0
    %1522 = vdwg.mxu0
    %v1524 = vsel %vm1384, %v739, 0
    %v1527 = vsel %vm1384, %v1039, 0
    %1529 = vmatprep.subr.bf16.mxu0 0
    %1530 = vmatpush1.bf16.xpose.msra.mxu0 %v1527
    %1531 = vmatprep.subr.bf16.mxu0 0
    %1532 = vmatpush1.bf16.xpose.msra.mxu0 0
    %1533 = vmatprep.subr.bf16.mxu0 0
    %1534 = vmatpush1.bf16.xpose.msra.mxu0 0
    %1535 = vmatprep.subr.bf16.mxu0 0
    %1536 = vmatpush1.bf16.xpose.msra.mxu0 0
    %1537 = vmatprep.subr.bf16.mxu0 0
    %1538 = vmatpush1.bf16.xpose.msra.mxu0 0
    %1539 = vmatprep.subr.bf16.mxu0 0
    %1540 = vmatpush1.bf16.xpose.msra.mxu0 0
    %1541 = vmatprep.subr.bf16.mxu0 0
    %1542 = vmatpush1.bf16.xpose.msra.mxu0 0
    %1543 = vmatprep.subr.bf16.mxu0 0
    %1544 = vmatpush1.bf16.xpose.msra.mxu0 0
    %1545 = vmatprep.subr.bf16.mxu0 0
    %1546 = vmatpush1.bf16.xpose.msra.mxu0 0
    %1547 = vmatprep.subr.bf16.mxu0 0
    %1548 = vmatpush1.bf16.xpose.msra.mxu0 0
    %1549 = vmatprep.subr.bf16.mxu0 0
    %1550 = vmatpush1.bf16.xpose.msra.mxu0 0
    %1551 = vmatprep.subr.bf16.mxu0 0
    %1552 = vmatpush1.bf16.xpose.msra.mxu0 0
    %1553 = vmatprep.subr.bf16.mxu0 0
    %1554 = vmatpush1.bf16.xpose.msra.mxu0 0
    %1555 = vmatprep.subr.bf16.mxu0 0
    %1556 = vmatpush1.bf16.xpose.msra.mxu0 0
    %1557 = vmatprep.subr.bf16.mxu0 0
    %1558 = vmatpush1.bf16.xpose.msra.mxu0 0
    %1559 = vmatprep.subr.bf16.mxu0 0
    %1560 = vmatpush1.bf16.xpose.msra.mxu0 0
    %1561 = vmatprep.mubr.bf16.mxu0 0
    %1562 = vmatmul.mubr.bf16.gmra.mrb[0].mxu0 %v1524
    %v1563 = vpop.f32.mrb[0].mxu0
    %v1564 = vadd.f32 %v1359, %v1563
    %v1565 = vpop.f32.mrb[0].mxu0
    %v1566 = vpop.f32.mrb[0].mxu0
    %v1567 = vpop.f32.mrb[0].mxu0
    %1568 = vdwg.mxu0
    %v1570 = vsel %vm1384, %v740, 0
    %v1573 = vsel %vm1384, %v1040, 0
    %1575 = vmatprep.subr.bf16.mxu0 0
    %1576 = vmatpush1.bf16.xpose.msra.mxu0 %v1573
    %1577 = vmatprep.subr.bf16.mxu0 0
    %1578 = vmatpush1.bf16.xpose.msra.mxu0 0
    %1579 = vmatprep.subr.bf16.mxu0 0
    %1580 = vmatpush1.bf16.xpose.msra.mxu0 0
    %1581 = vmatprep.subr.bf16.mxu0 0
    %1582 = vmatpush1.bf16.xpose.msra.mxu0 0
    %1583 = vmatprep.subr.bf16.mxu0 0
    %1584 = vmatpush1.bf16.xpose.msra.mxu0 0
    %1585 = vmatprep.subr.bf16.mxu0 0
    %1586 = vmatpush1.bf16.xpose.msra.mxu0 0
    %1587 = vmatprep.subr.bf16.mxu0 0
    %1588 = vmatpush1.bf16.xpose.msra.mxu0 0
    %1589 = vmatprep.subr.bf16.mxu0 0
    %1590 = vmatpush1.bf16.xpose.msra.mxu0 0
    %1591 = vmatprep.subr.bf16.mxu0 0
    %1592 = vmatpush1.bf16.xpose.msra.mxu0 0
    %1593 = vmatprep.subr.bf16.mxu0 0
    %1594 = vmatpush1.bf16.xpose.msra.mxu0 0
    %1595 = vmatprep.subr.bf16.mxu0 0
    %1596 = vmatpush1.bf16.xpose.msra.mxu0 0
    %1597 = vmatprep.subr.bf16.mxu0 0
    %1598 = vmatpush1.bf16.xpose.msra.mxu0 0
    %1599 = vmatprep.subr.bf16.mxu0 0
    %1600 = vmatpush1.bf16.xpose.msra.mxu0 0
    %1601 = vmatprep.subr.bf16.mxu0 0
    %1602 = vmatpush1.bf16.xpose.msra.mxu0 0
    %1603 = vmatprep.subr.bf16.mxu0 0
    %1604 = vmatpush1.bf16.xpose.msra.mxu0 0
    %1605 = vmatprep.subr.bf16.mxu0 0
    %1606 = vmatpush1.bf16.xpose.msra.mxu0 0
    %1607 = vmatprep.mubr.bf16.mxu0 0
    %1608 = vmatmul.mubr.bf16.gmra.mrb[0].mxu0 %v1570
    %v1609 = vpop.f32.mrb[0].mxu0
    %v1610 = vadd.f32 %v1363, %v1609
    %v1611 = vpop.f32.mrb[0].mxu0
    %v1612 = vpop.f32.mrb[0].mxu0
    %v1613 = vpop.f32.mrb[0].mxu0
    %1614 = vdwg.mxu0
    %v1616 = vsel %vm1384, %v741, 0
    %v1619 = vsel %vm1384, %v1041, 0
    %1621 = vmatprep.subr.bf16.mxu0 0
    %1622 = vmatpush1.bf16.xpose.msra.mxu0 %v1619
    %1623 = vmatprep.subr.bf16.mxu0 0
    %1624 = vmatpush1.bf16.xpose.msra.mxu0 0
    %1625 = vmatprep.subr.bf16.mxu0 0
    %1626 = vmatpush1.bf16.xpose.msra.mxu0 0
    %1627 = vmatprep.subr.bf16.mxu0 0
    %1628 = vmatpush1.bf16.xpose.msra.mxu0 0
    %1629 = vmatprep.subr.bf16.mxu0 0
    %1630 = vmatpush1.bf16.xpose.msra.mxu0 0
    %1631 = vmatprep.subr.bf16.mxu0 0
    %1632 = vmatpush1.bf16.xpose.msra.mxu0 0
    %1633 = vmatprep.subr.bf16.mxu0 0
    %1634 = vmatpush1.bf16.xpose.msra.mxu0 0
    %1635 = vmatprep.subr.bf16.mxu0 0
    %1636 = vmatpush1.bf16.xpose.msra.mxu0 0
    %1637 = vmatprep.subr.bf16.mxu0 0
    %1638 = vmatpush1.bf16.xpose.msra.mxu0 0
    %1639 = vmatprep.subr.bf16.mxu0 0
    %1640 = vmatpush1.bf16.xpose.msra.mxu0 0
    %1641 = vmatprep.subr.bf16.mxu0 0
    %1642 = vmatpush1.bf16.xpose.msra.mxu0 0
    %1643 = vmatprep.subr.bf16.mxu0 0
    %1644 = vmatpush1.bf16.xpose.msra.mxu0 0
    %1645 = vmatprep.subr.bf16.mxu0 0
    %1646 = vmatpush1.bf16.xpose.msra.mxu0 0
    %1647 = vmatprep.subr.bf16.mxu0 0
    %1648 = vmatpush1.bf16.xpose.msra.mxu0 0
    %1649 = vmatprep.subr.bf16.mxu0 0
    %1650 = vmatpush1.bf16.xpose.msra.mxu0 0
    %1651 = vmatprep.subr.bf16.mxu0 0
    %1652 = vmatpush1.bf16.xpose.msra.mxu0 0
    %1653 = vmatprep.mubr.bf16.mxu0 0
    %1654 = vmatmul.mubr.bf16.gmra.mrb[0].mxu0 %v1616
    %v1655 = vpop.f32.mrb[0].mxu0
    %v1656 = vadd.f32 %v1367, %v1655
    %v1657 = vpop.f32.mrb[0].mxu0
    %v1658 = vpop.f32.mrb[0].mxu0
    %v1659 = vpop.f32.mrb[0].mxu0
    %1660 = vdwg.mxu0
    %v1662 = vsel %vm1384, %v742, 0
    %v1665 = vsel %vm1384, %v1042, 0
    %1667 = vmatprep.subr.bf16.mxu0 0
    %1668 = vmatpush1.bf16.xpose.msra.mxu0 %v1665
    %1669 = vmatprep.subr.bf16.mxu0 0
    %1670 = vmatpush1.bf16.xpose.msra.mxu0 0
    %1671 = vmatprep.subr.bf16.mxu0 0
    %1672 = vmatpush1.bf16.xpose.msra.mxu0 0
    %1673 = vmatprep.subr.bf16.mxu0 0
    %1674 = vmatpush1.bf16.xpose.msra.mxu0 0
    %1675 = vmatprep.subr.bf16.mxu0 0
    %1676 = vmatpush1.bf16.xpose.msra.mxu0 0
    %1677 = vmatprep.subr.bf16.mxu0 0
    %1678 = vmatpush1.bf16.xpose.msra.mxu0 0
    %1679 = vmatprep.subr.bf16.mxu0 0
    %1680 = vmatpush1.bf16.xpose.msra.mxu0 0
    %1681 = vmatprep.subr.bf16.mxu0 0
    %1682 = vmatpush1.bf16.xpose.msra.mxu0 0
    %1683 = vmatprep.subr.bf16.mxu0 0
    %1684 = vmatpush1.bf16.xpose.msra.mxu0 0
    %1685 = vmatprep.subr.bf16.mxu0 0
    %1686 = vmatpush1.bf16.xpose.msra.mxu0 0
    %1687 = vmatprep.subr.bf16.mxu0 0
    %1688 = vmatpush1.bf16.xpose.msra.mxu0 0
    %1689 = vmatprep.subr.bf16.mxu0 0
    %1690 = vmatpush1.bf16.xpose.msra.mxu0 0
    %1691 = vmatprep.subr.bf16.mxu0 0
    %1692 = vmatpush1.bf16.xpose.msra.mxu0 0
    %1693 = vmatprep.subr.bf16.mxu0 0
    %1694 = vmatpush1.bf16.xpose.msra.mxu0 0
    %1695 = vmatprep.subr.bf16.mxu0 0
    %1696 = vmatpush1.bf16.xpose.msra.mxu0 0
    %1697 = vmatprep.subr.bf16.mxu0 0
    %1698 = vmatpush1.bf16.xpose.msra.mxu0 0
    %1699 = vmatprep.mubr.bf16.mxu0 0
    %1700 = vmatmul.mubr.bf16.gmra.mrb[0].mxu0 %v1662
    %v1701 = vpop.f32.mrb[0].mxu0
    %v1702 = vadd.f32 %v1371, %v1701
    %v1703 = vpop.f32.mrb[0].mxu0
    %v1704 = vpop.f32.mrb[0].mxu0
    %v1705 = vpop.f32.mrb[0].mxu0
    %1706 = vdwg.mxu0
    %v1708 = vsel %vm1384, %v743, 0
    %v1711 = vsel %vm1384, %v1043, 0
    %1713 = vmatprep.subr.bf16.mxu0 0
    %1714 = vmatpush1.bf16.xpose.msra.mxu0 %v1711
    %1715 = vmatprep.subr.bf16.mxu0 0
    %1716 = vmatpush1.bf16.xpose.msra.mxu0 0
    %1717 = vmatprep.subr.bf16.mxu0 0
    %1718 = vmatpush1.bf16.xpose.msra.mxu0 0
    %1719 = vmatprep.subr.bf16.mxu0 0
    %1720 = vmatpush1.bf16.xpose.msra.mxu0 0
    %1721 = vmatprep.subr.bf16.mxu0 0
    %1722 = vmatpush1.bf16.xpose.msra.mxu0 0
    %1723 = vmatprep.subr.bf16.mxu0 0
    %1724 = vmatpush1.bf16.xpose.msra.mxu0 0
    %1725 = vmatprep.subr.bf16.mxu0 0
    %1726 = vmatpush1.bf16.xpose.msra.mxu0 0
    %1727 = vmatprep.subr.bf16.mxu0 0
    %1728 = vmatpush1.bf16.xpose.msra.mxu0 0
    %1729 = vmatprep.subr.bf16.mxu0 0
    %1730 = vmatpush1.bf16.xpose.msra.mxu0 0
    %1731 = vmatprep.subr.bf16.mxu0 0
    %1732 = vmatpush1.bf16.xpose.msra.mxu0 0
    %1733 = vmatprep.subr.bf16.mxu0 0
    %1734 = vmatpush1.bf16.xpose.msra.mxu0 0
    %1735 = vmatprep.subr.bf16.mxu0 0
    %1736 = vmatpush1.bf16.xpose.msra.mxu0 0
    %1737 = vmatprep.subr.bf16.mxu0 0
    %1738 = vmatpush1.bf16.xpose.msra.mxu0 0
    %1739 = vmatprep.subr.bf16.mxu0 0
    %1740 = vmatpush1.bf16.xpose.msra.mxu0 0
    %1741 = vmatprep.subr.bf16.mxu0 0
    %1742 = vmatpush1.bf16.xpose.msra.mxu0 0
    %1743 = vmatprep.subr.bf16.mxu0 0
    %1744 = vmatpush1.bf16.xpose.msra.mxu0 0
    %1745 = vmatprep.mubr.bf16.mxu0 0
    %1746 = vmatmul.mubr.bf16.gmra.mrb[0].mxu0 %v1708
    %v1747 = vpop.f32.mrb[0].mxu0
    %v1748 = vadd.f32 %v1375, %v1747
    %v1749 = vpop.f32.mrb[0].mxu0
    %v1750 = vpop.f32.mrb[0].mxu0
    %v1751 = vpop.f32.mrb[0].mxu0
    %1752 = vdwg.mxu0
    %vm1753 = vcmask 64512
    %v1754 = vsel %vm1753, %v1426, -inf
    %1755 = vmax.xlane.f32.xlu0 %v1754
    %v1756 = vpop.xlane.xlu0 %1755
    %v1757 = vsel %vm1753, %v1472, -inf
    %1758 = vmax.xlane.f32.xlu0 %v1757
    %v1759 = vpop.xlane.xlu0 %1758
    %v1760 = vsel %vm1753, %v1518, -inf
    %1761 = vmax.xlane.f32.xlu0 %v1760
    %v1762 = vpop.xlane.xlu0 %1761
    %v1763 = vsel %vm1753, %v1564, -inf
    %1764 = vmax.xlane.f32.xlu0 %v1763
    %v1765 = vpop.xlane.xlu0 %1764
    %v1766 = vsel %vm1753, %v1610, -inf
    %1767 = vmax.xlane.f32.xlu0 %v1766
    %v1768 = vpop.xlane.xlu0 %1767
    %v1769 = vsel %vm1753, %v1656, -inf
    %1770 = vmax.xlane.f32.xlu0 %v1769
    %v1771 = vpop.xlane.xlu0 %1770
    %v1772 = vsel %vm1753, %v1702, -inf
    %1773 = vmax.xlane.f32.xlu0 %v1772
    %v1774 = vpop.xlane.xlu0 %1773
    %v1775 = vsel %vm1753, %v1748, -inf
    %1776 = vmax.xlane.f32.xlu0 %v1775
    %v1777 = vpop.xlane.xlu0 %1776
    %v1778 = vsub.f32 %v1426, %v1756
    %v1779 = vsub.f32 %v1472, %v1759
    %v1780 = vsub.f32 %v1518, %v1762
    %v1781 = vsub.f32 %v1564, %v1765
    %v1782 = vsub.f32 %v1610, %v1768
    %v1783 = vsub.f32 %v1656, %v1771
    %v1784 = vsub.f32 %v1702, %v1774
    %v1785 = vsub.f32 %v1748, %v1777
    %v1786 = vmul.f32 %v1778, 1.442695
    %v1787 = vpow.pop %v1786
    %v1788 = vmul.f32 %v1779, 1.442695
    %v1789 = vpow.pop %v1788
    %v1790 = vmul.f32 %v1780, 1.442695
    %v1791 = vpow.pop %v1790
    %v1792 = vmul.f32 %v1781, 1.442695
    %v1793 = vpow.pop %v1792
    %v1794 = vmul.f32 %v1782, 1.442695
    %v1795 = vpow.pop %v1794
    %v1796 = vmul.f32 %v1783, 1.442695
    %v1797 = vpow.pop %v1796
    %v1798 = vmul.f32 %v1784, 1.442695
    %v1799 = vpow.pop %v1798
    %v1800 = vmul.f32 %v1785, 1.442695
    %v1801 = vpow.pop %v1800
    %v1802 = vsel %vm1753, %v1787, 0.0
    %1803 = vadd.xlane.f32.xlu0 %v1802
    %v1804 = vpop.xlane.xlu0 %1803
    %v1805 = vsel %vm1753, %v1789, 0.0
    %1806 = vadd.xlane.f32.xlu0 %v1805
    %v1807 = vpop.xlane.xlu0 %1806
    %v1808 = vsel %vm1753, %v1791, 0.0
    %1809 = vadd.xlane.f32.xlu0 %v1808
    %v1810 = vpop.xlane.xlu0 %1809
    %v1811 = vsel %vm1753, %v1793, 0.0
    %1812 = vadd.xlane.f32.xlu0 %v1811
    %v1813 = vpop.xlane.xlu0 %1812
    %v1814 = vsel %vm1753, %v1795, 0.0
    %1815 = vadd.xlane.f32.xlu0 %v1814
    %v1816 = vpop.xlane.xlu0 %1815
    %v1817 = vsel %vm1753, %v1797, 0.0
    %1818 = vadd.xlane.f32.xlu0 %v1817
    %v1819 = vpop.xlane.xlu0 %1818
    %v1820 = vsel %vm1753, %v1799, 0.0
    %1821 = vadd.xlane.f32.xlu0 %v1820
    %v1822 = vpop.xlane.xlu0 %1821
    %v1823 = vsel %vm1753, %v1801, 0.0
    %1824 = vadd.xlane.f32.xlu0 %v1823
    %v1825 = vpop.xlane.xlu0 %1824
    %v1826 = vrcp.pop %v1804
    %v1827 = vmul.f32 %v1787, %v1826
    %v1828 = vrcp.pop %v1807
    %v1829 = vmul.f32 %v1789, %v1828
    %v1830 = vrcp.pop %v1810
    %v1831 = vmul.f32 %v1791, %v1830
    %v1832 = vrcp.pop %v1813
    %v1833 = vmul.f32 %v1793, %v1832
    %v1834 = vrcp.pop %v1816
    %v1835 = vmul.f32 %v1795, %v1834
    %v1836 = vrcp.pop %v1819
    %v1837 = vmul.f32 %v1797, %v1836
    %v1838 = vrcp.pop %v1822
    %v1839 = vmul.f32 %v1799, %v1838
    %v1840 = vrcp.pop %v1825
    %v1841 = vmul.f32 %v1801, %v1840
    %v1842 = vpack.c.bf16 %v1827, %v1827
    %v1843 = vpack.c.bf16 %v1829, %v1829
    %v1844 = vpack.c.bf16 %v1831, %v1831
    %v1845 = vpack.c.bf16 %v1833, %v1833
    %v1846 = vpack.c.bf16 %v1835, %v1835
    %v1847 = vpack.c.bf16 %v1837, %v1837
    %v1848 = vpack.c.bf16 %v1839, %v1839
    %v1849 = vpack.c.bf16 %v1841, %v1841
    %v1851 = vsel %vm1753, %v1842, 0
    %vm1853 = vcmask 1043456
    %v1855 = vsel %vm1853, %v1336, 0
    %1857 = vmatprep.subr.bf16.mxu0 0
    %1858 = vmatpush1.bf16.msra.mxu0 %v1855
    %1859 = vmatprep.subr.bf16.mxu0 0
    %1860 = vmatpush1.bf16.msra.mxu0 0
    %1861 = vmatprep.subr.bf16.mxu0 0
    %1862 = vmatpush1.bf16.msra.mxu0 0
    %1863 = vmatprep.subr.bf16.mxu0 0
    %1864 = vmatpush1.bf16.msra.mxu0 0
    %1865 = vmatprep.subr.bf16.mxu0 0
    %1866 = vmatpush1.bf16.msra.mxu0 0
    %1867 = vmatprep.subr.bf16.mxu0 0
    %1868 = vmatpush1.bf16.msra.mxu0 0
    %1869 = vmatprep.subr.bf16.mxu0 0
    %1870 = vmatpush1.bf16.msra.mxu0 0
    %1871 = vmatprep.subr.bf16.mxu0 0
    %1872 = vmatpush1.bf16.msra.mxu0 0
    %1873 = vmatprep.subr.bf16.mxu0 0
    %1874 = vmatpush1.bf16.msra.mxu0 0
    %1875 = vmatprep.subr.bf16.mxu0 0
    %1876 = vmatpush1.bf16.msra.mxu0 0
    %1877 = vmatprep.subr.bf16.mxu0 0
    %1878 = vmatpush1.bf16.msra.mxu0 0
    %1879 = vmatprep.subr.bf16.mxu0 0
    %1880 = vmatpush1.bf16.msra.mxu0 0
    %1881 = vmatprep.subr.bf16.mxu0 0
    %1882 = vmatpush1.bf16.msra.mxu0 0
    %1883 = vmatprep.subr.bf16.mxu0 0
    %1884 = vmatpush1.bf16.msra.mxu0 0
    %1885 = vmatprep.subr.bf16.mxu0 0
    %1886 = vmatpush1.bf16.msra.mxu0 0
    %1887 = vmatprep.subr.bf16.mxu0 0
    %1888 = vmatpush1.bf16.msra.mxu0 0
    %1889 = vmatprep.mubr.bf16.mxu0 0
    %1890 = vmatmul.mubr.bf16.gmra.mrb[0].mxu0 %v1851
    %v1891 = vpop.f32.mrb[0].mxu0
    %v1892 = vadd.f32 0.0, %v1891
    %v1893 = vpop.f32.mrb[0].mxu0
    %v1894 = vpop.f32.mrb[0].mxu0
    %v1895 = vpop.f32.mrb[0].mxu0
    %1896 = vdwg.mxu0
    %v1898 = vsel %vm1753, %v1843, 0
    %v1901 = vsel %vm1853, %v1337, 0
    %1903 = vmatprep.subr.bf16.mxu0 0
    %1904 = vmatpush1.bf16.msra.mxu0 %v1901
    %1905 = vmatprep.subr.bf16.mxu0 0
    %1906 = vmatpush1.bf16.msra.mxu0 0
    %1907 = vmatprep.subr.bf16.mxu0 0
    %1908 = vmatpush1.bf16.msra.mxu0 0
    %1909 = vmatprep.subr.bf16.mxu0 0
    %1910 = vmatpush1.bf16.msra.mxu0 0
    %1911 = vmatprep.subr.bf16.mxu0 0
    %1912 = vmatpush1.bf16.msra.mxu0 0
    %1913 = vmatprep.subr.bf16.mxu0 0
    %1914 = vmatpush1.bf16.msra.mxu0 0
    %1915 = vmatprep.subr.bf16.mxu0 0
    %1916 = vmatpush1.bf16.msra.mxu0 0
    %1917 = vmatprep.subr.bf16.mxu0 0
    %1918 = vmatpush1.bf16.msra.mxu0 0
    %1919 = vmatprep.subr.bf16.mxu0 0
    %1920 = vmatpush1.bf16.msra.mxu0 0
    %1921 = vmatprep.subr.bf16.mxu0 0
    %1922 = vmatpush1.bf16.msra.mxu0 0
    %1923 = vmatprep.subr.bf16.mxu0 0
    %1924 = vmatpush1.bf16.msra.mxu0 0
    %1925 = vmatprep.subr.bf16.mxu0 0
    %1926 = vmatpush1.bf16.msra.mxu0 0
    %1927 = vmatprep.subr.bf16.mxu0 0
    %1928 = vmatpush1.bf16.msra.mxu0 0
    %1929 = vmatprep.subr.bf16.mxu0 0
    %1930 = vmatpush1.bf16.msra.mxu0 0
    %1931 = vmatprep.subr.bf16.mxu0 0
    %1932 = vmatpush1.bf16.msra.mxu0 0
    %1933 = vmatprep.subr.bf16.mxu0 0
    %1934 = vmatpush1.bf16.msra.mxu0 0
    %1935 = vmatprep.mubr.bf16.mxu0 0
    %1936 = vmatmul.mubr.bf16.gmra.mrb[0].mxu0 %v1898
    %v1937 = vpop.f32.mrb[0].mxu0
    %v1938 = vadd.f32 0.0, %v1937
    %v1939 = vpop.f32.mrb[0].mxu0
    %v1940 = vpop.f32.mrb[0].mxu0
    %v1941 = vpop.f32.mrb[0].mxu0
    %1942 = vdwg.mxu0
    %v1944 = vsel %vm1753, %v1844, 0
    %v1947 = vsel %vm1853, %v1338, 0
    %1949 = vmatprep.subr.bf16.mxu0 0
    %1950 = vmatpush1.bf16.msra.mxu0 %v1947
    %1951 = vmatprep.subr.bf16.mxu0 0
    %1952 = vmatpush1.bf16.msra.mxu0 0
    %1953 = vmatprep.subr.bf16.mxu0 0
    %1954 = vmatpush1.bf16.msra.mxu0 0
    %1955 = vmatprep.subr.bf16.mxu0 0
    %1956 = vmatpush1.bf16.msra.mxu0 0
    %1957 = vmatprep.subr.bf16.mxu0 0
    %1958 = vmatpush1.bf16.msra.mxu0 0
    %1959 = vmatprep.subr.bf16.mxu0 0
    %1960 = vmatpush1.bf16.msra.mxu0 0
    %1961 = vmatprep.subr.bf16.mxu0 0
    %1962 = vmatpush1.bf16.msra.mxu0 0
    %1963 = vmatprep.subr.bf16.mxu0 0
    %1964 = vmatpush1.bf16.msra.mxu0 0
    %1965 = vmatprep.subr.bf16.mxu0 0
    %1966 = vmatpush1.bf16.msra.mxu0 0
    %1967 = vmatprep.subr.bf16.mxu0 0
    %1968 = vmatpush1.bf16.msra.mxu0 0
    %1969 = vmatprep.subr.bf16.mxu0 0
    %1970 = vmatpush1.bf16.msra.mxu0 0
    %1971 = vmatprep.subr.bf16.mxu0 0
    %1972 = vmatpush1.bf16.msra.mxu0 0
    %1973 = vmatprep.subr.bf16.mxu0 0
    %1974 = vmatpush1.bf16.msra.mxu0 0
    %1975 = vmatprep.subr.bf16.mxu0 0
    %1976 = vmatpush1.bf16.msra.mxu0 0
    %1977 = vmatprep.subr.bf16.mxu0 0
    %1978 = vmatpush1.bf16.msra.mxu0 0
    %1979 = vmatprep.subr.bf16.mxu0 0
    %1980 = vmatpush1.bf16.msra.mxu0 0
    %1981 = vmatprep.mubr.bf16.mxu0 0
    %1982 = vmatmul.mubr.bf16.gmra.mrb[0].mxu0 %v1944
    %v1983 = vpop.f32.mrb[0].mxu0
    %v1984 = vadd.f32 0.0, %v1983
    %v1985 = vpop.f32.mrb[0].mxu0
    %v1986 = vpop.f32.mrb[0].mxu0
    %v1987 = vpop.f32.mrb[0].mxu0
    %1988 = vdwg.mxu0
    %v1990 = vsel %vm1753, %v1845, 0
    %v1993 = vsel %vm1853, %v1339, 0
    %1995 = vmatprep.subr.bf16.mxu0 0
    %1996 = vmatpush1.bf16.msra.mxu0 %v1993
    %1997 = vmatprep.subr.bf16.mxu0 0
    %1998 = vmatpush1.bf16.msra.mxu0 0
    %1999 = vmatprep.subr.bf16.mxu0 0
    %2000 = vmatpush1.bf16.msra.mxu0 0
    %2001 = vmatprep.subr.bf16.mxu0 0
    %2002 = vmatpush1.bf16.msra.mxu0 0
    %2003 = vmatprep.subr.bf16.mxu0 0
    %2004 = vmatpush1.bf16.msra.mxu0 0
    %2005 = vmatprep.subr.bf16.mxu0 0
    %2006 = vmatpush1.bf16.msra.mxu0 0
    %2007 = vmatprep.subr.bf16.mxu0 0
    %2008 = vmatpush1.bf16.msra.mxu0 0
    %2009 = vmatprep.subr.bf16.mxu0 0
    %2010 = vmatpush1.bf16.msra.mxu0 0
    %2011 = vmatprep.subr.bf16.mxu0 0
    %2012 = vmatpush1.bf16.msra.mxu0 0
    %2013 = vmatprep.subr.bf16.mxu0 0
    %2014 = vmatpush1.bf16.msra.mxu0 0
    %2015 = vmatprep.subr.bf16.mxu0 0
    %2016 = vmatpush1.bf16.msra.mxu0 0
    %2017 = vmatprep.subr.bf16.mxu0 0
    %2018 = vmatpush1.bf16.msra.mxu0 0
    %2019 = vmatprep.subr.bf16.mxu0 0
    %2020 = vmatpush1.bf16.msra.mxu0 0
    %2021 = vmatprep.subr.bf16.mxu0 0
    %2022 = vmatpush1.bf16.msra.mxu0 0
    %2023 = vmatprep.subr.bf16.mxu0 0
    %2024 = vmatpush1.bf16.msra.mxu0 0
    %2025 = vmatprep.subr.bf16.mxu0 0
    %2026 = vmatpush1.bf16.msra.mxu0 0
    %2027 = vmatprep.mubr.bf16.mxu0 0
    %2028 = vmatmul.mubr.bf16.gmra.mrb[0].mxu0 %v1990
    %v2029 = vpop.f32.mrb[0].mxu0
    %v2030 = vadd.f32 0.0, %v2029
    %v2031 = vpop.f32.mrb[0].mxu0
    %v2032 = vpop.f32.mrb[0].mxu0
    %v2033 = vpop.f32.mrb[0].mxu0
    %2034 = vdwg.mxu0
    %v2036 = vsel %vm1753, %v1846, 0
    %v2039 = vsel %vm1853, %v1340, 0
    %2041 = vmatprep.subr.bf16.mxu0 0
    %2042 = vmatpush1.bf16.msra.mxu0 %v2039
    %2043 = vmatprep.subr.bf16.mxu0 0
    %2044 = vmatpush1.bf16.msra.mxu0 0
    %2045 = vmatprep.subr.bf16.mxu0 0
    %2046 = vmatpush1.bf16.msra.mxu0 0
    %2047 = vmatprep.subr.bf16.mxu0 0
    %2048 = vmatpush1.bf16.msra.mxu0 0
    %2049 = vmatprep.subr.bf16.mxu0 0
    %2050 = vmatpush1.bf16.msra.mxu0 0
    %2051 = vmatprep.subr.bf16.mxu0 0
    %2052 = vmatpush1.bf16.msra.mxu0 0
    %2053 = vmatprep.subr.bf16.mxu0 0
    %2054 = vmatpush1.bf16.msra.mxu0 0
    %2055 = vmatprep.subr.bf16.mxu0 0
    %2056 = vmatpush1.bf16.msra.mxu0 0
    %2057 = vmatprep.subr.bf16.mxu0 0
    %2058 = vmatpush1.bf16.msra.mxu0 0
    %2059 = vmatprep.subr.bf16.mxu0 0
    %2060 = vmatpush1.bf16.msra.mxu0 0
    %2061 = vmatprep.subr.bf16.mxu0 0
    %2062 = vmatpush1.bf16.msra.mxu0 0
    %2063 = vmatprep.subr.bf16.mxu0 0
    %2064 = vmatpush1.bf16.msra.mxu0 0
    %2065 = vmatprep.subr.bf16.mxu0 0
    %2066 = vmatpush1.bf16.msra.mxu0 0
    %2067 = vmatprep.subr.bf16.mxu0 0
    %2068 = vmatpush1.bf16.msra.mxu0 0
    %2069 = vmatprep.subr.bf16.mxu0 0
    %2070 = vmatpush1.bf16.msra.mxu0 0
    %2071 = vmatprep.subr.bf16.mxu0 0
    %2072 = vmatpush1.bf16.msra.mxu0 0
    %2073 = vmatprep.mubr.bf16.mxu0 0
    %2074 = vmatmul.mubr.bf16.gmra.mrb[0].mxu0 %v2036
    %v2075 = vpop.f32.mrb[0].mxu0
    %v2076 = vadd.f32 0.0, %v2075
    %v2077 = vpop.f32.mrb[0].mxu0
    %v2078 = vpop.f32.mrb[0].mxu0
    %v2079 = vpop.f32.mrb[0].mxu0
    %2080 = vdwg.mxu0
    %v2082 = vsel %vm1753, %v1847, 0
    %v2085 = vsel %vm1853, %v1341, 0
    %2087 = vmatprep.subr.bf16.mxu0 0
    %2088 = vmatpush1.bf16.msra.mxu0 %v2085
    %2089 = vmatprep.subr.bf16.mxu0 0
    %2090 = vmatpush1.bf16.msra.mxu0 0
    %2091 = vmatprep.subr.bf16.mxu0 0
    %2092 = vmatpush1.bf16.msra.mxu0 0
    %2093 = vmatprep.subr.bf16.mxu0 0
    %2094 = vmatpush1.bf16.msra.mxu0 0
    %2095 = vmatprep.subr.bf16.mxu0 0
    %2096 = vmatpush1.bf16.msra.mxu0 0
    %2097 = vmatprep.subr.bf16.mxu0 0
    %2098 = vmatpush1.bf16.msra.mxu0 0
    %2099 = vmatprep.subr.bf16.mxu0 0
    %2100 = vmatpush1.bf16.msra.mxu0 0
    %2101 = vmatprep.subr.bf16.mxu0 0
    %2102 = vmatpush1.bf16.msra.mxu0 0
    %2103 = vmatprep.subr.bf16.mxu0 0
    %2104 = vmatpush1.bf16.msra.mxu0 0
    %2105 = vmatprep.subr.bf16.mxu0 0
    %2106 = vmatpush1.bf16.msra.mxu0 0
    %2107 = vmatprep.subr.bf16.mxu0 0
    %2108 = vmatpush1.bf16.msra.mxu0 0
    %2109 = vmatprep.subr.bf16.mxu0 0
    %2110 = vmatpush1.bf16.msra.mxu0 0
    %2111 = vmatprep.subr.bf16.mxu0 0
    %2112 = vmatpush1.bf16.msra.mxu0 0
    %2113 = vmatprep.subr.bf16.mxu0 0
    %2114 = vmatpush1.bf16.msra.mxu0 0
    %2115 = vmatprep.subr.bf16.mxu0 0
    %2116 = vmatpush1.bf16.msra.mxu0 0
    %2117 = vmatprep.subr.bf16.mxu0 0
    %2118 = vmatpush1.bf16.msra.mxu0 0
    %2119 = vmatprep.mubr.bf16.mxu0 0
    %2120 = vmatmul.mubr.bf16.gmra.mrb[0].mxu0 %v2082
    %v2121 = vpop.f32.mrb[0].mxu0
    %v2122 = vadd.f32 0.0, %v2121
    %v2123 = vpop.f32.mrb[0].mxu0
    %v2124 = vpop.f32.mrb[0].mxu0
    %v2125 = vpop.f32.mrb[0].mxu0
    %2126 = vdwg.mxu0
    %v2128 = vsel %vm1753, %v1848, 0
    %v2131 = vsel %vm1853, %v1342, 0
    %2133 = vmatprep.subr.bf16.mxu0 0
    %2134 = vmatpush1.bf16.msra.mxu0 %v2131
    %2135 = vmatprep.subr.bf16.mxu0 0
    %2136 = vmatpush1.bf16.msra.mxu0 0
    %2137 = vmatprep.subr.bf16.mxu0 0
    %2138 = vmatpush1.bf16.msra.mxu0 0
    %2139 = vmatprep.subr.bf16.mxu0 0
    %2140 = vmatpush1.bf16.msra.mxu0 0
    %2141 = vmatprep.subr.bf16.mxu0 0
    %2142 = vmatpush1.bf16.msra.mxu0 0
    %2143 = vmatprep.subr.bf16.mxu0 0
    %2144 = vmatpush1.bf16.msra.mxu0 0
    %2145 = vmatprep.subr.bf16.mxu0 0
    %2146 = vmatpush1.bf16.msra.mxu0 0
    %2147 = vmatprep.subr.bf16.mxu0 0
    %2148 = vmatpush1.bf16.msra.mxu0 0
    %2149 = vmatprep.subr.bf16.mxu0 0
    %2150 = vmatpush1.bf16.msra.mxu0 0
    %2151 = vmatprep.subr.bf16.mxu0 0
    %2152 = vmatpush1.bf16.msra.mxu0 0
    %2153 = vmatprep.subr.bf16.mxu0 0
    %2154 = vmatpush1.bf16.msra.mxu0 0
    %2155 = vmatprep.subr.bf16.mxu0 0
    %2156 = vmatpush1.bf16.msra.mxu0 0
    %2157 = vmatprep.subr.bf16.mxu0 0
    %2158 = vmatpush1.bf16.msra.mxu0 0
    %2159 = vmatprep.subr.bf16.mxu0 0
    %2160 = vmatpush1.bf16.msra.mxu0 0
    %2161 = vmatprep.subr.bf16.mxu0 0
    %2162 = vmatpush1.bf16.msra.mxu0 0
    %2163 = vmatprep.subr.bf16.mxu0 0
    %2164 = vmatpush1.bf16.msra.mxu0 0
    %2165 = vmatprep.mubr.bf16.mxu0 0
    %2166 = vmatmul.mubr.bf16.gmra.mrb[0].mxu0 %v2128
    %v2167 = vpop.f32.mrb[0].mxu0
    %v2168 = vadd.f32 0.0, %v2167
    %v2169 = vpop.f32.mrb[0].mxu0
    %v2170 = vpop.f32.mrb[0].mxu0
    %v2171 = vpop.f32.mrb[0].mxu0
    %2172 = vdwg.mxu0
    %v2174 = vsel %vm1753, %v1849, 0
    %v2177 = vsel %vm1853, %v1343, 0
    %2179 = vmatprep.subr.bf16.mxu0 0
    %2180 = vmatpush1.bf16.msra.mxu0 %v2177
    %2181 = vmatprep.subr.bf16.mxu0 0
    %2182 = vmatpush1.bf16.msra.mxu0 0
    %2183 = vmatprep.subr.bf16.mxu0 0
    %2184 = vmatpush1.bf16.msra.mxu0 0
    %2185 = vmatprep.subr.bf16.mxu0 0
    %2186 = vmatpush1.bf16.msra.mxu0 0
    %2187 = vmatprep.subr.bf16.mxu0 0
    %2188 = vmatpush1.bf16.msra.mxu0 0
    %2189 = vmatprep.subr.bf16.mxu0 0
    %2190 = vmatpush1.bf16.msra.mxu0 0
    %2191 = vmatprep.subr.bf16.mxu0 0
    %2192 = vmatpush1.bf16.msra.mxu0 0
    %2193 = vmatprep.subr.bf16.mxu0 0
    %2194 = vmatpush1.bf16.msra.mxu0 0
    %2195 = vmatprep.subr.bf16.mxu0 0
    %2196 = vmatpush1.bf16.msra.mxu0 0
    %2197 = vmatprep.subr.bf16.mxu0 0
    %2198 = vmatpush1.bf16.msra.mxu0 0
    %2199 = vmatprep.subr.bf16.mxu0 0
    %2200 = vmatpush1.bf16.msra.mxu0 0
    %2201 = vmatprep.subr.bf16.mxu0 0
    %2202 = vmatpush1.bf16.msra.mxu0 0
    %2203 = vmatprep.subr.bf16.mxu0 0
    %2204 = vmatpush1.bf16.msra.mxu0 0
    %2205 = vmatprep.subr.bf16.mxu0 0
    %2206 = vmatpush1.bf16.msra.mxu0 0
    %2207 = vmatprep.subr.bf16.mxu0 0
    %2208 = vmatpush1.bf16.msra.mxu0 0
    %2209 = vmatprep.subr.bf16.mxu0 0
    %2210 = vmatpush1.bf16.msra.mxu0 0
    %2211 = vmatprep.mubr.bf16.mxu0 0
    %2212 = vmatmul.mubr.bf16.gmra.mrb[0].mxu0 %v2174
    %v2213 = vpop.f32.mrb[0].mxu0
    %v2214 = vadd.f32 0.0, %v2213
    %v2215 = vpop.f32.mrb[0].mxu0
    %v2216 = vpop.f32.mrb[0].mxu0
    %v2217 = vpop.f32.mrb[0].mxu0
    %2218 = vdwg.mxu0
    %v2219 = vcombine.low %v1892, %v1984
    %v2220 = vcombine.high %v1892, %v1984
    %v2222 = vunpack.c.l.s4 1983009808
    %v2223 = vunpack.c.0.s8 %v2222
    %v2224 = vlaneseq
    %v2225 = vshrl.u32 %v2224, 7
    %v2226 = vsub.s32 %v2223, %v2225
    %v2227 = vrot.slane %v2219, %v2226
    %v2229 = vunpack.c.l.s4 1983009808
    %v2230 = vunpack.c.0.s8 %v2229
    %v2231 = vlaneseq
    %v2232 = vshrl.u32 %v2231, 7
    %v2233 = vsub.s32 %v2230, %v2232
    %v2234 = vrot.slane %v2220, %v2233
    %v2235 = vcombine.low %v1938, %v2030
    %v2236 = vcombine.high %v1938, %v2030
    %v2238 = vunpack.c.l.s4 1983009808
    %v2239 = vunpack.c.0.s8 %v2238
    %v2240 = vlaneseq
    %v2241 = vshrl.u32 %v2240, 7
    %v2242 = vsub.s32 %v2239, %v2241
    %v2243 = vrot.slane %v2235, %v2242
    %v2245 = vunpack.c.l.s4 1983009808
    %v2246 = vunpack.c.0.s8 %v2245
    %v2247 = vlaneseq
    %v2248 = vshrl.u32 %v2247, 7
    %v2249 = vsub.s32 %v2246, %v2248
    %v2250 = vrot.slane %v2236, %v2249
    %v2251 = vcombine.low %v2227, %v2243
    %v2252 = vcombine.high %v2227, %v2243
    %v2254 = vunpack.c.l.s4 1934713408
    %v2255 = vunpack.c.0.s8 %v2254
    %v2256 = vlaneseq
    %v2257 = vshrl.u32 %v2256, 7
    %v2258 = vsub.s32 %v2255, %v2257
    %v2259 = vrot.slane %v2251, %v2258
    %v2261 = vunpack.c.l.s4 1934713408
    %v2262 = vunpack.c.0.s8 %v2261
    %v2263 = vlaneseq
    %v2264 = vshrl.u32 %v2263, 7
    %v2265 = vsub.s32 %v2262, %v2264
    %v2266 = vrot.slane %v2252, %v2265
    %v2267 = vcombine.low %v2234, %v2250
    %v2268 = vcombine.high %v2234, %v2250
    %v2270 = vunpack.c.l.s4 1934713408
    %v2271 = vunpack.c.0.s8 %v2270
    %v2272 = vlaneseq
    %v2273 = vshrl.u32 %v2272, 7
    %v2274 = vsub.s32 %v2271, %v2273
    %v2275 = vrot.slane %v2267, %v2274
    %v2277 = vunpack.c.l.s4 1934713408
    %v2278 = vunpack.c.0.s8 %v2277
    %v2279 = vlaneseq
    %v2280 = vshrl.u32 %v2279, 7
    %v2281 = vsub.s32 %v2278, %v2280
    %v2282 = vrot.slane %v2268, %v2281
    %v2283 = vcombine.high %v2259, 0.0
    %v2284 = vcombine.high %v2266, 0.0
    %v2285 = vcombine.high %v2275, 0.0
    %v2286 = vcombine.high %v2282, 0.0
    %v2287 = vcombine.low %v2076, %v2168
    %v2288 = vcombine.high %v2076, %v2168
    %v2290 = vunpack.c.l.s4 1983009808
    %v2291 = vunpack.c.0.s8 %v2290
    %v2292 = vlaneseq
    %v2293 = vshrl.u32 %v2292, 7
    %v2294 = vsub.s32 %v2291, %v2293
    %v2295 = vrot.slane %v2287, %v2294
    %v2297 = vunpack.c.l.s4 1983009808
    %v2298 = vunpack.c.0.s8 %v2297
    %v2299 = vlaneseq
    %v2300 = vshrl.u32 %v2299, 7
    %v2301 = vsub.s32 %v2298, %v2300
    %v2302 = vrot.slane %v2288, %v2301
    %v2303 = vcombine.low %v2122, %v2214
    %v2304 = vcombine.high %v2122, %v2214
    %v2306 = vunpack.c.l.s4 1983009808
    %v2307 = vunpack.c.0.s8 %v2306
    %v2308 = vlaneseq
    %v2309 = vshrl.u32 %v2308, 7
    %v2310 = vsub.s32 %v2307, %v2309
    %v2311 = vrot.slane %v2303, %v2310
    %v2313 = vunpack.c.l.s4 1983009808
    %v2314 = vunpack.c.0.s8 %v2313
    %v2315 = vlaneseq
    %v2316 = vshrl.u32 %v2315, 7
    %v2317 = vsub.s32 %v2314, %v2316
    %v2318 = vrot.slane %v2304, %v2317
    %v2319 = vcombine.low %v2295, %v2311
    %v2320 = vcombine.high %v2295, %v2311
    %v2322 = vunpack.c.l.s4 1934713408
    %v2323 = vunpack.c.0.s8 %v2322
    %v2324 = vlaneseq
    %v2325 = vshrl.u32 %v2324, 7
    %v2326 = vsub.s32 %v2323, %v2325
    %v2327 = vrot.slane %v2319, %v2326
    %v2329 = vunpack.c.l.s4 1934713408
    %v2330 = vunpack.c.0.s8 %v2329
    %v2331 = vlaneseq
    %v2332 = vshrl.u32 %v2331, 7
    %v2333 = vsub.s32 %v2330, %v2332
    %v2334 = vrot.slane %v2320, %v2333
    %v2335 = vcombine.low %v2302, %v2318
    %v2336 = vcombine.high %v2302, %v2318
    %v2338 = vunpack.c.l.s4 1934713408
    %v2339 = vunpack.c.0.s8 %v2338
    %v2340 = vlaneseq
    %v2341 = vshrl.u32 %v2340, 7
    %v2342 = vsub.s32 %v2339, %v2341
    %v2343 = vrot.slane %v2335, %v2342
    %v2345 = vunpack.c.l.s4 1934713408
    %v2346 = vunpack.c.0.s8 %v2345
    %v2347 = vlaneseq
    %v2348 = vshrl.u32 %v2347, 7
    %v2349 = vsub.s32 %v2346, %v2348
    %v2350 = vrot.slane %v2336, %v2349
    %v2351 = vcombine.high %v2327, 0.0
    %v2352 = vcombine.high %v2334, 0.0
    %v2353 = vcombine.high %v2343, 0.0
    %v2354 = vcombine.high %v2350, 0.0
    %v2355 = vcombine.low %v2259, %v2266
    %v2357 = vunpack.c.l.s4 1983009808
    %v2358 = vunpack.c.0.s8 %v2357
    %v2359 = vlaneseq
    %v2360 = vshrl.u32 %v2359, 7
    %v2361 = vsub.s32 %v2358, %v2360
    %v2362 = vrot.slane %v2355, %v2361
    %v2363 = vcombine.low %v2283, %v2284
    %v2365 = vunpack.c.l.s4 1983009808
    %v2366 = vunpack.c.0.s8 %v2365
    %v2367 = vlaneseq
    %v2368 = vshrl.u32 %v2367, 7
    %v2369 = vsub.s32 %v2366, %v2368
    %v2370 = vrot.slane %v2363, %v2369
    %v2371 = vcombine.low %v2275, %v2282
    %v2373 = vunpack.c.l.s4 1983009808
    %v2374 = vunpack.c.0.s8 %v2373
    %v2375 = vlaneseq
    %v2376 = vshrl.u32 %v2375, 7
    %v2377 = vsub.s32 %v2374, %v2376
    %v2378 = vrot.slane %v2371, %v2377
    %v2379 = vcombine.low %v2285, %v2286
    %v2381 = vunpack.c.l.s4 1983009808
    %v2382 = vunpack.c.0.s8 %v2381
    %v2383 = vlaneseq
    %v2384 = vshrl.u32 %v2383, 7
    %v2385 = vsub.s32 %v2382, %v2384
    %v2386 = vrot.slane %v2379, %v2385
    %v2387 = vcombine.low %v2362, %v2370
    %v2388 = vcombine.high %v2362, %v2370
    %v2390 = vunpack.c.l.s4 1934713408
    %v2391 = vunpack.c.0.s8 %v2390
    %v2392 = vlaneseq
    %v2393 = vshrl.u32 %v2392, 7
    %v2394 = vsub.s32 %v2391, %v2393
    %v2395 = vrot.slane %v2387, %v2394
    %v2397 = vunpack.c.l.s4 1934713408
    %v2398 = vunpack.c.0.s8 %v2397
    %v2399 = vlaneseq
    %v2400 = vshrl.u32 %v2399, 7
    %v2401 = vsub.s32 %v2398, %v2400
    %v2402 = vrot.slane %v2388, %v2401
    %v2403 = vcombine.low %v2378, %v2386
    %v2404 = vcombine.high %v2378, %v2386
    %v2406 = vunpack.c.l.s4 1934713408
    %v2407 = vunpack.c.0.s8 %v2406
    %v2408 = vlaneseq
    %v2409 = vshrl.u32 %v2408, 7
    %v2410 = vsub.s32 %v2407, %v2409
    %v2411 = vrot.slane %v2403, %v2410
    %v2413 = vunpack.c.l.s4 1934713408
    %v2414 = vunpack.c.0.s8 %v2413
    %v2415 = vlaneseq
    %v2416 = vshrl.u32 %v2415, 7
    %v2417 = vsub.s32 %v2414, %v2416
    %v2418 = vrot.slane %v2404, %v2417
    %v2419 = vcombine.low %v2395, %v2411
    %v2420 = vcombine.high %v2395, %v2411
    %v2421 = vcombine.low %v2402, %v2418
    %v2422 = vcombine.high %v2402, %v2418
    %v2423 = vcombine.low %v2327, %v2334
    %v2425 = vunpack.c.l.s4 1983009808
    %v2426 = vunpack.c.0.s8 %v2425
    %v2427 = vlaneseq
    %v2428 = vshrl.u32 %v2427, 7
    %v2429 = vsub.s32 %v2426, %v2428
    %v2430 = vrot.slane %v2423, %v2429
    %v2431 = vcombine.low %v2351, %v2352
    %v2433 = vunpack.c.l.s4 1983009808
    %v2434 = vunpack.c.0.s8 %v2433
    %v2435 = vlaneseq
    %v2436 = vshrl.u32 %v2435, 7
    %v2437 = vsub.s32 %v2434, %v2436
    %v2438 = vrot.slane %v2431, %v2437
    %v2439 = vcombine.low %v2343, %v2350
    %v2441 = vunpack.c.l.s4 1983009808
    %v2442 = vunpack.c.0.s8 %v2441
    %v2443 = vlaneseq
    %v2444 = vshrl.u32 %v2443, 7
    %v2445 = vsub.s32 %v2442, %v2444
    %v2446 = vrot.slane %v2439, %v2445
    %v2447 = vcombine.low %v2353, %v2354
    %v2449 = vunpack.c.l.s4 1983009808
    %v2450 = vunpack.c.0.s8 %v2449
    %v2451 = vlaneseq
    %v2452 = vshrl.u32 %v2451, 7
    %v2453 = vsub.s32 %v2450, %v2452
    %v2454 = vrot.slane %v2447, %v2453
    %v2455 = vcombine.low %v2430, %v2438
    %v2456 = vcombine.high %v2430, %v2438
    %v2458 = vunpack.c.l.s4 1934713408
    %v2459 = vunpack.c.0.s8 %v2458
    %v2460 = vlaneseq
    %v2461 = vshrl.u32 %v2460, 7
    %v2462 = vsub.s32 %v2459, %v2461
    %v2463 = vrot.slane %v2455, %v2462
    %v2465 = vunpack.c.l.s4 1934713408
    %v2466 = vunpack.c.0.s8 %v2465
    %v2467 = vlaneseq
    %v2468 = vshrl.u32 %v2467, 7
    %v2469 = vsub.s32 %v2466, %v2468
    %v2470 = vrot.slane %v2456, %v2469
    %v2471 = vcombine.low %v2446, %v2454
    %v2472 = vcombine.high %v2446, %v2454
    %v2474 = vunpack.c.l.s4 1934713408
    %v2475 = vunpack.c.0.s8 %v2474
    %v2476 = vlaneseq
    %v2477 = vshrl.u32 %v2476, 7
    %v2478 = vsub.s32 %v2475, %v2477
    %v2479 = vrot.slane %v2471, %v2478
    %v2481 = vunpack.c.l.s4 1934713408
    %v2482 = vunpack.c.0.s8 %v2481
    %v2483 = vlaneseq
    %v2484 = vshrl.u32 %v2483, 7
    %v2485 = vsub.s32 %v2482, %v2484
    %v2486 = vrot.slane %v2472, %v2485
    %v2487 = vcombine.low %v2463, %v2479
    %v2488 = vcombine.high %v2463, %v2479
    %v2489 = vcombine.low %v2470, %v2486
    %v2490 = vcombine.high %v2470, %v2486
    %2493 = vrot.lane.b32.xlu0 %v2420, 32
    %v2494 = vpop.permute.xlu0 %2493
    %2495 = vrot.lane.b32.xlu0 %v2488, 32
    %v2496 = vpop.permute.xlu0 %2495
    %2501 = vrot.lane.b32.xlu0 %v2421, 64
    %v2502 = vpop.permute.xlu0 %2501
    %2503 = vrot.lane.b32.xlu0 %v2489, 64
    %v2504 = vpop.permute.xlu0 %2503
    %2509 = vrot.lane.b32.xlu0 %v2422, 96
    %v2510 = vpop.permute.xlu0 %2509
    %2511 = vrot.lane.b32.xlu0 %v2490, 96
    %v2512 = vpop.permute.xlu0 %2511
    %v2515 = vsel %vm1384, %v2419, %v2494
    %v2516 = vsel %vm1384, %v2487, %v2496
    %vm2517 = vcmask 523264
    %v2518 = vsel %vm2517, %v2515, %v2502
    %v2519 = vsel %vm2517, %v2516, %v2504
    %vm2520 = vcmask 785408
    %v2521 = vsel %vm2520, %v2518, %v2510
    %v2522 = vsel %vm2520, %v2519, %v2512
    %v2523 = vpack.c.bf16 %v2522, %v2521
    %v2524 = vld [vmem:[#allocation8] sm:$0xf]
    %v2525 = vld [vmem:[#allocation8 + $0x4] sm:$0xf]
    %v2526 = vld [vmem:[#allocation8 + $0x8] sm:$0xf]
    %v2527 = vld [vmem:[#allocation8 + $0xc] sm:$0xf]
    %v2528 = vld [vmem:[#allocation8 + $0x10] sm:$0xf]
    %v2529 = vld [vmem:[#allocation8 + $0x14] sm:$0xf]
    %v2530 = vld [vmem:[#allocation8 + $0x18] sm:$0xf]
    %v2531 = vld [vmem:[#allocation8 + $0x1c] sm:$0xf]
    %v2532 = vld [vmem:[#allocation8 + $0x20] sm:$0xf]
    %v2533 = vld [vmem:[#allocation8 + $0x24] sm:$0xf]
    %v2534 = vld [vmem:[#allocation8 + $0x28] sm:$0xf]
    %v2535 = vld [vmem:[#allocation8 + $0x2c] sm:$0xf]
    %v2536 = vld [vmem:[#allocation8 + $0x30] sm:$0xf]
    %v2537 = vld [vmem:[#allocation8 + $0x34] sm:$0xf]
    %v2538 = vld [vmem:[#allocation8 + $0x38] sm:$0xf]
    %v2539 = vld [vmem:[#allocation8 + $0x3c] sm:$0xf]
    %v2540 = vld [vmem:[%s8] sm:$0x1]
    %v2541 = vlaneseq
    %v2542 = vshrl.u32 %v2541, 7
    %v2543 = vsub.s32 0, %v2542
    %v2544 = vrot.slane %v2540, %v2543
    %v2561 = vunpack.c.l.b16 %v2524
    %v2562 = vunpack.c.l.b16 %v2525
    %v2563 = vunpack.c.l.b16 %v2526
    %v2564 = vunpack.c.l.b16 %v2527
    %v2565 = vunpack.c.l.b16 %v2528
    %v2566 = vunpack.c.l.b16 %v2529
    %v2567 = vunpack.c.l.b16 %v2530
    %v2568 = vunpack.c.l.b16 %v2531
    %v2569 = vunpack.c.l.b16 %v2532
    %v2570 = vunpack.c.l.b16 %v2533
    %v2571 = vunpack.c.l.b16 %v2534
    %v2572 = vunpack.c.l.b16 %v2535
    %v2573 = vunpack.c.l.b16 %v2536
    %v2574 = vunpack.c.l.b16 %v2537
    %v2575 = vunpack.c.l.b16 %v2538
    %v2576 = vunpack.c.l.b16 %v2539
    %v2577 = vpack.c.b16 %v2562, %v2561
    %v2578 = vpack.c.b16 %v2564, %v2563
    %v2579 = vpack.c.b16 %v2566, %v2565
    %v2580 = vpack.c.b16 %v2568, %v2567
    %v2581 = vpack.c.b16 %v2570, %v2569
    %v2582 = vpack.c.b16 %v2572, %v2571
    %v2583 = vpack.c.b16 %v2574, %v2573
    %v2584 = vpack.c.b16 %v2576, %v2575
    %2593 = vmatprep.subr.bf16.mxu0 0
    %2594 = vmatpush1.bf16.msra.mxu0 %v2577
    %2595 = vmatprep.subr.bf16.mxu0 0
    %2596 = vmatpush1.bf16.msra.mxu0 %v2578
    %2597 = vmatprep.subr.bf16.mxu0 0
    %2598 = vmatpush1.bf16.msra.mxu0 %v2579
    %2599 = vmatprep.subr.bf16.mxu0 0
    %2600 = vmatpush1.bf16.msra.mxu0 %v2580
    %2601 = vmatprep.subr.bf16.mxu0 0
    %2602 = vmatpush1.bf16.msra.mxu0 %v2581
    %2603 = vmatprep.subr.bf16.mxu0 0
    %2604 = vmatpush1.bf16.msra.mxu0 %v2582
    %2605 = vmatprep.subr.bf16.mxu0 0
    %2606 = vmatpush1.bf16.msra.mxu0 %v2583
    %2607 = vmatprep.subr.bf16.mxu0 0
    %2608 = vmatpush1.bf16.msra.mxu0 %v2584
    %2609 = vmatprep.subr.bf16.mxu0 0
    %2610 = vmatpush1.bf16.msra.mxu0 0
    %2611 = vmatprep.subr.bf16.mxu0 0
    %2612 = vmatpush1.bf16.msra.mxu0 0
    %2613 = vmatprep.subr.bf16.mxu0 0
    %2614 = vmatpush1.bf16.msra.mxu0 0
    %2615 = vmatprep.subr.bf16.mxu0 0
    %2616 = vmatpush1.bf16.msra.mxu0 0
    %2617 = vmatprep.subr.bf16.mxu0 0
    %2618 = vmatpush1.bf16.msra.mxu0 0
    %2619 = vmatprep.subr.bf16.mxu0 0
    %2620 = vmatpush1.bf16.msra.mxu0 0
    %2621 = vmatprep.subr.bf16.mxu0 0
    %2622 = vmatpush1.bf16.msra.mxu0 0
    %2623 = vmatprep.subr.bf16.mxu0 0
    %2624 = vmatpush1.bf16.msra.mxu0 0
    %2625 = vmatprep.mubr.bf16.mxu0 0
    %2626 = vmatmul.mubr.bf16.gmra.mrb[0].mxu0 %v2523
    %v2627 = vpop.f32.mrb[0].mxu0
    %v2628 = vadd.f32 %v2544, %v2627
    %v2629 = vpop.f32.mrb[0].mxu0
    %v2630 = vpop.f32.mrb[0].mxu0
    %v2631 = vadd.f32 %v2544, %v2630
    %v2632 = vpop.f32.mrb[0].mxu0
    %2633 = vdwg.mxu0
    %v2634 = vadd.f32 %v116, %v2628
    %v2635 = vadd.f32 %v117, %v2631
    %v2636 = vld [vmem:[%s8 + $0x1] sm:$0x1]
    %v2637 = vld [vmem:[%s8 + $0x2] sm:$0x1]
    %2638 = vadd.xlane.f32.xlu0 %v2634
    %v2639 = vpop.xlane.xlu0 %2638
    %2640 = vadd.xlane.f32.xlu0 %v2635
    %v2641 = vpop.xlane.xlu0 %2640
    %v2642 = vrcp.pop 128.0
    %v2643 = vmul.f32 %v2639, %v2642
    %v2644 = vmul.f32 %v2641, %v2642
    %v2645 = vsub.f32 %v2634, %v2643
    %v2646 = vsub.f32 %v2635, %v2644
    %v2647 = vmul.f32 %v2645, %v2645
    %v2648 = vmul.f32 %v2646, %v2646
    %2649 = vadd.xlane.f32.xlu0 %v2647
    %v2650 = vpop.xlane.xlu0 %2649
    %2651 = vadd.xlane.f32.xlu0 %v2648
    %v2652 = vpop.xlane.xlu0 %2651
    %v2653 = vmul.f32 %v2650, %v2642
    %v2654 = vmul.f32 %v2652, %v2642
    %v2655 = vadd.f32 %v2653, 1e-12
    %v2656 = vadd.f32 %v2654, 1e-12
    %v2657 = vrsqrt.pop %v2655
    %v2658 = vrsqrt.pop %v2656
    %v2659 = vmul.f32 %v2645, %v2657
    %v2660 = vmul.f32 %v2646, %v2658
    %v2661 = vlaneseq
    %v2662 = vshrl.u32 %v2661, 7
    %v2663 = vsub.s32 0, %v2662
    %v2664 = vrot.slane %v2636, %v2663
    %v2665 = vmul.f32 %v2659, %v2664
    %v2666 = vmul.f32 %v2660, %v2664
    %v2667 = vlaneseq
    %v2668 = vshrl.u32 %v2667, 7
    %v2669 = vsub.s32 0, %v2668
    %v2670 = vrot.slane %v2637, %v2669
    %v2671 = vadd.f32 %v2665, %v2670
    %v2672 = vadd.f32 %v2666, %v2670
    %v2673 = vpack.c.bf16 %v2672, %v2671
    %v2674 = vld [vmem:[#allocation10] sm:$0xff]
    %v2675 = vld [vmem:[#allocation10 + $0x8] sm:$0xff]
    %v2676 = vld [vmem:[#allocation10 + $0x10] sm:$0xff]
    %v2677 = vld [vmem:[#allocation10 + $0x18] sm:$0xff]
    %v2678 = vld [vmem:[#allocation10 + $0x20] sm:$0xff]
    %v2679 = vld [vmem:[#allocation10 + $0x28] sm:$0xff]
    %v2680 = vld [vmem:[#allocation10 + $0x30] sm:$0xff]
    %v2681 = vld [vmem:[#allocation10 + $0x38] sm:$0xff]
    %v2682 = vld [vmem:[#allocation10 + $0x40] sm:$0xff]
    %v2683 = vld [vmem:[#allocation10 + $0x48] sm:$0xff]
    %v2684 = vld [vmem:[#allocation10 + $0x50] sm:$0xff]
    %v2685 = vld [vmem:[#allocation10 + $0x58] sm:$0xff]
    %v2686 = vld [vmem:[#allocation10 + $0x60] sm:$0xff]
    %v2687 = vld [vmem:[#allocation10 + $0x68] sm:$0xff]
    %v2688 = vld [vmem:[#allocation10 + $0x70] sm:$0xff]
    %v2689 = vld [vmem:[#allocation10 + $0x78] sm:$0xff]
    %v2690 = vld [vmem:[#allocation10 + $0x80] sm:$0xff]
    %v2691 = vld [vmem:[#allocation10 + $0x88] sm:$0xff]
    %v2692 = vld [vmem:[#allocation10 + $0x90] sm:$0xff]
    %v2693 = vld [vmem:[#allocation10 + $0x98] sm:$0xff]
    %v2694 = vld [vmem:[#allocation10 + $0xa0] sm:$0xff]
    %v2695 = vld [vmem:[#allocation10 + $0xa8] sm:$0xff]
    %v2696 = vld [vmem:[#allocation10 + $0xb0] sm:$0xff]
    %v2697 = vld [vmem:[#allocation10 + $0xb8] sm:$0xff]
    %v2698 = vld [vmem:[#allocation10 + $0xc0] sm:$0xff]
    %v2699 = vld [vmem:[#allocation10 + $0xc8] sm:$0xff]
    %v2700 = vld [vmem:[#allocation10 + $0xd0] sm:$0xff]
    %v2701 = vld [vmem:[#allocation10 + $0xd8] sm:$0xff]
    %v2702 = vld [vmem:[#allocation10 + $0xe0] sm:$0xff]
    %v2703 = vld [vmem:[#allocation10 + $0xe8] sm:$0xff]
    %v2704 = vld [vmem:[#allocation10 + $0xf0] sm:$0xff]
    %v2705 = vld [vmem:[#allocation10 + $0xf8] sm:$0xff]
    %v2706 = vld [vmem:[%s6] sm:$0xf]
    %v2708 = vlaneseq
    %v2709 = vshrl.u32 %v2708, 7
    %v2710 = vsub.s32 0, %v2709
    %v2711 = vrot.slane %v2706, %v2710
    %v2712 = vlaneseq
    %v2713 = vshrl.u32 %v2712, 7
    %v2714 = vsub.s32 1, %v2713
    %v2715 = vrot.slane %v2706, %v2714
    %v2716 = vlaneseq
    %v2717 = vshrl.u32 %v2716, 7
    %v2718 = vsub.s32 2, %v2717
    %v2719 = vrot.slane %v2706, %v2718
    %v2720 = vlaneseq
    %v2721 = vshrl.u32 %v2720, 7
    %v2722 = vsub.s32 3, %v2721
    %v2723 = vrot.slane %v2706, %v2722
    %v2760 = vunpack.c.l.b16 %v2674
    %v2761 = vunpack.c.h.b16 %v2674
    %v2762 = vunpack.c.l.b16 %v2675
    %v2763 = vunpack.c.h.b16 %v2675
    %v2764 = vunpack.c.l.b16 %v2676
    %v2765 = vunpack.c.h.b16 %v2676
    %v2766 = vunpack.c.l.b16 %v2677
    %v2767 = vunpack.c.h.b16 %v2677
    %v2768 = vunpack.c.l.b16 %v2678
    %v2769 = vunpack.c.h.b16 %v2678
    %v2770 = vunpack.c.l.b16 %v2679
    %v2771 = vunpack.c.h.b16 %v2679
    %v2772 = vunpack.c.l.b16 %v2680
    %v2773 = vunpack.c.h.b16 %v2680
    %v2774 = vunpack.c.l.b16 %v2681
    %v2775 = vunpack.c.h.b16 %v2681
    %v2776 = vunpack.c.l.b16 %v2682
    %v2777 = vunpack.c.h.b16 %v2682
    %v2778 = vunpack.c.l.b16 %v2683
    %v2779 = vunpack.c.h.b16 %v2683
    %v2780 = vunpack.c.l.b16 %v2684
    %v2781 = vunpack.c.h.b16 %v2684
    %v2782 = vunpack.c.l.b16 %v2685
    %v2783 = vunpack.c.h.b16 %v2685
    %v2784 = vunpack.c.l.b16 %v2686
    %v2785 = vunpack.c.h.b16 %v2686
    %v2786 = vunpack.c.l.b16 %v2687
    %v2787 = vunpack.c.h.b16 %v2687
    %v2788 = vunpack.c.l.b16 %v2688
    %v2789 = vunpack.c.h.b16 %v2688
    %v2790 = vunpack.c.l.b16 %v2689
    %v2791 = vunpack.c.h.b16 %v2689
    %v2792 = vunpack.c.l.b16 %v2690
    %v2793 = vunpack.c.h.b16 %v2690
    %v2794 = vunpack.c.l.b16 %v2691
    %v2795 = vunpack.c.h.b16 %v2691
    %v2796 = vunpack.c.l.b16 %v2692
    %v2797 = vunpack.c.h.b16 %v2692
    %v2798 = vunpack.c.l.b16 %v2693
    %v2799 = vunpack.c.h.b16 %v2693
    %v2800 = vunpack.c.l.b16 %v2694
    %v2801 = vunpack.c.h.b16 %v2694
    %v2802 = vunpack.c.l.b16 %v2695
    %v2803 = vunpack.c.h.b16 %v2695
    %v2804 = vunpack.c.l.b16 %v2696
    %v2805 = vunpack.c.h.b16 %v2696
    %v2806 = vunpack.c.l.b16 %v2697
    %v2807 = vunpack.c.h.b16 %v2697
    %v2808 = vunpack.c.l.b16 %v2698
    %v2809 = vunpack.c.h.b16 %v2698
    %v2810 = vunpack.c.l.b16 %v2699
    %v2811 = vunpack.c.h.b16 %v2699
    %v2812 = vunpack.c.l.b16 %v2700
    %v2813 = vunpack.c.h.b16 %v2700
    %v2814 = vunpack.c.l.b16 %v2701
    %v2815 = vunpack.c.h.b16 %v2701
    %v2816 = vunpack.c.l.b16 %v2702
    %v2817 = vunpack.c.h.b16 %v2702
    %v2818 = vunpack.c.l.b16 %v2703
    %v2819 = vunpack.c.h.b16 %v2703
    %v2820 = vunpack.c.l.b16 %v2704
    %v2821 = vunpack.c.h.b16 %v2704
    %v2822 = vunpack.c.l.b16 %v2705
    %v2823 = vunpack.c.h.b16 %v2705
    %v2824 = vpack.c.b16 %v2764, %v2760
    %v2825 = vpack.c.b16 %v2765, %v2761
    %v2826 = vpack.c.b16 %v2766, %v2762
    %v2827 = vpack.c.b16 %v2767, %v2763
    %v2828 = vpack.c.b16 %v2772, %v2768
    %v2829 = vpack.c.b16 %v2773, %v2769
    %v2830 = vpack.c.b16 %v2774, %v2770
    %v2831 = vpack.c.b16 %v2775, %v2771
    %v2832 = vpack.c.b16 %v2780, %v2776
    %v2833 = vpack.c.b16 %v2781, %v2777
    %v2834 = vpack.c.b16 %v2782, %v2778
    %v2835 = vpack.c.b16 %v2783, %v2779
    %v2836 = vpack.c.b16 %v2788, %v2784
    %v2837 = vpack.c.b16 %v2789, %v2785
    %v2838 = vpack.c.b16 %v2790, %v2786
    %v2839 = vpack.c.b16 %v2791, %v2787
    %v2840 = vpack.c.b16 %v2796, %v2792
    %v2841 = vpack.c.b16 %v2797, %v2793
    %v2842 = vpack.c.b16 %v2798, %v2794
    %v2843 = vpack.c.b16 %v2799, %v2795
    %v2844 = vpack.c.b16 %v2804, %v2800
    %v2845 = vpack.c.b16 %v2805, %v2801
    %v2846 = vpack.c.b16 %v2806, %v2802
    %v2847 = vpack.c.b16 %v2807, %v2803
    %v2848 = vpack.c.b16 %v2812, %v2808
    %v2849 = vpack.c.b16 %v2813, %v2809
    %v2850 = vpack.c.b16 %v2814, %v2810
    %v2851 = vpack.c.b16 %v2815, %v2811
    %v2852 = vpack.c.b16 %v2820, %v2816
    %v2853 = vpack.c.b16 %v2821, %v2817
    %v2854 = vpack.c.b16 %v2822, %v2818
    %v2855 = vpack.c.b16 %v2823, %v2819
    %2888 = vmatprep.subr.bf16.mxu0 %v2825
    %2889 = vmatpush1.bf16.msra.mxu0 %v2824
    %2890 = vmatprep.subr.bf16.mxu0 %v2829
    %2891 = vmatpush1.bf16.msra.mxu0 %v2828
    %2892 = vmatprep.subr.bf16.mxu0 %v2833
    %2893 = vmatpush1.bf16.msra.mxu0 %v2832
    %2894 = vmatprep.subr.bf16.mxu0 %v2837
    %2895 = vmatpush1.bf16.msra.mxu0 %v2836
    %2896 = vmatprep.subr.bf16.mxu0 %v2841
    %2897 = vmatpush1.bf16.msra.mxu0 %v2840
    %2898 = vmatprep.subr.bf16.mxu0 %v2845
    %2899 = vmatpush1.bf16.msra.mxu0 %v2844
    %2900 = vmatprep.subr.bf16.mxu0 %v2849
    %2901 = vmatpush1.bf16.msra.mxu0 %v2848
    %2902 = vmatprep.subr.bf16.mxu0 %v2853
    %2903 = vmatpush1.bf16.msra.mxu0 %v2852
    %2904 = vmatprep.subr.bf16.mxu0 0
    %2905 = vmatpush1.bf16.msra.mxu0 0
    %2906 = vmatprep.subr.bf16.mxu0 0
    %2907 = vmatpush1.bf16.msra.mxu0 0
    %2908 = vmatprep.subr.bf16.mxu0 0
    %2909 = vmatpush1.bf16.msra.mxu0 0
    %2910 = vmatprep.subr.bf16.mxu0 0
    %2911 = vmatpush1.bf16.msra.mxu0 0
    %2912 = vmatprep.subr.bf16.mxu0 0
    %2913 = vmatpush1.bf16.msra.mxu0 0
    %2914 = vmatprep.subr.bf16.mxu0 0
    %2915 = vmatpush1.bf16.msra.mxu0 0
    %2916 = vmatprep.subr.bf16.mxu0 0
    %2917 = vmatpush1.bf16.msra.mxu0 0
    %2918 = vmatprep.subr.bf16.mxu0 0
    %2919 = vmatpush1.bf16.msra.mxu0 0
    %2920 = vmatprep.mubr.bf16.mxu0 0
    %2921 = vmatmul.mubr.bf16.gmra.mrb[0].mxu0 %v2673
    %v2922 = vpop.f32.mrb[0].mxu0
    %v2923 = vadd.f32 %v2711, %v2922
    %v2924 = vpop.f32.mrb[0].mxu0
    %v2925 = vadd.f32 %v2715, %v2924
    %v2926 = vpop.f32.mrb[0].mxu0
    %v2927 = vadd.f32 %v2711, %v2926
    %v2928 = vpop.f32.mrb[0].mxu0
    %v2929 = vadd.f32 %v2715, %v2928
    %2930 = vdwg.mxu0
    %2931 = vmatprep.subr.bf16.mxu0 %v2827
    %2932 = vmatpush1.bf16.msra.mxu0 %v2826
    %2933 = vmatprep.subr.bf16.mxu0 %v2831
    %2934 = vmatpush1.bf16.msra.mxu0 %v2830
    %2935 = vmatprep.subr.bf16.mxu0 %v2835
    %2936 = vmatpush1.bf16.msra.mxu0 %v2834
    %2937 = vmatprep.subr.bf16.mxu0 %v2839
    %2938 = vmatpush1.bf16.msra.mxu0 %v2838
    %2939 = vmatprep.subr.bf16.mxu0 %v2843
    %2940 = vmatpush1.bf16.msra.mxu0 %v2842
    %2941 = vmatprep.subr.bf16.mxu0 %v2847
    %2942 = vmatpush1.bf16.msra.mxu0 %v2846
    %2943 = vmatprep.subr.bf16.mxu0 %v2851
    %2944 = vmatpush1.bf16.msra.mxu0 %v2850
    %2945 = vmatprep.subr.bf16.mxu0 %v2855
    %2946 = vmatpush1.bf16.msra.mxu0 %v2854
    %2947 = vmatprep.subr.bf16.mxu0 0
    %2948 = vmatpush1.bf16.msra.mxu0 0
    %2949 = vmatprep.subr.bf16.mxu0 0
    %2950 = vmatpush1.bf16.msra.mxu0 0
    %2951 = vmatprep.subr.bf16.mxu0 0
    %2952 = vmatpush1.bf16.msra.mxu0 0
    %2953 = vmatprep.subr.bf16.mxu0 0
    %2954 = vmatpush1.bf16.msra.mxu0 0
    %2955 = vmatprep.subr.bf16.mxu0 0
    %2956 = vmatpush1.bf16.msra.mxu0 0
    %2957 = vmatprep.subr.bf16.mxu0 0
    %2958 = vmatpush1.bf16.msra.mxu0 0
    %2959 = vmatprep.subr.bf16.mxu0 0
    %2960 = vmatpush1.bf16.msra.mxu0 0
    %2961 = vmatprep.subr.bf16.mxu0 0
    %2962 = vmatpush1.bf16.msra.mxu0 0
    %2963 = vmatprep.mubr.bf16.mxu0 0
    %2964 = vmatmul.mubr.bf16.gmra.mrb[0].mxu0 %v2673
    %v2965 = vpop.f32.mrb[0].mxu0
    %v2966 = vadd.f32 %v2719, %v2965
    %v2967 = vpop.f32.mrb[0].mxu0
    %v2968 = vadd.f32 %v2723, %v2967
    %v2969 = vpop.f32.mrb[0].mxu0
    %v2970 = vadd.f32 %v2719, %v2969
    %v2971 = vpop.f32.mrb[0].mxu0
    %v2972 = vadd.f32 %v2723, %v2971
    %2973 = vdwg.mxu0
    %v2974 = vmul.f32 %v2923, %v2923
    %v2975 = vmul.f32 %v2925, %v2925
    %v2976 = vmul.f32 %v2966, %v2966
    %v2977 = vmul.f32 %v2968, %v2968
    %v2978 = vmul.f32 %v2927, %v2927
    %v2979 = vmul.f32 %v2929, %v2929
    %v2980 = vmul.f32 %v2970, %v2970
    %v2981 = vmul.f32 %v2972, %v2972
    %v2982 = vmul.f32 %v2923, %v2974
    %v2983 = vmul.f32 %v2925, %v2975
    %v2984 = vmul.f32 %v2966, %v2976
    %v2985 = vmul.f32 %v2968, %v2977
    %v2986 = vmul.f32 %v2927, %v2978
    %v2987 = vmul.f32 %v2929, %v2979
    %v2988 = vmul.f32 %v2970, %v2980
    %v2989 = vmul.f32 %v2972, %v2981
    %v2990 = vmul.f32 %v2982, 0.044715
    %v2991 = vmul.f32 %v2983, 0.044715
    %v2992 = vmul.f32 %v2984, 0.044715
    %v2993 = vmul.f32 %v2985, 0.044715
    %v2994 = vmul.f32 %v2986, 0.044715
    %v2995 = vmul.f32 %v2987, 0.044715
    %v2996 = vmul.f32 %v2988, 0.044715
    %v2997 = vmul.f32 %v2989, 0.044715
    %v2998 = vadd.f32 %v2923, %v2990
    %v2999 = vadd.f32 %v2925, %v2991
    %v3000 = vadd.f32 %v2966, %v2992
    %v3001 = vadd.f32 %v2968, %v2993
    %v3002 = vadd.f32 %v2927, %v2994
    %v3003 = vadd.f32 %v2929, %v2995
    %v3004 = vadd.f32 %v2970, %v2996
    %v3005 = vadd.f32 %v2972, %v2997
    %v3006 = vmul.f32 %v2998, 0.7978846
    %v3007 = vmul.f32 %v2999, 0.7978846
    %v3008 = vmul.f32 %v3000, 0.7978846
    %v3009 = vmul.f32 %v3001, 0.7978846
    %v3010 = vmul.f32 %v3002, 0.7978846
    %v3011 = vmul.f32 %v3003, 0.7978846
    %v3012 = vmul.f32 %v3004, 0.7978846
    %v3013 = vmul.f32 %v3005, 0.7978846
    %v3014 = vtanh.pop %v3006
    %v3015 = vtanh.pop %v3007
    %v3016 = vtanh.pop %v3008
    %v3017 = vtanh.pop %v3009
    %v3018 = vtanh.pop %v3010
    %v3019 = vtanh.pop %v3011
    %v3020 = vtanh.pop %v3012
    %v3021 = vtanh.pop %v3013
    %v3022 = vadd.f32 %v3014, 1.0
    %v3023 = vadd.f32 %v3015, 1.0
    %v3024 = vadd.f32 %v3016, 1.0
    %v3025 = vadd.f32 %v3017, 1.0
    %v3026 = vadd.f32 %v3018, 1.0
    %v3027 = vadd.f32 %v3019, 1.0
    %v3028 = vadd.f32 %v3020, 1.0
    %v3029 = vadd.f32 %v3021, 1.0
    %v3030 = vmul.f32 %v3022, 0.5
    %v3031 = vmul.f32 %v3023, 0.5
    %v3032 = vmul.f32 %v3024, 0.5
    %v3033 = vmul.f32 %v3025, 0.5
    %v3034 = vmul.f32 %v3026, 0.5
    %v3035 = vmul.f32 %v3027, 0.5
    %v3036 = vmul.f32 %v3028, 0.5
    %v3037 = vmul.f32 %v3029, 0.5
    %v3038 = vmul.f32 %v2923, %v3030
    %v3039 = vmul.f32 %v2925, %v3031
    %v3040 = vmul.f32 %v2966, %v3032
    %v3041 = vmul.f32 %v2968, %v3033
    %v3042 = vmul.f32 %v2927, %v3034
    %v3043 = vmul.f32 %v2929, %v3035
    %v3044 = vmul.f32 %v2970, %v3036
    %v3045 = vmul.f32 %v2972, %v3037
    %v3046 = vpack.c.bf16 %v3042, %v3038
    %v3047 = vpack.c.bf16 %v3043, %v3039
    %v3048 = vpack.c.bf16 %v3044, %v3040
    %v3049 = vpack.c.bf16 %v3045, %v3041
    %v3050 = vld [vmem:[#allocation11] sm:$0xf]
    %v3051 = vld [vmem:[#allocation11 + $0x4] sm:$0xf]
    %v3052 = vld [vmem:[#allocation11 + $0x8] sm:$0xf]
    %v3053 = vld [vmem:[#allocation11 + $0xc] sm:$0xf]
    %v3054 = vld [vmem:[#allocation11 + $0x10] sm:$0xf]
    %v3055 = vld [vmem:[#allocation11 + $0x14] sm:$0xf]
    %v3056 = vld [vmem:[#allocation11 + $0x18] sm:$0xf]
    %v3057 = vld [vmem:[#allocation11 + $0x1c] sm:$0xf]
    %v3058 = vld [vmem:[#allocation11 + $0x20] sm:$0xf]
    %v3059 = vld [vmem:[#allocation11 + $0x24] sm:$0xf]
    %v3060 = vld [vmem:[#allocation11 + $0x28] sm:$0xf]
    %v3061 = vld [vmem:[#allocation11 + $0x2c] sm:$0xf]
    %v3062 = vld [vmem:[#allocation11 + $0x30] sm:$0xf]
    %v3063 = vld [vmem:[#allocation11 + $0x34] sm:$0xf]
    %v3064 = vld [vmem:[#allocation11 + $0x38] sm:$0xf]
    %v3065 = vld [vmem:[#allocation11 + $0x3c] sm:$0xf]
    %v3066 = vld [vmem:[#allocation11 + $0x40] sm:$0xf]
    %v3067 = vld [vmem:[#allocation11 + $0x44] sm:$0xf]
    %v3068 = vld [vmem:[#allocation11 + $0x48] sm:$0xf]
    %v3069 = vld [vmem:[#allocation11 + $0x4c] sm:$0xf]
    %v3070 = vld [vmem:[#allocation11 + $0x50] sm:$0xf]
    %v3071 = vld [vmem:[#allocation11 + $0x54] sm:$0xf]
    %v3072 = vld [vmem:[#allocation11 + $0x58] sm:$0xf]
    %v3073 = vld [vmem:[#allocation11 + $0x5c] sm:$0xf]
    %v3074 = vld [vmem:[#allocation11 + $0x60] sm:$0xf]
    %v3075 = vld [vmem:[#allocation11 + $0x64] sm:$0xf]
    %v3076 = vld [vmem:[#allocation11 + $0x68] sm:$0xf]
    %v3077 = vld [vmem:[#allocation11 + $0x6c] sm:$0xf]
    %v3078 = vld [vmem:[#allocation11 + $0x70] sm:$0xf]
    %v3079 = vld [vmem:[#allocation11 + $0x74] sm:$0xf]
    %v3080 = vld [vmem:[#allocation11 + $0x78] sm:$0xf]
    %v3081 = vld [vmem:[#allocation11 + $0x7c] sm:$0xf]
    %v3082 = vld [vmem:[#allocation11 + $0x80] sm:$0xf]
    %v3083 = vld [vmem:[#allocation11 + $0x84] sm:$0xf]
    %v3084 = vld [vmem:[#allocation11 + $0x88] sm:$0xf]
    %v3085 = vld [vmem:[#allocation11 + $0x8c] sm:$0xf]
    %v3086 = vld [vmem:[#allocation11 + $0x90] sm:$0xf]
    %v3087 = vld [vmem:[#allocation11 + $0x94] sm:$0xf]
    %v3088 = vld [vmem:[#allocation11 + $0x98] sm:$0xf]
    %v3089 = vld [vmem:[#allocation11 + $0x9c] sm:$0xf]
    %v3090 = vld [vmem:[#allocation11 + $0xa0] sm:$0xf]
    %v3091 = vld [vmem:[#allocation11 + $0xa4] sm:$0xf]
    %v3092 = vld [vmem:[#allocation11 + $0xa8] sm:$0xf]
    %v3093 = vld [vmem:[#allocation11 + $0xac] sm:$0xf]
    %v3094 = vld [vmem:[#allocation11 + $0xb0] sm:$0xf]
    %v3095 = vld [vmem:[#allocation11 + $0xb4] sm:$0xf]
    %v3096 = vld [vmem:[#allocation11 + $0xb8] sm:$0xf]
    %v3097 = vld [vmem:[#allocation11 + $0xbc] sm:$0xf]
    %v3098 = vld [vmem:[#allocation11 + $0xc0] sm:$0xf]
    %v3099 = vld [vmem:[#allocation11 + $0xc4] sm:$0xf]
    %v3100 = vld [vmem:[#allocation11 + $0xc8] sm:$0xf]
    %v3101 = vld [vmem:[#allocation11 + $0xcc] sm:$0xf]
    %v3102 = vld [vmem:[#allocation11 + $0xd0] sm:$0xf]
    %v3103 = vld [vmem:[#allocation11 + $0xd4] sm:$0xf]
    %v3104 = vld [vmem:[#allocation11 + $0xd8] sm:$0xf]
    %v3105 = vld [vmem:[#allocation11 + $0xdc] sm:$0xf]
    %v3106 = vld [vmem:[#allocation11 + $0xe0] sm:$0xf]
    %v3107 = vld [vmem:[#allocation11 + $0xe4] sm:$0xf]
    %v3108 = vld [vmem:[#allocation11 + $0xe8] sm:$0xf]
    %v3109 = vld [vmem:[#allocation11 + $0xec] sm:$0xf]
    %v3110 = vld [vmem:[#allocation11 + $0xf0] sm:$0xf]
    %v3111 = vld [vmem:[#allocation11 + $0xf4] sm:$0xf]
    %v3112 = vld [vmem:[#allocation11 + $0xf8] sm:$0xf]
    %v3113 = vld [vmem:[#allocation11 + $0xfc] sm:$0xf]
    %v3114 = vld [vmem:[%s8 + $0x3] sm:$0x1]
    %v3115 = vlaneseq
    %v3116 = vshrl.u32 %v3115, 7
    %v3117 = vsub.s32 0, %v3116
    %v3118 = vrot.slane %v3114, %v3117
    %v3183 = vunpack.c.l.b16 %v3050
    %v3184 = vunpack.c.l.b16 %v3051
    %v3185 = vunpack.c.l.b16 %v3052
    %v3186 = vunpack.c.l.b16 %v3053
    %v3187 = vunpack.c.l.b16 %v3054
    %v3188 = vunpack.c.l.b16 %v3055
    %v3189 = vunpack.c.l.b16 %v3056
    %v3190 = vunpack.c.l.b16 %v3057
    %v3191 = vunpack.c.l.b16 %v3058
    %v3192 = vunpack.c.l.b16 %v3059
    %v3193 = vunpack.c.l.b16 %v3060
    %v3194 = vunpack.c.l.b16 %v3061
    %v3195 = vunpack.c.l.b16 %v3062
    %v3196 = vunpack.c.l.b16 %v3063
    %v3197 = vunpack.c.l.b16 %v3064
    %v3198 = vunpack.c.l.b16 %v3065
    %v3199 = vunpack.c.l.b16 %v3066
    %v3200 = vunpack.c.l.b16 %v3067
    %v3201 = vunpack.c.l.b16 %v3068
    %v3202 = vunpack.c.l.b16 %v3069
    %v3203 = vunpack.c.l.b16 %v3070
    %v3204 = vunpack.c.l.b16 %v3071
    %v3205 = vunpack.c.l.b16 %v3072
    %v3206 = vunpack.c.l.b16 %v3073
    %v3207 = vunpack.c.l.b16 %v3074
    %v3208 = vunpack.c.l.b16 %v3075
    %v3209 = vunpack.c.l.b16 %v3076
    %v3210 = vunpack.c.l.b16 %v3077
    %v3211 = vunpack.c.l.b16 %v3078
    %v3212 = vunpack.c.l.b16 %v3079
    %v3213 = vunpack.c.l.b16 %v3080
    %v3214 = vunpack.c.l.b16 %v3081
    %v3215 = vunpack.c.l.b16 %v3082
    %v3216 = vunpack.c.l.b16 %v3083
    %v3217 = vunpack.c.l.b16 %v3084
    %v3218 = vunpack.c.l.b16 %v3085
    %v3219 = vunpack.c.l.b16 %v3086
    %v3220 = vunpack.c.l.b16 %v3087
    %v3221 = vunpack.c.l.b16 %v3088
    %v3222 = vunpack.c.l.b16 %v3089
    %v3223 = vunpack.c.l.b16 %v3090
    %v3224 = vunpack.c.l.b16 %v3091
    %v3225 = vunpack.c.l.b16 %v3092
    %v3226 = vunpack.c.l.b16 %v3093
    %v3227 = vunpack.c.l.b16 %v3094
    %v3228 = vunpack.c.l.b16 %v3095
    %v3229 = vunpack.c.l.b16 %v3096
    %v3230 = vunpack.c.l.b16 %v3097
    %v3231 = vunpack.c.l.b16 %v3098
    %v3232 = vunpack.c.l.b16 %v3099
    %v3233 = vunpack.c.l.b16 %v3100
    %v3234 = vunpack.c.l.b16 %v3101
    %v3235 = vunpack.c.l.b16 %v3102
    %v3236 = vunpack.c.l.b16 %v3103
    %v3237 = vunpack.c.l.b16 %v3104
    %v3238 = vunpack.c.l.b16 %v3105
    %v3239 = vunpack.c.l.b16 %v3106
    %v3240 = vunpack.c.l.b16 %v3107
    %v3241 = vunpack.c.l.b16 %v3108
    %v3242 = vunpack.c.l.b16 %v3109
    %v3243 = vunpack.c.l.b16 %v3110
    %v3244 = vunpack.c.l.b16 %v3111
    %v3245 = vunpack.c.l.b16 %v3112
    %v3246 = vunpack.c.l.b16 %v3113
    %v3247 = vpack.c.b16 %v3184, %v3183
    %v3248 = vpack.c.b16 %v3186, %v3185
    %v3249 = vpack.c.b16 %v3188, %v3187
    %v3250 = vpack.c.b16 %v3190, %v3189
    %v3251 = vpack.c.b16 %v3192, %v3191
    %v3252 = vpack.c.b16 %v3194, %v3193
    %v3253 = vpack.c.b16 %v3196, %v3195
    %v3254 = vpack.c.b16 %v3198, %v3197
    %v3255 = vpack.c.b16 %v3200, %v3199
    %v3256 = vpack.c.b16 %v3202, %v3201
    %v3257 = vpack.c.b16 %v3204, %v3203
    %v3258 = vpack.c.b16 %v3206, %v3205
    %v3259 = vpack.c.b16 %v3208, %v3207
    %v3260 = vpack.c.b16 %v3210, %v3209
    %v3261 = vpack.c.b16 %v3212, %v3211
    %v3262 = vpack.c.b16 %v3214, %v3213
    %v3263 = vpack.c.b16 %v3216, %v3215
    %v3264 = vpack.c.b16 %v3218, %v3217
    %v3265 = vpack.c.b16 %v3220, %v3219
    %v3266 = vpack.c.b16 %v3222, %v3221
    %v3267 = vpack.c.b16 %v3224, %v3223
    %v3268 = vpack.c.b16 %v3226, %v3225
    %v3269 = vpack.c.b16 %v3228, %v3227
    %v3270 = vpack.c.b16 %v3230, %v3229
    %v3271 = vpack.c.b16 %v3232, %v3231
    %v3272 = vpack.c.b16 %v3234, %v3233
    %v3273 = vpack.c.b16 %v3236, %v3235
    %v3274 = vpack.c.b16 %v3238, %v3237
    %v3275 = vpack.c.b16 %v3240, %v3239
    %v3276 = vpack.c.b16 %v3242, %v3241
    %v3277 = vpack.c.b16 %v3244, %v3243
    %v3278 = vpack.c.b16 %v3246, %v3245
    %3311 = vmatprep.subr.bf16.mxu0 0
    %3312 = vmatpush1.bf16.msra.mxu0 %v3247
    %3313 = vmatprep.subr.bf16.mxu0 0
    %3314 = vmatpush1.bf16.msra.mxu0 %v3248
    %3315 = vmatprep.subr.bf16.mxu0 0
    %3316 = vmatpush1.bf16.msra.mxu0 %v3249
    %3317 = vmatprep.subr.bf16.mxu0 0
    %3318 = vmatpush1.bf16.msra.mxu0 %v3250
    %3319 = vmatprep.subr.bf16.mxu0 0
    %3320 = vmatpush1.bf16.msra.mxu0 %v3251
    %3321 = vmatprep.subr.bf16.mxu0 0
    %3322 = vmatpush1.bf16.msra.mxu0 %v3252
    %3323 = vmatprep.subr.bf16.mxu0 0
    %3324 = vmatpush1.bf16.msra.mxu0 %v3253
    %3325 = vmatprep.subr.bf16.mxu0 0
    %3326 = vmatpush1.bf16.msra.mxu0 %v3254
    %3327 = vmatprep.subr.bf16.mxu0 0
    %3328 = vmatpush1.bf16.msra.mxu0 %v3255
    %3329 = vmatprep.subr.bf16.mxu0 0
    %3330 = vmatpush1.bf16.msra.mxu0 %v3256
    %3331 = vmatprep.subr.bf16.mxu0 0
    %3332 = vmatpush1.bf16.msra.mxu0 %v3257
    %3333 = vmatprep.subr.bf16.mxu0 0
    %3334 = vmatpush1.bf16.msra.mxu0 %v3258
    %3335 = vmatprep.subr.bf16.mxu0 0
    %3336 = vmatpush1.bf16.msra.mxu0 %v3259
    %3337 = vmatprep.subr.bf16.mxu0 0
    %3338 = vmatpush1.bf16.msra.mxu0 %v3260
    %3339 = vmatprep.subr.bf16.mxu0 0
    %3340 = vmatpush1.bf16.msra.mxu0 %v3261
    %3341 = vmatprep.subr.bf16.mxu0 0
    %3342 = vmatpush1.bf16.msra.mxu0 %v3262
    %3343 = vmatprep.mubr.bf16.mxu0 %v3047
    %3344 = vmatmul.mubr.bf16.gmra.mrb[0].mxu0 %v3046
    %v3345 = vpop.f32.mrb[0].mxu0
    %v3346 = vadd.f32 %v3118, %v3345
    %v3347 = vpop.f32.mrb[0].mxu0
    %v3348 = vpop.f32.mrb[0].mxu0
    %v3349 = vadd.f32 %v3118, %v3348
    %v3350 = vpop.f32.mrb[0].mxu0
    %3351 = vdwg.mxu0
    %3352 = vmatprep.subr.bf16.mxu0 0
    %3353 = vmatpush1.bf16.msra.mxu0 %v3263
    %3354 = vmatprep.subr.bf16.mxu0 0
    %3355 = vmatpush1.bf16.msra.mxu0 %v3264
    %3356 = vmatprep.subr.bf16.mxu0 0
    %3357 = vmatpush1.bf16.msra.mxu0 %v3265
    %3358 = vmatprep.subr.bf16.mxu0 0
    %3359 = vmatpush1.bf16.msra.mxu0 %v3266
    %3360 = vmatprep.subr.bf16.mxu0 0
    %3361 = vmatpush1.bf16.msra.mxu0 %v3267
    %3362 = vmatprep.subr.bf16.mxu0 0
    %3363 = vmatpush1.bf16.msra.mxu0 %v3268
    %3364 = vmatprep.subr.bf16.mxu0 0
    %3365 = vmatpush1.bf16.msra.mxu0 %v3269
    %3366 = vmatprep.subr.bf16.mxu0 0
    %3367 = vmatpush1.bf16.msra.mxu0 %v3270
    %3368 = vmatprep.subr.bf16.mxu0 0
    %3369 = vmatpush1.bf16.msra.mxu0 %v3271
    %3370 = vmatprep.subr.bf16.mxu0 0
    %3371 = vmatpush1.bf16.msra.mxu0 %v3272
    %3372 = vmatprep.subr.bf16.mxu0 0
    %3373 = vmatpush1.bf16.msra.mxu0 %v3273
    %3374 = vmatprep.subr.bf16.mxu0 0
    %3375 = vmatpush1.bf16.msra.mxu0 %v3274
    %3376 = vmatprep.subr.bf16.mxu0 0
    %3377 = vmatpush1.bf16.msra.mxu0 %v3275
    %3378 = vmatprep.subr.bf16.mxu0 0
    %3379 = vmatpush1.bf16.msra.mxu0 %v3276
    %3380 = vmatprep.subr.bf16.mxu0 0
    %3381 = vmatpush1.bf16.msra.mxu0 %v3277
    %3382 = vmatprep.subr.bf16.mxu0 0
    %3383 = vmatpush1.bf16.msra.mxu0 %v3278
    %3384 = vmatprep.mubr.bf16.mxu0 %v3049
    %3385 = vmatmul.mubr.bf16.gmra.mrb[0].mxu0 %v3048
    %v3386 = vpop.f32.mrb[0].mxu0
    %v3387 = vadd.f32 %v3346, %v3386
    %v3388 = vpop.f32.mrb[0].mxu0
    %v3389 = vpop.f32.mrb[0].mxu0
    %v3390 = vadd.f32 %v3349, %v3389
    %v3391 = vpop.f32.mrb[0].mxu0
    %3392 = vdwg.mxu0
    %v3393 = vadd.f32 %v2671, %v3387
    %v3394 = vadd.f32 %v2672, %v3390
    %v3395 = vld [vmem:[%s8 + $0x4] sm:$0x1]
    %v3396 = vld [vmem:[%s8 + $0x5] sm:$0x1]
    %3397 = vadd.xlane.f32.xlu0 %v3393
    %v3398 = vpop.xlane.xlu0 %3397
    %3399 = vadd.xlane.f32.xlu0 %v3394
    %v3400 = vpop.xlane.xlu0 %3399
    %v3401 = vmul.f32 %v3398, %v2642
    %v3402 = vmul.f32 %v3400, %v2642
    %v3403 = vsub.f32 %v3393, %v3401
    %v3404 = vsub.f32 %v3394, %v3402
    %v3405 = vmul.f32 %v3403, %v3403
    %v3406 = vmul.f32 %v3404, %v3404
    %3407 = vadd.xlane.f32.xlu0 %v3405
    %v3408 = vpop.xlane.xlu0 %3407
    %3409 = vadd.xlane.f32.xlu0 %v3406
    %v3410 = vpop.xlane.xlu0 %3409
    %v3411 = vmul.f32 %v3408, %v2642
    %v3412 = vmul.f32 %v3410, %v2642
    %v3413 = vadd.f32 %v3411, 1e-12
    %v3414 = vadd.f32 %v3412, 1e-12
    %v3415 = vrsqrt.pop %v3413
    %v3416 = vrsqrt.pop %v3414
    %v3417 = vmul.f32 %v3403, %v3415
    %v3418 = vmul.f32 %v3404, %v3416
    %v3419 = vlaneseq
    %v3420 = vshrl.u32 %v3419, 7
    %v3421 = vsub.s32 0, %v3420
    %v3422 = vrot.slane %v3395, %v3421
    %v3423 = vmul.f32 %v3417, %v3422
    %v3424 = vmul.f32 %v3418, %v3422
    %v3425 = vlaneseq
    %v3426 = vshrl.u32 %v3425, 7
    %v3427 = vsub.s32 0, %v3426
    %v3428 = vrot.slane %v3396, %v3427
    %v3429 = vadd.f32 %v3423, %v3428
    %v3430 = vadd.f32 %v3424, %v3428
    %v3431 = vmul.f32 %v3429, %v3429
    %v3432 = vmul.f32 %v3430, %v3430
    %v3435 = vrot.slane %v3432, 7
    %vm3436 = vcmask 1041409
    %v3437 = vsel %vm3436, %v3435, %v3431
    %vm3439 = vcmask 1041408
    %v3440 = vsel %vm3439, %v3437, 0.0
    %3441 = vadd.xlane.f32.xlu0 %v3440
    %v3442 = vpop.xlane.xlu0 %3441
    %v3443 = vrsqrt.pop %v3442
    %v3444 = vmul.f32 %v3442, %v3443
    %vm3445 = vcmp.eq.f32.partialorder %v3442, inf
    %v3446 = vsel %vm3445, %v3442, %v3444
    %vm3447 = vcmp.eq.f32.partialorder %v3442, 0.0
    %v3448 = vand.u32 %v3442, 2147483648
    %v3449 = vsel %vm3447, %v3448, %v3446
    %v3450 = vmax.f32 %v3449, 1e-12
    %v3452 = vrot.slane %v3450, 1
    %v3455 = vrcp.pop %v3450
    %v3456 = vmul.f32 %v3429, %v3455
    %v3457 = vrcp.pop %v3452
    %v3458 = vmul.f32 %v3430, %v3457
    %v3461 = vrot.slane %v3458, 7
    %v3462 = vsel %vm3436, %v3461, %v3456
    %3464 = vst [vmem:[#allocation13] sm:$0x3] %v3462
    // Predicated region
    $region62: #{tpu_custom_call.1} parent=1 // pred_check
      _
    $region63: #{tpu_custom_call.1} parent=1 // pred_check_branch
      %3466 = sbr.rel (0) target = $region65
    $region64: #{tpu_custom_call.1} parent=1 // pred_region
      %s3468 = ssub.s32 32, 32
      %3469 = vsyncadd [#allocation4], %s3468
      %s3471 = sshll.u32 [#allocation13], 4
      %s3472 = int_to_ptr.vmem [resolvable:$true] %s3471
      %3474 = dma.vmem_to_hbm [thread:$0]  %s3472, 32, %s9, [#allocation4]
    $region65: #{tpu_custom_call.1} parent=1 // pred_fallthru
      _
    // Predicated region
    $region66: #{tpu_custom_call.1} parent=1 // pred_check
      _
    $region67: #{tpu_custom_call.1} parent=1 // pred_check_branch
      %3476 = sbr.rel (0) target = $region69
    $region68: #{tpu_custom_call.1} parent=1 // pred_region
      %3477 = dma.done [#allocation4], 32
    $region69: #{tpu_custom_call.1} parent=1 // pred_fallthru
      _
    %3478 = vsyncpa [#allocation3], 1
    %3479 = vsyncpa [#allocation6], 1
    %3480 = vsyncpa [#allocation9], 1
    %3481 = vsyncpa [#allocation12], 1
    %3482 = vsyncpa [#allocation4], 1

</llo_original>
